<compile_context>
chip_gen: v7x
topology: tpu7x:2x2x1
jax: 0.10.0
libtpu: 0.0.40
codegen_flags: <defaults>
</compile_context>

<pallas_src>
import math
from functools import partial

import jax
import jax.numpy as jnp
from jax.experimental import pallas as pl
from jax.experimental.pallas import tpu as pltpu


# ----------------------------- tiling helpers ------------------------------

def _node_tile(n):
    """Node-tile size: prefer a grid of 4 steps (2 per v7x core), else 3/2, else 1."""
    for steps in (4, 3, 2):
        if n % steps == 0:
            return n // steps
    return n


def _col_tile(cols):
    """Largest lane-dense (multiple-of-128) column tile giving a small grid."""
    for steps in (2, 3, 4):
        if cols % steps == 0 and (cols // steps) % 128 == 0:
            return cols // steps
    return cols


# ------------------------------ kernel bodies ------------------------------

def _gated_tconv(x_ref, w_ref, b_ref):
    """Gated temporal conv (Conv2d kernel (1,3)) on a (nt, B, TP, Cin) block.

    The three taps are read as sublane-offset windows of extent WE = TP - 8 and
    flattened to (nt*B*WE, Cin) so each tap is ONE matmul with a large M.
    Returns the gated/relu'd result as a flat f32 (nt*B*WE, Cout) value.
    """
    nt, bb, tp, cin = x_ref.shape
    we = tp - 8
    m = nt * bb * we
    co = w_ref.shape[-1] // 3

    def tap(k):
        return x_ref[:, :, k:k + we, :].astype(jnp.bfloat16).reshape(m, cin)

    acc = jnp.dot(tap(0), w_ref[0], preferred_element_type=jnp.float32)
    acc = acc + jnp.dot(tap(1), w_ref[1], preferred_element_type=jnp.float32)
    acc = acc + jnp.dot(tap(2), w_ref[2], preferred_element_type=jnp.float32)
    acc = acc + b_ref[...]
    out = jnp.maximum(
        acc[:, 0:co] + jax.nn.sigmoid(acc[:, co:2 * co]) + acc[:, 2 * co:3 * co],
        0.0)
    return out, (nt, bb, we, co)


def _front_kernel(x_ref, w_ref, b_ref, th_ref, o_ref):
    """temporal1 (gated conv) fused with the Theta1 projection (Cout -> S)."""
    t1, (nt, bb, we, _co) = _gated_tconv(x_ref, w_ref, b_ref)
    p = jnp.dot(t1.astype(jnp.bfloat16), th_ref[...],
                preferred_element_type=jnp.float32)
    s = th_ref.shape[-1]
    tp = o_ref.shape[2]
    o_ref[:, :, 0:we, :] = p.reshape(nt, bb, we, s).astype(o_ref.dtype)
    o_ref[:, :, we:tp, :] = jnp.zeros((nt, bb, tp - we, s), o_ref.dtype)


def _graph_kernel(a_ref, p_ref, o_ref):
    """lfs = relu(A_hat @ p) on the (N, B*TP*S) 2-D slab (node contraction)."""
    lfs = jnp.dot(a_ref[...].astype(jnp.bfloat16),
                  p_ref[...].astype(jnp.bfloat16),
                  preferred_element_type=jnp.float32)
    o_ref[...] = jnp.maximum(lfs, 0.0).astype(o_ref.dtype)


def _back_kernel(lfs_ref, w_ref, b_ref, g_ref, be_ref, o_ref, *, valid_t):
    """temporal2 (gated conv) fused with single-pass per-node BatchNorm."""
    t3, (nt, bb, we, co) = _gated_tconv(lfs_ref, w_ref, b_ref)
    t3 = t3.reshape(nt, bb, we, co)

    xv = t3[:, :, 0:valid_t, :]                         # valid timesteps only
    inv = 1.0 / float(bb * valid_t * co)
    s = jnp.sum(xv, axis=3, keepdims=True)
    s = jnp.sum(s, axis=2, keepdims=True)
    s = jnp.sum(s, axis=1, keepdims=True)
    mean = s * inv                                       # (nt, 1, 1, 1)
    d = xv - mean
    ss = jnp.sum(d * d, axis=3, keepdims=True)
    ss = jnp.sum(ss, axis=2, keepdims=True)
    ss = jnp.sum(ss, axis=1, keepdims=True)
    rstd = jax.lax.rsqrt(ss * inv + 1e-5)                # biased var, eps=1e-5
    scale = rstd * g_ref[...]
    shift = be_ref[...] - mean * scale

    tp = o_ref.shape[2]
    o_ref[:, :, 0:we, :] = (t3 * scale + shift).astype(o_ref.dtype)
    o_ref[:, :, we:tp, :] = jnp.zeros((nt, bb, tp - we, co), o_ref.dtype)


def _timeblock_kernel(x_ref, w_ref, b_ref, o_ref):
    """Plain TimeBlock (used for last_temporal)."""
    t1, (nt, bb, we, co) = _gated_tconv(x_ref, w_ref, b_ref)
    tp = o_ref.shape[2]
    o_ref[:, :, 0:we, :] = t1.reshape(nt, bb, we, co).astype(o_ref.dtype)
    o_ref[:, :, we:tp, :] = jnp.zeros((nt, bb, tp - we, co), o_ref.dtype)


# ------------------------------ pallas wrappers ----------------------------

_PARALLEL1 = pltpu.CompilerParams(dimension_semantics=("parallel",))


def gated_front(x, wcat, bcat, theta):
    """x: (N, B, TP, Cin) -> p: (N, B, TP, S) (temporal1 + Theta1)."""
    n, b, tp, cin = x.shape
    s = theta.shape[-1]
    nt = _node_tile(n)
    return pl.pallas_call(
        _front_kernel,
        out_shape=jax.ShapeDtypeStruct((n, b, tp, s), jnp.float32),
        grid=(n // nt,),
        in_specs=[
            pl.BlockSpec((nt, b, tp, cin), lambda i: (i, 0, 0, 0)),
            pl.BlockSpec(wcat.shape, lambda i: (0, 0, 0)),
            pl.BlockSpec(bcat.shape, lambda i: (0, 0)),
            pl.BlockSpec(theta.shape, lambda i: (0, 0)),
        ],
        out_specs=pl.BlockSpec((nt, b, tp, s), lambda i: (i, 0, 0, 0)),
        compiler_params=_PARALLEL1,
    )(x, wcat, bcat, theta)


def graph_conv(a_hat, p):
    """lfs = relu(A_hat @ p) over the node axis; p: (N, B, TP, S)."""
    n, b, tp, s = p.shape
    cols = b * tp * s
    p2 = p.reshape(n, cols)                    # same HBM bytes, free view
    ct = _col_tile(cols)
    lfs2 = pl.pallas_call(
        _graph_kernel,
        out_shape=jax.ShapeDtypeStruct((n, cols), jnp.float32),
        grid=(cols // ct,),
        in_specs=[pl.BlockSpec((n, n), lambda i: (0, 0)),
                  pl.BlockSpec((n, ct), lambda i: (0, i))],
        out_specs=pl.BlockSpec((n, ct), lambda i: (0, i)),
        compiler_params=_PARALLEL1,
    )(a_hat, p2)
    return lfs2.reshape(n, b, tp, s)


def gated_back(lfs, wcat, bcat, gamma, beta, valid_t):
    """lfs: (N, B, TP, S) -> BN(temporal2(lfs)): (N, B, TP, 64), valid_t valid steps."""
    n, b, tp, s = lfs.shape
    co = bcat.shape[-1] // 3
    nt = _node_tile(n)
    return pl.pallas_call(
        partial(_back_kernel, valid_t=valid_t),
        out_shape=jax.ShapeDtypeStruct((n, b, tp, co), jnp.float32),
        grid=(n // nt,),
        in_specs=[
            pl.BlockSpec((nt, b, tp, s), lambda i: (i, 0, 0, 0)),
            pl.BlockSpec(wcat.shape, lambda i: (0, 0, 0)),
            pl.BlockSpec(bcat.shape, lambda i: (0, 0)),
            pl.BlockSpec((nt, 1, 1, 1), lambda i: (i, 0, 0, 0)),
            pl.BlockSpec((nt, 1, 1, 1), lambda i: (i, 0, 0, 0)),
        ],
        out_specs=pl.BlockSpec((nt, b, tp, co), lambda i: (i, 0, 0, 0)),
        compiler_params=_PARALLEL1,
    )(lfs, wcat, bcat, gamma, beta)


def time_block_last(x, wcat, bcat):
    """Plain TimeBlock: x (N, B, TP, Cin) -> (N, B, TP, Cout)."""
    n, b, tp, cin = x.shape
    co = bcat.shape[-1] // 3
    nt = _node_tile(n)
    return pl.pallas_call(
        _timeblock_kernel,
        out_shape=jax.ShapeDtypeStruct((n, b, tp, co), jnp.float32),
        grid=(n // nt,),
        in_specs=[
            pl.BlockSpec((nt, b, tp, cin), lambda i: (i, 0, 0, 0)),
            pl.BlockSpec(wcat.shape, lambda i: (0, 0, 0)),
            pl.BlockSpec(bcat.shape, lambda i: (0, 0)),
        ],
        out_specs=pl.BlockSpec((nt, b, tp, co), lambda i: (i, 0, 0, 0)),
        compiler_params=_PARALLEL1,
    )(x, wcat, bcat)


# ------------------------------ model forward ------------------------------

def stgcn_block(x, a_hat, p, valid_in):
    """One STGCNBlock. x: (N, B, TP, Cin) with `valid_in` valid timesteps."""
    p1 = gated_front(x, *p["temporal1"], p["theta1"])        # (N, B, TP, 16)
    lfs = graph_conv(a_hat, p1)                              # (N, B, TP, 16)
    return gated_back(lfs, *p["temporal2"], p["bn_gamma"], p["bn_beta"],
                      valid_in - 4)                          # (N, B, TP, 64)


def stgcn_forward(a_hat, x, params):
    # x: (B, T, N, F).  PyTorch does X.permute(0, 2, 1, 3); we go node-major
    # (N, B, T, F) once and pad time to a multiple of 8 with +6 slack so every
    # in-kernel flatten is layout-preserving.
    b, t, n, fin = x.shape
    tp = ((t + 6 + 7) // 8) * 8
    xs = jnp.transpose(x, (2, 0, 1, 3))
    xs = jnp.pad(xs, ((0, 0), (0, 0), (0, tp - t), (0, 0)))

    o1 = stgcn_block(xs, a_hat, params["block1"], t)         # valid t-4
    o2 = stgcn_block(o1, a_hat, params["block2"], t - 4)     # valid t-8
    o3 = time_block_last(o2, *params["last_temporal"])       # valid t-10
    # nn.Dropout(p=0.1): identity here.
    # TODO(synk): stochastic training-mode dropout not modeled (non-deterministic).
    t_final = t - 10
    c = o3.shape[-1]
    out3 = o3[:, :, 0:t_final, :]                            # (N, B, t_final, 64)

    # Tiny final Linears: plain XLA dots.
    out4 = jnp.dot(out3.reshape(n * b, t_final * c), params["fully_w"]) \
        + params["fully_b"]
    t_out = params["fully_w"].shape[-1]
    out4 = jnp.transpose(out4.reshape(n, b, t_out), (1, 0, 2)).reshape(b, n * t_out)
    logits = jnp.dot(out4, params["fc_w"]) + params["fc_b"]
    return logits  # (B, num_classes); eval=False => no softmax


# --------------------------- params / adjacency ----------------------------

def get_normalized_adj(A):
    A = A + jnp.eye(A.shape[0], dtype=jnp.float32)
    D = jnp.sum(A, axis=1)
    D = jnp.where(D <= 0.0001, 0.0001, D)
    diag = 1.0 / jnp.sqrt(D)
    return diag[:, None] * A * diag[None, :]


def init_params(key, num_nodes, num_features, t_in, t_out, num_classes):
    keys = iter(jax.random.split(key, 64))

    def timeblock_params(cin, cout):
        # Three Conv2d(cin, cout, (1,3)) branches, tap-major (3, cin, cout) each,
        # fused along the output axis: wcat[k] = [W1_k | W2_k | W3_k].
        bound = 1.0 / math.sqrt(cin * 3)
        ws, bs = [], []
        for _ in range(3):  # conv1, conv2, conv3
            ws.append(jax.random.uniform(next(keys), (3, cin, cout), jnp.float32,
                                         -bound, bound))
            bs.append(jax.random.uniform(next(keys), (1, cout), jnp.float32,
                                         -bound, bound))
        wcat = jnp.concatenate(ws, axis=-1).astype(jnp.bfloat16)  # (3, cin, 3*cout)
        bcat = jnp.concatenate(bs, axis=-1)                       # (1, 3*cout) f32
        return (wcat, bcat)

    def block_params(cin, cout, spatial, n):
        stdv = 1.0 / math.sqrt(spatial)
        theta = jax.random.uniform(next(keys), (cout, spatial), jnp.float32,
                                   -stdv, stdv).astype(jnp.bfloat16)
        return dict(
            temporal1=timeblock_params(cin, cout),
            theta1=theta,
            temporal2=timeblock_params(spatial, cout),
            bn_gamma=jnp.ones((n, 1, 1, 1), jnp.float32),
            bn_beta=jnp.zeros((n, 1, 1, 1), jnp.float32),
        )

    def linear_params(kin, kout):
        bound = 1.0 / math.sqrt(kin)
        w = jax.random.uniform(next(keys), (kin, kout), jnp.float32, -bound, bound)
        b = jax.random.uniform(next(keys), (1, kout), jnp.float32, -bound, bound)
        return w, b

    fully_w, fully_b = linear_params((t_in - 10) * 64, t_out)
    fc_w, fc_b = linear_params(num_nodes * t_out, num_classes)
    return dict(
        block1=block_params(num_features, 64, 16, num_nodes),
        block2=block_params(64, 64, 16, num_nodes),
        last_temporal=timeblock_params(64, 64),
        fully_w=fully_w, fully_b=fully_b,
        fc_w=fc_w, fc_b=fc_b,
    )


if __name__ == "__main__":
    # Small shapes: batch=2, num_nodes=8, num_timesteps_input=16, num_features=4,
    # num_timesteps_output=8, num_classes=8.  (T must be >= 11: time shrinks by 10.)
    B, T, N, F = 2, 16, 8, 4
    T_OUT, NUM_CLASSES = 8, 8

    key = jax.random.PRNGKey(0)
    kx, ka, kp = jax.random.split(key, 3)

    x = jax.random.normal(kx, (B, T, N, F), jnp.float32)
    adj = (jax.random.uniform(ka, (N, N)) > 0.5).astype(jnp.float32)
    adj = jnp.maximum(adj, adj.T)
    a_hat = get_normalized_adj(adj)

    params = init_params(kp, N, F, T, T_OUT, NUM_CLASSES)

    fwd = jax.jit(stgcn_forward)
    logits = fwd(a_hat, x, params)
    jax.block_until_ready(logits)
    assert logits.shape == (B, NUM_CLASSES), logits.shape
    assert bool(jnp.all(jnp.isfinite(logits)))
    print("KERNEL_OK")
</pallas_src>

<mosaic_0001>
module attributes {stable_mosaic.version = 11 : i64} {
  func.func @_front_kernel(%arg0: i32, %arg1: memref<2x2x24x4xf32, #tpu.memory_space<vmem>>, %arg2: memref<3x4x192xbf16, #tpu.memory_space<vmem>>, %arg3: memref<1x192xf32, #tpu.memory_space<vmem>>, %arg4: memref<64x16xbf16, #tpu.memory_space<vmem>>, %arg5: memref<2x2x24x16xf32, #tpu.memory_space<vmem>>) attributes {dimension_semantics = [#tpu.dimension_semantics<parallel>], iteration_bounds = array<i64: 4>, scalar_prefetch = 0 : i64, scratch_operands = 0 : i64, tpu.core_type = #tpu.core_type<tc>, window_params = [{transform_indices = @transform_0, window_bounds = array<i64: 2, 2, 24, 4>}, {pipeline_mode = #tpu.pipeline_mode<synchronous>, transform_indices = @transform_1, window_bounds = array<i64: 3, 4, 192>}, {pipeline_mode = #tpu.pipeline_mode<synchronous>, transform_indices = @transform_2, window_bounds = array<i64: 1, 192>}, {pipeline_mode = #tpu.pipeline_mode<synchronous>, transform_indices = @transform_3, window_bounds = array<i64: 64, 16>}, {transform_indices = @transform_4, window_bounds = array<i64: 2, 2, 24, 16>}]} {
    %c0 = arith.constant 0 : index
    %c0_0 = arith.constant 0 : index
    %c0_1 = arith.constant 0 : index
    %c0_2 = arith.constant 0 : index
    %0 = vector.load %arg1[%c0, %c0_0, %c0_1, %c0_2] : memref<2x2x24x4xf32, #tpu.memory_space<vmem>>, vector<2x2x16x4xf32>
    %1 = arith.truncf %0 : vector<2x2x16x4xf32> to vector<2x2x16x4xbf16>
    %2 = vector.shape_cast %1 : vector<2x2x16x4xbf16> to vector<64x4xbf16>
    %c0_3 = arith.constant 0 : index
    %c0_4 = arith.constant 0 : index
    %c0_5 = arith.constant 0 : index
    %3 = vector.load %arg2[%c0_3, %c0_4, %c0_5] : memref<3x4x192xbf16, #tpu.memory_space<vmem>>, vector<1x4x192xbf16>
    %4 = vector.shape_cast %3 : vector<1x4x192xbf16> to vector<4x192xbf16>
    %cst = arith.constant dense<0.000000e+00> : vector<64x192xf32>
    %5 = tpu.matmul %2, %4, %cst {dimension_numbers = #tpu.dot_dimension_numbers<[1], [0], [0], [1], [0, 0, 1, 1], [], []>} : vector<64x4xbf16>, vector<4x192xbf16>, vector<64x192xf32> -> vector<64x192xf32>
    %c0_6 = arith.constant 0 : index
    %c0_7 = arith.constant 0 : index
    %c1 = arith.constant 1 : index
    %c0_8 = arith.constant 0 : index
    %6 = vector.load %arg1[%c0_6, %c0_7, %c1, %c0_8] : memref<2x2x24x4xf32, #tpu.memory_space<vmem>>, vector<2x2x16x4xf32>
    %7 = arith.truncf %6 : vector<2x2x16x4xf32> to vector<2x2x16x4xbf16>
    %8 = vector.shape_cast %7 : vector<2x2x16x4xbf16> to vector<64x4xbf16>
    %c1_9 = arith.constant 1 : index
    %c0_10 = arith.constant 0 : index
    %c0_11 = arith.constant 0 : index
    %9 = vector.load %arg2[%c1_9, %c0_10, %c0_11] : memref<3x4x192xbf16, #tpu.memory_space<vmem>>, vector<1x4x192xbf16>
    %10 = vector.shape_cast %9 : vector<1x4x192xbf16> to vector<4x192xbf16>
    %cst_12 = arith.constant dense<0.000000e+00> : vector<64x192xf32>
    %11 = tpu.matmul %8, %10, %cst_12 {dimension_numbers = #tpu.dot_dimension_numbers<[1], [0], [0], [1], [0, 0, 1, 1], [], []>} : vector<64x4xbf16>, vector<4x192xbf16>, vector<64x192xf32> -> vector<64x192xf32>
    %12 = arith.addf %5, %11 : vector<64x192xf32>
    %c0_13 = arith.constant 0 : index
    %c0_14 = arith.constant 0 : index
    %c2 = arith.constant 2 : index
    %c0_15 = arith.constant 0 : index
    %13 = vector.load %arg1[%c0_13, %c0_14, %c2, %c0_15] : memref<2x2x24x4xf32, #tpu.memory_space<vmem>>, vector<2x2x16x4xf32>
    %14 = arith.truncf %13 : vector<2x2x16x4xf32> to vector<2x2x16x4xbf16>
    %15 = vector.shape_cast %14 : vector<2x2x16x4xbf16> to vector<64x4xbf16>
    %c2_16 = arith.constant 2 : index
    %c0_17 = arith.constant 0 : index
    %c0_18 = arith.constant 0 : index
    %16 = vector.load %arg2[%c2_16, %c0_17, %c0_18] : memref<3x4x192xbf16, #tpu.memory_space<vmem>>, vector<1x4x192xbf16>
    %17 = vector.shape_cast %16 : vector<1x4x192xbf16> to vector<4x192xbf16>
    %cst_19 = arith.constant dense<0.000000e+00> : vector<64x192xf32>
    %18 = tpu.matmul %15, %17, %cst_19 {dimension_numbers = #tpu.dot_dimension_numbers<[1], [0], [0], [1], [0, 0, 1, 1], [], []>} : vector<64x4xbf16>, vector<4x192xbf16>, vector<64x192xf32> -> vector<64x192xf32>
    %19 = arith.addf %12, %18 : vector<64x192xf32>
    %c0_20 = arith.constant 0 : index
    %c0_21 = arith.constant 0 : index
    %20 = vector.load %arg3[%c0_20, %c0_21] : memref<1x192xf32, #tpu.memory_space<vmem>>, vector<1x192xf32>
    %21 = vector.broadcast %20 : vector<1x192xf32> to vector<64x192xf32>
    %22 = arith.addf %19, %21 : vector<64x192xf32>
    %23 = vector.extract_strided_slice %22 {offsets = [0, 0], sizes = [64, 64], strides = [1, 1]} : vector<64x192xf32> to vector<64x64xf32>
    %24 = vector.extract_strided_slice %22 {offsets = [0, 64], sizes = [64, 64], strides = [1, 1]} : vector<64x192xf32> to vector<64x64xf32>
    %25 = arith.negf %24 : vector<64x64xf32>
    %26 = math.exp %25 : vector<64x64xf32>
    %cst_22 = arith.constant 1.000000e+00 : f32
    %27 = vector.broadcast %cst_22 : f32 to vector<64x64xf32>
    %28 = arith.addf %27, %26 : vector<64x64xf32>
    %29 = arith.divf %27, %28 : vector<64x64xf32>
    %30 = arith.addf %23, %29 : vector<64x64xf32>
    %31 = vector.extract_strided_slice %22 {offsets = [0, 128], sizes = [64, 64], strides = [1, 1]} : vector<64x192xf32> to vector<64x64xf32>
    %32 = arith.addf %30, %31 : vector<64x64xf32>
    %cst_23 = arith.constant 0.000000e+00 : f32
    %33 = vector.broadcast %cst_23 : f32 to vector<64x64xf32>
    %34 = arith.maximumf %32, %33 : vector<64x64xf32>
    %35 = arith.truncf %34 : vector<64x64xf32> to vector<64x64xbf16>
    %c0_24 = arith.constant 0 : index
    %c0_25 = arith.constant 0 : index
    %36 = vector.load %arg4[%c0_24, %c0_25] : memref<64x16xbf16, #tpu.memory_space<vmem>>, vector<64x16xbf16>
    %cst_26 = arith.constant dense<0.000000e+00> : vector<64x16xf32>
    %37 = tpu.matmul %35, %36, %cst_26 {dimension_numbers = #tpu.dot_dimension_numbers<[1], [0], [0], [1], [0, 0, 1, 1], [], []>} : vector<64x64xbf16>, vector<64x16xbf16>, vector<64x16xf32> -> vector<64x16xf32>
    %38 = vector.shape_cast %37 : vector<64x16xf32> to vector<2x2x16x16xf32>
    %c0_27 = arith.constant 0 : index
    %c0_28 = arith.constant 0 : index
    %c0_29 = arith.constant 0 : index
    %c0_30 = arith.constant 0 : index
    %39 = vector.load %arg5[%c0_27, %c0_28, %c0_29, %c0_30] : memref<2x2x24x16xf32, #tpu.memory_space<vmem>>, vector<2x2x16x16xf32>
    tpu.vector_store %arg5[%c0_27, %c0_28, %c0_29, %c0_30], %38 {strides = array<i32>} : memref<2x2x24x16xf32, #tpu.memory_space<vmem>>, vector<2x2x16x16xf32>,
    %cst_31 = arith.constant 0.000000e+00 : f32
    %40 = vector.broadcast %cst_31 : f32 to vector<2x2x8x16xf32>
    %c0_32 = arith.constant 0 : index
    %c0_33 = arith.constant 0 : index
    %c16 = arith.constant 16 : index
    %c0_34 = arith.constant 0 : index
    %41 = vector.load %arg5[%c0_32, %c0_33, %c16, %c0_34] : memref<2x2x24x16xf32, #tpu.memory_space<vmem>>, vector<2x2x8x16xf32>
    tpu.vector_store %arg5[%c0_32, %c0_33, %c16, %c0_34], %40 {strides = array<i32>} : memref<2x2x24x16xf32, #tpu.memory_space<vmem>>, vector<2x2x8x16xf32>,
    return
  }
  func.func @transform_0(%arg0: i32) -> (i32, i32, i32, i32) {
    %c0_i32 = arith.constant 0 : i32
    %c0_i32_0 = arith.constant 0 : i32
    %c0_i32_1 = arith.constant 0 : i32
    %c0_i32_2 = arith.constant 0 : i32
    return %arg0, %c0_i32, %c0_i32_0, %c0_i32_1 : i32, i32, i32, i32
  }
  func.func @transform_1(%arg0: i32) -> (i32, i32, i32) {
    %c0_i32 = arith.constant 0 : i32
    %c0_i32_0 = arith.constant 0 : i32
    %c0_i32_1 = arith.constant 0 : i32
    %c0_i32_2 = arith.constant 0 : i32
    return %c0_i32, %c0_i32_0, %c0_i32_1 : i32, i32, i32
  }
  func.func @transform_2(%arg0: i32) -> (i32, i32) {
    %c0_i32 = arith.constant 0 : i32
    %c0_i32_0 = arith.constant 0 : i32
    %c0_i32_1 = arith.constant 0 : i32
    return %c0_i32, %c0_i32_0 : i32, i32
  }
  func.func @transform_3(%arg0: i32) -> (i32, i32) {
    %c0_i32 = arith.constant 0 : i32
    %c0_i32_0 = arith.constant 0 : i32
    %c0_i32_1 = arith.constant 0 : i32
    return %c0_i32, %c0_i32_0 : i32, i32
  }
  func.func @transform_4(%arg0: i32) -> (i32, i32, i32, i32) {
    %c0_i32 = arith.constant 0 : i32
    %c0_i32_0 = arith.constant 0 : i32
    %c0_i32_1 = arith.constant 0 : i32
    %c0_i32_2 = arith.constant 0 : i32
    return %arg0, %c0_i32, %c0_i32_0, %c0_i32_1 : i32, i32, i32, i32
  }
}

module attributes {stable_mosaic.version = 11 : i64} {
  func.func @_graph_kernel(%arg0: i32, %arg1: memref<8x8xf32, #tpu.memory_space<vmem>>, %arg2: memref<8x384xf32, #tpu.memory_space<vmem>>, %arg3: memref<8x384xf32, #tpu.memory_space<vmem>>) attributes {dimension_semantics = [#tpu.dimension_semantics<parallel>], iteration_bounds = array<i64: 2>, scalar_prefetch = 0 : i64, scratch_operands = 0 : i64, tpu.core_type = #tpu.core_type<tc>, window_params = [{pipeline_mode = #tpu.pipeline_mode<synchronous>, transform_indices = @transform_0, window_bounds = array<i64: 8, 8>}, {transform_indices = @transform_1, window_bounds = array<i64: 8, 384>}, {transform_indices = @transform_2, window_bounds = array<i64: 8, 384>}]} {
    %c0 = arith.constant 0 : index
    %c0_0 = arith.constant 0 : index
    %0 = vector.load %arg1[%c0, %c0_0] : memref<8x8xf32, #tpu.memory_space<vmem>>, vector<8x8xf32>
    %1 = arith.truncf %0 : vector<8x8xf32> to vector<8x8xbf16>
    %c0_1 = arith.constant 0 : index
    %c0_2 = arith.constant 0 : index
    %2 = vector.load %arg2[%c0_1, %c0_2] : memref<8x384xf32, #tpu.memory_space<vmem>>, vector<8x384xf32>
    %3 = arith.truncf %2 : vector<8x384xf32> to vector<8x384xbf16>
    %cst = arith.constant dense<0.000000e+00> : vector<8x384xf32>
    %4 = tpu.matmul %1, %3, %cst {dimension_numbers = #tpu.dot_dimension_numbers<[1], [0], [0], [1], [0, 0, 1, 1], [], []>} : vector<8x8xbf16>, vector<8x384xbf16>, vector<8x384xf32> -> vector<8x384xf32>
    %cst_3 = arith.constant 0.000000e+00 : f32
    %5 = vector.broadcast %cst_3 : f32 to vector<8x384xf32>
    %6 = arith.maximumf %4, %5 : vector<8x384xf32>
    %c0_4 = arith.constant 0 : index
    %c0_5 = arith.constant 0 : index
    %7 = vector.load %arg3[%c0_4, %c0_5] : memref<8x384xf32, #tpu.memory_space<vmem>>, vector<8x384xf32>
    tpu.vector_store %arg3[%c0_4, %c0_5], %6 {strides = array<i32>} : memref<8x384xf32, #tpu.memory_space<vmem>>, vector<8x384xf32>,
    return
  }
  func.func @transform_0(%arg0: i32) -> (i32, i32) {
    %c0_i32 = arith.constant 0 : i32
    %c0_i32_0 = arith.constant 0 : i32
    %c0_i32_1 = arith.constant 0 : i32
    return %c0_i32, %c0_i32_0 : i32, i32
  }
  func.func @transform_1(%arg0: i32) -> (i32, i32) {
    %c0_i32 = arith.constant 0 : i32
    %c0_i32_0 = arith.constant 0 : i32
    return %c0_i32, %arg0 : i32, i32
  }
  func.func @transform_2(%arg0: i32) -> (i32, i32) {
    %c0_i32 = arith.constant 0 : i32
    %c0_i32_0 = arith.constant 0 : i32
    return %c0_i32, %arg0 : i32, i32
  }
}

module attributes {stable_mosaic.version = 11 : i64} {
  func.func @_front_kernel(%arg0: i32, %arg1: memref<2x2x24x64xf32, #tpu.memory_space<vmem>>, %arg2: memref<3x64x192xbf16, #tpu.memory_space<vmem>>, %arg3: memref<1x192xf32, #tpu.memory_space<vmem>>, %arg4: memref<64x16xbf16, #tpu.memory_space<vmem>>, %arg5: memref<2x2x24x16xf32, #tpu.memory_space<vmem>>) attributes {dimension_semantics = [#tpu.dimension_semantics<parallel>], iteration_bounds = array<i64: 4>, scalar_prefetch = 0 : i64, scratch_operands = 0 : i64, tpu.core_type = #tpu.core_type<tc>, window_params = [{transform_indices = @transform_0, window_bounds = array<i64: 2, 2, 24, 64>}, {pipeline_mode = #tpu.pipeline_mode<synchronous>, transform_indices = @transform_1, window_bounds = array<i64: 3, 64, 192>}, {pipeline_mode = #tpu.pipeline_mode<synchronous>, transform_indices = @transform_2, window_bounds = array<i64: 1, 192>}, {pipeline_mode = #tpu.pipeline_mode<synchronous>, transform_indices = @transform_3, window_bounds = array<i64: 64, 16>}, {transform_indices = @transform_4, window_bounds = array<i64: 2, 2, 24, 16>}]} {
    %c0 = arith.constant 0 : index
    %c0_0 = arith.constant 0 : index
    %c0_1 = arith.constant 0 : index
    %c0_2 = arith.constant 0 : index
    %0 = vector.load %arg1[%c0, %c0_0, %c0_1, %c0_2] : memref<2x2x24x64xf32, #tpu.memory_space<vmem>>, vector<2x2x16x64xf32>
    %1 = arith.truncf %0 : vector<2x2x16x64xf32> to vector<2x2x16x64xbf16>
    %2 = vector.shape_cast %1 : vector<2x2x16x64xbf16> to vector<64x64xbf16>
    %c0_3 = arith.constant 0 : index
    %c0_4 = arith.constant 0 : index
    %c0_5 = arith.constant 0 : index
    %3 = vector.load %arg2[%c0_3, %c0_4, %c0_5] : memref<3x64x192xbf16, #tpu.memory_space<vmem>>, vector<1x64x192xbf16>
    %4 = vector.shape_cast %3 : vector<1x64x192xbf16> to vector<64x192xbf16>
    %cst = arith.constant dense<0.000000e+00> : vector<64x192xf32>
    %5 = tpu.matmul %2, %4, %cst {dimension_numbers = #tpu.dot_dimension_numbers<[1], [0], [0], [1], [0, 0, 1, 1], [], []>} : vector<64x64xbf16>, vector<64x192xbf16>, vector<64x192xf32> -> vector<64x192xf32>
    %c0_6 = arith.constant 0 : index
    %c0_7 = arith.constant 0 : index
    %c1 = arith.constant 1 : index
    %c0_8 = arith.constant 0 : index
    %6 = vector.load %arg1[%c0_6, %c0_7, %c1, %c0_8] : memref<2x2x24x64xf32, #tpu.memory_space<vmem>>, vector<2x2x16x64xf32>
    %7 = arith.truncf %6 : vector<2x2x16x64xf32> to vector<2x2x16x64xbf16>
    %8 = vector.shape_cast %7 : vector<2x2x16x64xbf16> to vector<64x64xbf16>
    %c1_9 = arith.constant 1 : index
    %c0_10 = arith.constant 0 : index
    %c0_11 = arith.constant 0 : index
    %9 = vector.load %arg2[%c1_9, %c0_10, %c0_11] : memref<3x64x192xbf16, #tpu.memory_space<vmem>>, vector<1x64x192xbf16>
    %10 = vector.shape_cast %9 : vector<1x64x192xbf16> to vector<64x192xbf16>
    %cst_12 = arith.constant dense<0.000000e+00> : vector<64x192xf32>
    %11 = tpu.matmul %8, %10, %cst_12 {dimension_numbers = #tpu.dot_dimension_numbers<[1], [0], [0], [1], [0, 0, 1, 1], [], []>} : vector<64x64xbf16>, vector<64x192xbf16>, vector<64x192xf32> -> vector<64x192xf32>
    %12 = arith.addf %5, %11 : vector<64x192xf32>
    %c0_13 = arith.constant 0 : index
    %c0_14 = arith.constant 0 : index
    %c2 = arith.constant 2 : index
    %c0_15 = arith.constant 0 : index
    %13 = vector.load %arg1[%c0_13, %c0_14, %c2, %c0_15] : memref<2x2x24x64xf32, #tpu.memory_space<vmem>>, vector<2x2x16x64xf32>
    %14 = arith.truncf %13 : vector<2x2x16x64xf32> to vector<2x2x16x64xbf16>
    %15 = vector.shape_cast %14 : vector<2x2x16x64xbf16> to vector<64x64xbf16>
    %c2_16 = arith.constant 2 : index
    %c0_17 = arith.constant 0 : index
    %c0_18 = arith.constant 0 : index
    %16 = vector.load %arg2[%c2_16, %c0_17, %c0_18] : memref<3x64x192xbf16, #tpu.memory_space<vmem>>, vector<1x64x192xbf16>
    %17 = vector.shape_cast %16 : vector<1x64x192xbf16> to vector<64x192xbf16>
    %cst_19 = arith.constant dense<0.000000e+00> : vector<64x192xf32>
    %18 = tpu.matmul %15, %17, %cst_19 {dimension_numbers = #tpu.dot_dimension_numbers<[1], [0], [0], [1], [0, 0, 1, 1], [], []>} : vector<64x64xbf16>, vector<64x192xbf16>, vector<64x192xf32> -> vector<64x192xf32>
    %19 = arith.addf %12, %18 : vector<64x192xf32>
    %c0_20 = arith.constant 0 : index
    %c0_21 = arith.constant 0 : index
    %20 = vector.load %arg3[%c0_20, %c0_21] : memref<1x192xf32, #tpu.memory_space<vmem>>, vector<1x192xf32>
    %21 = vector.broadcast %20 : vector<1x192xf32> to vector<64x192xf32>
    %22 = arith.addf %19, %21 : vector<64x192xf32>
    %23 = vector.extract_strided_slice %22 {offsets = [0, 0], sizes = [64, 64], strides = [1, 1]} : vector<64x192xf32> to vector<64x64xf32>
    %24 = vector.extract_strided_slice %22 {offsets = [0, 64], sizes = [64, 64], strides = [1, 1]} : vector<64x192xf32> to vector<64x64xf32>
    %25 = arith.negf %24 : vector<64x64xf32>
    %26 = math.exp %25 : vector<64x64xf32>
    %cst_22 = arith.constant 1.000000e+00 : f32
    %27 = vector.broadcast %cst_22 : f32 to vector<64x64xf32>
    %28 = arith.addf %27, %26 : vector<64x64xf32>
    %29 = arith.divf %27, %28 : vector<64x64xf32>
    %30 = arith.addf %23, %29 : vector<64x64xf32>
    %31 = vector.extract_strided_slice %22 {offsets = [0, 128], sizes = [64, 64], strides = [1, 1]} : vector<64x192xf32> to vector<64x64xf32>
    %32 = arith.addf %30, %31 : vector<64x64xf32>
    %cst_23 = arith.constant 0.000000e+00 : f32
    %33 = vector.broadcast %cst_23 : f32 to vector<64x64xf32>
    %34 = arith.maximumf %32, %33 : vector<64x64xf32>
    %35 = arith.truncf %34 : vector<64x64xf32> to vector<64x64xbf16>
    %c0_24 = arith.constant 0 : index
    %c0_25 = arith.constant 0 : index
    %36 = vector.load %arg4[%c0_24, %c0_25] : memref<64x16xbf16, #tpu.memory_space<vmem>>, vector<64x16xbf16>
    %cst_26 = arith.constant dense<0.000000e+00> : vector<64x16xf32>
    %37 = tpu.matmul %35, %36, %cst_26 {dimension_numbers = #tpu.dot_dimension_numbers<[1], [0], [0], [1], [0, 0, 1, 1], [], []>} : vector<64x64xbf16>, vector<64x16xbf16>, vector<64x16xf32> -> vector<64x16xf32>
    %38 = vector.shape_cast %37 : vector<64x16xf32> to vector<2x2x16x16xf32>
    %c0_27 = arith.constant 0 : index
    %c0_28 = arith.constant 0 : index
    %c0_29 = arith.constant 0 : index
    %c0_30 = arith.constant 0 : index
    %39 = vector.load %arg5[%c0_27, %c0_28, %c0_29, %c0_30] : memref<2x2x24x16xf32, #tpu.memory_space<vmem>>, vector<2x2x16x16xf32>
    tpu.vector_store %arg5[%c0_27, %c0_28, %c0_29, %c0_30], %38 {strides = array<i32>} : memref<2x2x24x16xf32, #tpu.memory_space<vmem>>, vector<2x2x16x16xf32>,
    %cst_31 = arith.constant 0.000000e+00 : f32
    %40 = vector.broadcast %cst_31 : f32 to vector<2x2x8x16xf32>
    %c0_32 = arith.constant 0 : index
    %c0_33 = arith.constant 0 : index
    %c16 = arith.constant 16 : index
    %c0_34 = arith.constant 0 : index
    %41 = vector.load %arg5[%c0_32, %c0_33, %c16, %c0_34] : memref<2x2x24x16xf32, #tpu.memory_space<vmem>>, vector<2x2x8x16xf32>
    tpu.vector_store %arg5[%c0_32, %c0_33, %c16, %c0_34], %40 {strides = array<i32>} : memref<2x2x24x16xf32, #tpu.memory_space<vmem>>, vector<2x2x8x16xf32>,
    return
  }
  func.func @transform_0(%arg0: i32) -> (i32, i32, i32, i32) {
    %c0_i32 = arith.constant 0 : i32
    %c0_i32_0 = arith.constant 0 : i32
    %c0_i32_1 = arith.constant 0 : i32
    %c0_i32_2 = arith.constant 0 : i32
    return %arg0, %c0_i32, %c0_i32_0, %c0_i32_1 : i32, i32, i32, i32
  }
  func.func @transform_1(%arg0: i32) -> (i32, i32, i32) {
    %c0_i32 = arith.constant 0 : i32
    %c0_i32_0 = arith.constant 0 : i32
    %c0_i32_1 = arith.constant 0 : i32
    %c0_i32_2 = arith.constant 0 : i32
    return %c0_i32, %c0_i32_0, %c0_i32_1 : i32, i32, i32
  }
  func.func @transform_2(%arg0: i32) -> (i32, i32) {
    %c0_i32 = arith.constant 0 : i32
    %c0_i32_0 = arith.constant 0 : i32
    %c0_i32_1 = arith.constant 0 : i32
    return %c0_i32, %c0_i32_0 : i32, i32
  }
  func.func @transform_3(%arg0: i32) -> (i32, i32) {
    %c0_i32 = arith.constant 0 : i32
    %c0_i32_0 = arith.constant 0 : i32
    %c0_i32_1 = arith.constant 0 : i32
    return %c0_i32, %c0_i32_0 : i32, i32
  }
  func.func @transform_4(%arg0: i32) -> (i32, i32, i32, i32) {
    %c0_i32 = arith.constant 0 : i32
    %c0_i32_0 = arith.constant 0 : i32
    %c0_i32_1 = arith.constant 0 : i32
    %c0_i32_2 = arith.constant 0 : i32
    return %arg0, %c0_i32, %c0_i32_0, %c0_i32_1 : i32, i32, i32, i32
  }
}

module attributes {stable_mosaic.version = 11 : i64} {
  func.func @_back_kernel(%arg0: i32, %arg1: memref<2x2x24x16xf32, #tpu.memory_space<vmem>>, %arg2: memref<3x16x192xbf16, #tpu.memory_space<vmem>>, %arg3: memref<1x192xf32, #tpu.memory_space<vmem>>, %arg4: memref<2x1x1x1xf32, #tpu.memory_space<vmem>>, %arg5: memref<2x1x1x1xf32, #tpu.memory_space<vmem>>, %arg6: memref<2x2x24x64xf32, #tpu.memory_space<vmem>>) attributes {dimension_semantics = [#tpu.dimension_semantics<parallel>], iteration_bounds = array<i64: 4>, scalar_prefetch = 0 : i64, scratch_operands = 0 : i64, tpu.core_type = #tpu.core_type<tc>, window_params = [{transform_indices = @transform_0, window_bounds = array<i64: 2, 2, 24, 16>}, {pipeline_mode = #tpu.pipeline_mode<synchronous>, transform_indices = @transform_1, window_bounds = array<i64: 3, 16, 192>}, {pipeline_mode = #tpu.pipeline_mode<synchronous>, transform_indices = @transform_2, window_bounds = array<i64: 1, 192>}, {transform_indices = @transform_3, window_bounds = array<i64: 2, 1, 1, 1>}, {transform_indices = @transform_4, window_bounds = array<i64: 2, 1, 1, 1>}, {transform_indices = @transform_5, window_bounds = array<i64: 2, 2, 24, 64>}]} {
    %c0 = arith.constant 0 : index
    %c0_0 = arith.constant 0 : index
    %c0_1 = arith.constant 0 : index
    %c0_2 = arith.constant 0 : index
    %0 = vector.load %arg1[%c0, %c0_0, %c0_1, %c0_2] : memref<2x2x24x16xf32, #tpu.memory_space<vmem>>, vector<2x2x16x16xf32>
    %1 = arith.truncf %0 : vector<2x2x16x16xf32> to vector<2x2x16x16xbf16>
    %2 = vector.shape_cast %1 : vector<2x2x16x16xbf16> to vector<64x16xbf16>
    %c0_3 = arith.constant 0 : index
    %c0_4 = arith.constant 0 : index
    %c0_5 = arith.constant 0 : index
    %3 = vector.load %arg2[%c0_3, %c0_4, %c0_5] : memref<3x16x192xbf16, #tpu.memory_space<vmem>>, vector<1x16x192xbf16>
    %4 = vector.shape_cast %3 : vector<1x16x192xbf16> to vector<16x192xbf16>
    %cst = arith.constant dense<0.000000e+00> : vector<64x192xf32>
    %5 = tpu.matmul %2, %4, %cst {dimension_numbers = #tpu.dot_dimension_numbers<[1], [0], [0], [1], [0, 0, 1, 1], [], []>} : vector<64x16xbf16>, vector<16x192xbf16>, vector<64x192xf32> -> vector<64x192xf32>
    %c0_6 = arith.constant 0 : index
    %c0_7 = arith.constant 0 : index
    %c1 = arith.constant 1 : index
    %c0_8 = arith.constant 0 : index
    %6 = vector.load %arg1[%c0_6, %c0_7, %c1, %c0_8] : memref<2x2x24x16xf32, #tpu.memory_space<vmem>>, vector<2x2x16x16xf32>
    %7 = arith.truncf %6 : vector<2x2x16x16xf32> to vector<2x2x16x16xbf16>
    %8 = vector.shape_cast %7 : vector<2x2x16x16xbf16> to vector<64x16xbf16>
    %c1_9 = arith.constant 1 : index
    %c0_10 = arith.constant 0 : index
    %c0_11 = arith.constant 0 : index
    %9 = vector.load %arg2[%c1_9, %c0_10, %c0_11] : memref<3x16x192xbf16, #tpu.memory_space<vmem>>, vector<1x16x192xbf16>
    %10 = vector.shape_cast %9 : vector<1x16x192xbf16> to vector<16x192xbf16>
    %cst_12 = arith.constant dense<0.000000e+00> : vector<64x192xf32>
    %11 = tpu.matmul %8, %10, %cst_12 {dimension_numbers = #tpu.dot_dimension_numbers<[1], [0], [0], [1], [0, 0, 1, 1], [], []>} : vector<64x16xbf16>, vector<16x192xbf16>, vector<64x192xf32> -> vector<64x192xf32>
    %12 = arith.addf %5, %11 : vector<64x192xf32>
    %c0_13 = arith.constant 0 : index
    %c0_14 = arith.constant 0 : index
    %c2 = arith.constant 2 : index
    %c0_15 = arith.constant 0 : index
    %13 = vector.load %arg1[%c0_13, %c0_14, %c2, %c0_15] : memref<2x2x24x16xf32, #tpu.memory_space<vmem>>, vector<2x2x16x16xf32>
    %14 = arith.truncf %13 : vector<2x2x16x16xf32> to vector<2x2x16x16xbf16>
    %15 = vector.shape_cast %14 : vector<2x2x16x16xbf16> to vector<64x16xbf16>
    %c2_16 = arith.constant 2 : index
    %c0_17 = arith.constant 0 : index
    %c0_18 = arith.constant 0 : index
    %16 = vector.load %arg2[%c2_16, %c0_17, %c0_18] : memref<3x16x192xbf16, #tpu.memory_space<vmem>>, vector<1x16x192xbf16>
    %17 = vector.shape_cast %16 : vector<1x16x192xbf16> to vector<16x192xbf16>
    %cst_19 = arith.constant dense<0.000000e+00> : vector<64x192xf32>
    %18 = tpu.matmul %15, %17, %cst_19 {dimension_numbers = #tpu.dot_dimension_numbers<[1], [0], [0], [1], [0, 0, 1, 1], [], []>} : vector<64x16xbf16>, vector<16x192xbf16>, vector<64x192xf32> -> vector<64x192xf32>
    %19 = arith.addf %12, %18 : vector<64x192xf32>
    %c0_20 = arith.constant 0 : index
    %c0_21 = arith.constant 0 : index
    %20 = vector.load %arg3[%c0_20, %c0_21] : memref<1x192xf32, #tpu.memory_space<vmem>>, vector<1x192xf32>
    %21 = vector.broadcast %20 : vector<1x192xf32> to vector<64x192xf32>
    %22 = arith.addf %19, %21 : vector<64x192xf32>
    %23 = vector.extract_strided_slice %22 {offsets = [0, 0], sizes = [64, 64], strides = [1, 1]} : vector<64x192xf32> to vector<64x64xf32>
    %24 = vector.extract_strided_slice %22 {offsets = [0, 64], sizes = [64, 64], strides = [1, 1]} : vector<64x192xf32> to vector<64x64xf32>
    %25 = arith.negf %24 : vector<64x64xf32>
    %26 = math.exp %25 : vector<64x64xf32>
    %cst_22 = arith.constant 1.000000e+00 : f32
    %27 = vector.broadcast %cst_22 : f32 to vector<64x64xf32>
    %28 = arith.addf %27, %26 : vector<64x64xf32>
    %29 = arith.divf %27, %28 : vector<64x64xf32>
    %30 = arith.addf %23, %29 : vector<64x64xf32>
    %31 = vector.extract_strided_slice %22 {offsets = [0, 128], sizes = [64, 64], strides = [1, 1]} : vector<64x192xf32> to vector<64x64xf32>
    %32 = arith.addf %30, %31 : vector<64x64xf32>
    %cst_23 = arith.constant 0.000000e+00 : f32
    %33 = vector.broadcast %cst_23 : f32 to vector<64x64xf32>
    %34 = arith.maximumf %32, %33 : vector<64x64xf32>
    %35 = vector.shape_cast %34 : vector<64x64xf32> to vector<2x2x16x64xf32>
    %36 = vector.extract_strided_slice %35 {offsets = [0, 0, 0, 0], sizes = [2, 2, 12, 64], strides = [1, 1, 1, 1]} : vector<2x2x16x64xf32> to vector<2x2x12x64xf32>
    %cst_24 = arith.constant dense<0.000000e+00> : vector<2x2x12xf32>
    %37 = vector.multi_reduction <add>, %36, %cst_24 [3] : vector<2x2x12x64xf32> to vector<2x2x12xf32>
    %38 = vector.shape_cast %37 : vector<2x2x12xf32> to vector<2x2x12x1xf32>
    %cst_25 = arith.constant dense<0.000000e+00> : vector<2x2x1xf32>
    %39 = vector.multi_reduction <add>, %38, %cst_25 [2] : vector<2x2x12x1xf32> to vector<2x2x1xf32>
    %40 = vector.shape_cast %39 : vector<2x2x1xf32> to vector<2x2x1x1xf32>
    %cst_26 = arith.constant dense<0.000000e+00> : vector<2x1x1xf32>
    %41 = vector.multi_reduction <add>, %40, %cst_26 [1] : vector<2x2x1x1xf32> to vector<2x1x1xf32>
    %42 = vector.shape_cast %41 : vector<2x1x1xf32> to vector<2x1x1x1xf32>
    %cst_27 = arith.constant 6.51041686E-4 : f32
    %43 = vector.broadcast %cst_27 : f32 to vector<2x1x1x1xf32>
    %44 = arith.mulf %42, %43 : vector<2x1x1x1xf32>
    %45 = vector.broadcast %44 : vector<2x1x1x1xf32> to vector<2x2x12x64xf32>
    %46 = arith.subf %36, %45 : vector<2x2x12x64xf32>
    %47 = arith.mulf %46, %46 : vector<2x2x12x64xf32>
    %cst_28 = arith.constant dense<0.000000e+00> : vector<2x2x12xf32>
    %48 = vector.multi_reduction <add>, %47, %cst_28 [3] : vector<2x2x12x64xf32> to vector<2x2x12xf32>
    %49 = vector.shape_cast %48 : vector<2x2x12xf32> to vector<2x2x12x1xf32>
    %cst_29 = arith.constant dense<0.000000e+00> : vector<2x2x1xf32>
    %50 = vector.multi_reduction <add>, %49, %cst_29 [2] : vector<2x2x12x1xf32> to vector<2x2x1xf32>
    %51 = vector.shape_cast %50 : vector<2x2x1xf32> to vector<2x2x1x1xf32>
    %cst_30 = arith.constant dense<0.000000e+00> : vector<2x1x1xf32>
    %52 = vector.multi_reduction <add>, %51, %cst_30 [1] : vector<2x2x1x1xf32> to vector<2x1x1xf32>
    %53 = vector.shape_cast %52 : vector<2x1x1xf32> to vector<2x1x1x1xf32>
    %cst_31 = arith.constant 6.51041686E-4 : f32
    %54 = vector.broadcast %cst_31 : f32 to vector<2x1x1x1xf32>
    %55 = arith.mulf %53, %54 : vector<2x1x1x1xf32>
    %cst_32 = arith.constant 9.99999974E-6 : f32
    %56 = vector.broadcast %cst_32 : f32 to vector<2x1x1x1xf32>
    %57 = arith.addf %55, %56 : vector<2x1x1x1xf32>
    %58 = math.rsqrt %57 : vector<2x1x1x1xf32>
    %c0_33 = arith.constant 0 : index
    %c0_34 = arith.constant 0 : index
    %c0_35 = arith.constant 0 : index
    %c0_36 = arith.constant 0 : index
    %59 = vector.load %arg4[%c0_33, %c0_34, %c0_35, %c0_36] : memref<2x1x1x1xf32, #tpu.memory_space<vmem>>, vector<2x1x1x1xf32>
    %60 = arith.mulf %58, %59 : vector<2x1x1x1xf32>
    %c0_37 = arith.constant 0 : index
    %c0_38 = arith.constant 0 : index
    %c0_39 = arith.constant 0 : index
    %c0_40 = arith.constant 0 : index
    %61 = vector.load %arg5[%c0_37, %c0_38, %c0_39, %c0_40] : memref<2x1x1x1xf32, #tpu.memory_space<vmem>>, vector<2x1x1x1xf32>
    %62 = arith.mulf %44, %60 : vector<2x1x1x1xf32>
    %63 = arith.subf %61, %62 : vector<2x1x1x1xf32>
    %64 = vector.broadcast %60 : vector<2x1x1x1xf32> to vector<2x2x16x64xf32>
    %65 = arith.mulf %35, %64 : vector<2x2x16x64xf32>
    %66 = vector.broadcast %63 : vector<2x1x1x1xf32> to vector<2x2x16x64xf32>
    %67 = arith.addf %65, %66 : vector<2x2x16x64xf32>
    %c0_41 = arith.constant 0 : index
    %c0_42 = arith.constant 0 : index
    %c0_43 = arith.constant 0 : index
    %c0_44 = arith.constant 0 : index
    %68 = vector.load %arg6[%c0_41, %c0_42, %c0_43, %c0_44] : memref<2x2x24x64xf32, #tpu.memory_space<vmem>>, vector<2x2x16x64xf32>
    tpu.vector_store %arg6[%c0_41, %c0_42, %c0_43, %c0_44], %67 {strides = array<i32>} : memref<2x2x24x64xf32, #tpu.memory_space<vmem>>, vector<2x2x16x64xf32>,
    %cst_45 = arith.constant 0.000000e+00 : f32
    %69 = vector.broadcast %cst_45 : f32 to vector<2x2x8x64xf32>
    %c0_46 = arith.constant 0 : index
    %c0_47 = arith.constant 0 : index
    %c16 = arith.constant 16 : index
    %c0_48 = arith.constant 0 : index
    %70 = vector.load %arg6[%c0_46, %c0_47, %c16, %c0_48] : memref<2x2x24x64xf32, #tpu.memory_space<vmem>>, vector<2x2x8x64xf32>
    tpu.vector_store %arg6[%c0_46, %c0_47, %c16, %c0_48], %69 {strides = array<i32>} : memref<2x2x24x64xf32, #tpu.memory_space<vmem>>, vector<2x2x8x64xf32>,
    return
  }
  func.func @transform_0(%arg0: i32) -> (i32, i32, i32, i32) {
    %c0_i32 = arith.constant 0 : i32
    %c0_i32_0 = arith.constant 0 : i32
    %c0_i32_1 = arith.constant 0 : i32
    %c0_i32_2 = arith.constant 0 : i32
    return %arg0, %c0_i32, %c0_i32_0, %c0_i32_1 : i32, i32, i32, i32
  }
  func.func @transform_1(%arg0: i32) -> (i32, i32, i32) {
    %c0_i32 = arith.constant 0 : i32
    %c0_i32_0 = arith.constant 0 : i32
    %c0_i32_1 = arith.constant 0 : i32
    %c0_i32_2 = arith.constant 0 : i32
    return %c0_i32, %c0_i32_0, %c0_i32_1 : i32, i32, i32
  }
  func.func @transform_2(%arg0: i32) -> (i32, i32) {
    %c0_i32 = arith.constant 0 : i32
    %c0_i32_0 = arith.constant 0 : i32
    %c0_i32_1 = arith.constant 0 : i32
    return %c0_i32, %c0_i32_0 : i32, i32
  }
  func.func @transform_3(%arg0: i32) -> (i32, i32, i32, i32) {
    %c0_i32 = arith.constant 0 : i32
    %c0_i32_0 = arith.constant 0 : i32
    %c0_i32_1 = arith.constant 0 : i32
    %c0_i32_2 = arith.constant 0 : i32
    return %arg0, %c0_i32, %c0_i32_0, %c0_i32_1 : i32, i32, i32, i32
  }
  func.func @transform_4(%arg0: i32) -> (i32, i32, i32, i32) {
    %c0_i32 = arith.constant 0 : i32
    %c0_i32_0 = arith.constant 0 : i32
    %c0_i32_1 = arith.constant 0 : i32
    %c0_i32_2 = arith.constant 0 : i32
    return %arg0, %c0_i32, %c0_i32_0, %c0_i32_1 : i32, i32, i32, i32
  }
  func.func @transform_5(%arg0: i32) -> (i32, i32, i32, i32) {
    %c0_i32 = arith.constant 0 : i32
    %c0_i32_0 = arith.constant 0 : i32
    %c0_i32_1 = arith.constant 0 : i32
    %c0_i32_2 = arith.constant 0 : i32
    return %arg0, %c0_i32, %c0_i32_0, %c0_i32_1 : i32, i32, i32, i32
  }
}

module attributes {stable_mosaic.version = 11 : i64} {
  func.func @_back_kernel(%arg0: i32, %arg1: memref<2x2x24x16xf32, #tpu.memory_space<vmem>>, %arg2: memref<3x16x192xbf16, #tpu.memory_space<vmem>>, %arg3: memref<1x192xf32, #tpu.memory_space<vmem>>, %arg4: memref<2x1x1x1xf32, #tpu.memory_space<vmem>>, %arg5: memref<2x1x1x1xf32, #tpu.memory_space<vmem>>, %arg6: memref<2x2x24x64xf32, #tpu.memory_space<vmem>>) attributes {dimension_semantics = [#tpu.dimension_semantics<parallel>], iteration_bounds = array<i64: 4>, scalar_prefetch = 0 : i64, scratch_operands = 0 : i64, tpu.core_type = #tpu.core_type<tc>, window_params = [{transform_indices = @transform_0, window_bounds = array<i64: 2, 2, 24, 16>}, {pipeline_mode = #tpu.pipeline_mode<synchronous>, transform_indices = @transform_1, window_bounds = array<i64: 3, 16, 192>}, {pipeline_mode = #tpu.pipeline_mode<synchronous>, transform_indices = @transform_2, window_bounds = array<i64: 1, 192>}, {transform_indices = @transform_3, window_bounds = array<i64: 2, 1, 1, 1>}, {transform_indices = @transform_4, window_bounds = array<i64: 2, 1, 1, 1>}, {transform_indices = @transform_5, window_bounds = array<i64: 2, 2, 24, 64>}]} {
    %c0 = arith.constant 0 : index
    %c0_0 = arith.constant 0 : index
    %c0_1 = arith.constant 0 : index
    %c0_2 = arith.constant 0 : index
    %0 = vector.load %arg1[%c0, %c0_0, %c0_1, %c0_2] : memref<2x2x24x16xf32, #tpu.memory_space<vmem>>, vector<2x2x16x16xf32>
    %1 = arith.truncf %0 : vector<2x2x16x16xf32> to vector<2x2x16x16xbf16>
    %2 = vector.shape_cast %1 : vector<2x2x16x16xbf16> to vector<64x16xbf16>
    %c0_3 = arith.constant 0 : index
    %c0_4 = arith.constant 0 : index
    %c0_5 = arith.constant 0 : index
    %3 = vector.load %arg2[%c0_3, %c0_4, %c0_5] : memref<3x16x192xbf16, #tpu.memory_space<vmem>>, vector<1x16x192xbf16>
    %4 = vector.shape_cast %3 : vector<1x16x192xbf16> to vector<16x192xbf16>
    %cst = arith.constant dense<0.000000e+00> : vector<64x192xf32>
    %5 = tpu.matmul %2, %4, %cst {dimension_numbers = #tpu.dot_dimension_numbers<[1], [0], [0], [1], [0, 0, 1, 1], [], []>} : vector<64x16xbf16>, vector<16x192xbf16>, vector<64x192xf32> -> vector<64x192xf32>
    %c0_6 = arith.constant 0 : index
    %c0_7 = arith.constant 0 : index
    %c1 = arith.constant 1 : index
    %c0_8 = arith.constant 0 : index
    %6 = vector.load %arg1[%c0_6, %c0_7, %c1, %c0_8] : memref<2x2x24x16xf32, #tpu.memory_space<vmem>>, vector<2x2x16x16xf32>
    %7 = arith.truncf %6 : vector<2x2x16x16xf32> to vector<2x2x16x16xbf16>
    %8 = vector.shape_cast %7 : vector<2x2x16x16xbf16> to vector<64x16xbf16>
    %c1_9 = arith.constant 1 : index
    %c0_10 = arith.constant 0 : index
    %c0_11 = arith.constant 0 : index
    %9 = vector.load %arg2[%c1_9, %c0_10, %c0_11] : memref<3x16x192xbf16, #tpu.memory_space<vmem>>, vector<1x16x192xbf16>
    %10 = vector.shape_cast %9 : vector<1x16x192xbf16> to vector<16x192xbf16>
    %cst_12 = arith.constant dense<0.000000e+00> : vector<64x192xf32>
    %11 = tpu.matmul %8, %10, %cst_12 {dimension_numbers = #tpu.dot_dimension_numbers<[1], [0], [0], [1], [0, 0, 1, 1], [], []>} : vector<64x16xbf16>, vector<16x192xbf16>, vector<64x192xf32> -> vector<64x192xf32>
    %12 = arith.addf %5, %11 : vector<64x192xf32>
    %c0_13 = arith.constant 0 : index
    %c0_14 = arith.constant 0 : index
    %c2 = arith.constant 2 : index
    %c0_15 = arith.constant 0 : index
    %13 = vector.load %arg1[%c0_13, %c0_14, %c2, %c0_15] : memref<2x2x24x16xf32, #tpu.memory_space<vmem>>, vector<2x2x16x16xf32>
    %14 = arith.truncf %13 : vector<2x2x16x16xf32> to vector<2x2x16x16xbf16>
    %15 = vector.shape_cast %14 : vector<2x2x16x16xbf16> to vector<64x16xbf16>
    %c2_16 = arith.constant 2 : index
    %c0_17 = arith.constant 0 : index
    %c0_18 = arith.constant 0 : index
    %16 = vector.load %arg2[%c2_16, %c0_17, %c0_18] : memref<3x16x192xbf16, #tpu.memory_space<vmem>>, vector<1x16x192xbf16>
    %17 = vector.shape_cast %16 : vector<1x16x192xbf16> to vector<16x192xbf16>
    %cst_19 = arith.constant dense<0.000000e+00> : vector<64x192xf32>
    %18 = tpu.matmul %15, %17, %cst_19 {dimension_numbers = #tpu.dot_dimension_numbers<[1], [0], [0], [1], [0, 0, 1, 1], [], []>} : vector<64x16xbf16>, vector<16x192xbf16>, vector<64x192xf32> -> vector<64x192xf32>
    %19 = arith.addf %12, %18 : vector<64x192xf32>
    %c0_20 = arith.constant 0 : index
    %c0_21 = arith.constant 0 : index
    %20 = vector.load %arg3[%c0_20, %c0_21] : memref<1x192xf32, #tpu.memory_space<vmem>>, vector<1x192xf32>
    %21 = vector.broadcast %20 : vector<1x192xf32> to vector<64x192xf32>
    %22 = arith.addf %19, %21 : vector<64x192xf32>
    %23 = vector.extract_strided_slice %22 {offsets = [0, 0], sizes = [64, 64], strides = [1, 1]} : vector<64x192xf32> to vector<64x64xf32>
    %24 = vector.extract_strided_slice %22 {offsets = [0, 64], sizes = [64, 64], strides = [1, 1]} : vector<64x192xf32> to vector<64x64xf32>
    %25 = arith.negf %24 : vector<64x64xf32>
    %26 = math.exp %25 : vector<64x64xf32>
    %cst_22 = arith.constant 1.000000e+00 : f32
    %27 = vector.broadcast %cst_22 : f32 to vector<64x64xf32>
    %28 = arith.addf %27, %26 : vector<64x64xf32>
    %29 = arith.divf %27, %28 : vector<64x64xf32>
    %30 = arith.addf %23, %29 : vector<64x64xf32>
    %31 = vector.extract_strided_slice %22 {offsets = [0, 128], sizes = [64, 64], strides = [1, 1]} : vector<64x192xf32> to vector<64x64xf32>
    %32 = arith.addf %30, %31 : vector<64x64xf32>
    %cst_23 = arith.constant 0.000000e+00 : f32
    %33 = vector.broadcast %cst_23 : f32 to vector<64x64xf32>
    %34 = arith.maximumf %32, %33 : vector<64x64xf32>
    %35 = vector.shape_cast %34 : vector<64x64xf32> to vector<2x2x16x64xf32>
    %36 = vector.extract_strided_slice %35 {offsets = [0, 0, 0, 0], sizes = [2, 2, 8, 64], strides = [1, 1, 1, 1]} : vector<2x2x16x64xf32> to vector<2x2x8x64xf32>
    %cst_24 = arith.constant dense<0.000000e+00> : vector<2x2x8xf32>
    %37 = vector.multi_reduction <add>, %36, %cst_24 [3] : vector<2x2x8x64xf32> to vector<2x2x8xf32>
    %38 = vector.shape_cast %37 : vector<2x2x8xf32> to vector<2x2x8x1xf32>
    %cst_25 = arith.constant dense<0.000000e+00> : vector<2x2x1xf32>
    %39 = vector.multi_reduction <add>, %38, %cst_25 [2] : vector<2x2x8x1xf32> to vector<2x2x1xf32>
    %40 = vector.shape_cast %39 : vector<2x2x1xf32> to vector<2x2x1x1xf32>
    %cst_26 = arith.constant dense<0.000000e+00> : vector<2x1x1xf32>
    %41 = vector.multi_reduction <add>, %40, %cst_26 [1] : vector<2x2x1x1xf32> to vector<2x1x1xf32>
    %42 = vector.shape_cast %41 : vector<2x1x1xf32> to vector<2x1x1x1xf32>
    %cst_27 = arith.constant 9.765625E-4 : f32
    %43 = vector.broadcast %cst_27 : f32 to vector<2x1x1x1xf32>
    %44 = arith.mulf %42, %43 : vector<2x1x1x1xf32>
    %45 = vector.broadcast %44 : vector<2x1x1x1xf32> to vector<2x2x8x64xf32>
    %46 = arith.subf %36, %45 : vector<2x2x8x64xf32>
    %47 = arith.mulf %46, %46 : vector<2x2x8x64xf32>
    %cst_28 = arith.constant dense<0.000000e+00> : vector<2x2x8xf32>
    %48 = vector.multi_reduction <add>, %47, %cst_28 [3] : vector<2x2x8x64xf32> to vector<2x2x8xf32>
    %49 = vector.shape_cast %48 : vector<2x2x8xf32> to vector<2x2x8x1xf32>
    %cst_29 = arith.constant dense<0.000000e+00> : vector<2x2x1xf32>
    %50 = vector.multi_reduction <add>, %49, %cst_29 [2] : vector<2x2x8x1xf32> to vector<2x2x1xf32>
    %51 = vector.shape_cast %50 : vector<2x2x1xf32> to vector<2x2x1x1xf32>
    %cst_30 = arith.constant dense<0.000000e+00> : vector<2x1x1xf32>
    %52 = vector.multi_reduction <add>, %51, %cst_30 [1] : vector<2x2x1x1xf32> to vector<2x1x1xf32>
    %53 = vector.shape_cast %52 : vector<2x1x1xf32> to vector<2x1x1x1xf32>
    %cst_31 = arith.constant 9.765625E-4 : f32
    %54 = vector.broadcast %cst_31 : f32 to vector<2x1x1x1xf32>
    %55 = arith.mulf %53, %54 : vector<2x1x1x1xf32>
    %cst_32 = arith.constant 9.99999974E-6 : f32
    %56 = vector.broadcast %cst_32 : f32 to vector<2x1x1x1xf32>
    %57 = arith.addf %55, %56 : vector<2x1x1x1xf32>
    %58 = math.rsqrt %57 : vector<2x1x1x1xf32>
    %c0_33 = arith.constant 0 : index
    %c0_34 = arith.constant 0 : index
    %c0_35 = arith.constant 0 : index
    %c0_36 = arith.constant 0 : index
    %59 = vector.load %arg4[%c0_33, %c0_34, %c0_35, %c0_36] : memref<2x1x1x1xf32, #tpu.memory_space<vmem>>, vector<2x1x1x1xf32>
    %60 = arith.mulf %58, %59 : vector<2x1x1x1xf32>
    %c0_37 = arith.constant 0 : index
    %c0_38 = arith.constant 0 : index
    %c0_39 = arith.constant 0 : index
    %c0_40 = arith.constant 0 : index
    %61 = vector.load %arg5[%c0_37, %c0_38, %c0_39, %c0_40] : memref<2x1x1x1xf32, #tpu.memory_space<vmem>>, vector<2x1x1x1xf32>
    %62 = arith.mulf %44, %60 : vector<2x1x1x1xf32>
    %63 = arith.subf %61, %62 : vector<2x1x1x1xf32>
    %64 = vector.broadcast %60 : vector<2x1x1x1xf32> to vector<2x2x16x64xf32>
    %65 = arith.mulf %35, %64 : vector<2x2x16x64xf32>
    %66 = vector.broadcast %63 : vector<2x1x1x1xf32> to vector<2x2x16x64xf32>
    %67 = arith.addf %65, %66 : vector<2x2x16x64xf32>
    %c0_41 = arith.constant 0 : index
    %c0_42 = arith.constant 0 : index
    %c0_43 = arith.constant 0 : index
    %c0_44 = arith.constant 0 : index
    %68 = vector.load %arg6[%c0_41, %c0_42, %c0_43, %c0_44] : memref<2x2x24x64xf32, #tpu.memory_space<vmem>>, vector<2x2x16x64xf32>
    tpu.vector_store %arg6[%c0_41, %c0_42, %c0_43, %c0_44], %67 {strides = array<i32>} : memref<2x2x24x64xf32, #tpu.memory_space<vmem>>, vector<2x2x16x64xf32>,
    %cst_45 = arith.constant 0.000000e+00 : f32
    %69 = vector.broadcast %cst_45 : f32 to vector<2x2x8x64xf32>
    %c0_46 = arith.constant 0 : index
    %c0_47 = arith.constant 0 : index
    %c16 = arith.constant 16 : index
    %c0_48 = arith.constant 0 : index
    %70 = vector.load %arg6[%c0_46, %c0_47, %c16, %c0_48] : memref<2x2x24x64xf32, #tpu.memory_space<vmem>>, vector<2x2x8x64xf32>
    tpu.vector_store %arg6[%c0_46, %c0_47, %c16, %c0_48], %69 {strides = array<i32>} : memref<2x2x24x64xf32, #tpu.memory_space<vmem>>, vector<2x2x8x64xf32>,
    return
  }
  func.func @transform_0(%arg0: i32) -> (i32, i32, i32, i32) {
    %c0_i32 = arith.constant 0 : i32
    %c0_i32_0 = arith.constant 0 : i32
    %c0_i32_1 = arith.constant 0 : i32
    %c0_i32_2 = arith.constant 0 : i32
    return %arg0, %c0_i32, %c0_i32_0, %c0_i32_1 : i32, i32, i32, i32
  }
  func.func @transform_1(%arg0: i32) -> (i32, i32, i32) {
    %c0_i32 = arith.constant 0 : i32
    %c0_i32_0 = arith.constant 0 : i32
    %c0_i32_1 = arith.constant 0 : i32
    %c0_i32_2 = arith.constant 0 : i32
    return %c0_i32, %c0_i32_0, %c0_i32_1 : i32, i32, i32
  }
  func.func @transform_2(%arg0: i32) -> (i32, i32) {
    %c0_i32 = arith.constant 0 : i32
    %c0_i32_0 = arith.constant 0 : i32
    %c0_i32_1 = arith.constant 0 : i32
    return %c0_i32, %c0_i32_0 : i32, i32
  }
  func.func @transform_3(%arg0: i32) -> (i32, i32, i32, i32) {
    %c0_i32 = arith.constant 0 : i32
    %c0_i32_0 = arith.constant 0 : i32
    %c0_i32_1 = arith.constant 0 : i32
    %c0_i32_2 = arith.constant 0 : i32
    return %arg0, %c0_i32, %c0_i32_0, %c0_i32_1 : i32, i32, i32, i32
  }
  func.func @transform_4(%arg0: i32) -> (i32, i32, i32, i32) {
    %c0_i32 = arith.constant 0 : i32
    %c0_i32_0 = arith.constant 0 : i32
    %c0_i32_1 = arith.constant 0 : i32
    %c0_i32_2 = arith.constant 0 : i32
    return %arg0, %c0_i32, %c0_i32_0, %c0_i32_1 : i32, i32, i32, i32
  }
  func.func @transform_5(%arg0: i32) -> (i32, i32, i32, i32) {
    %c0_i32 = arith.constant 0 : i32
    %c0_i32_0 = arith.constant 0 : i32
    %c0_i32_1 = arith.constant 0 : i32
    %c0_i32_2 = arith.constant 0 : i32
    return %arg0, %c0_i32, %c0_i32_0, %c0_i32_1 : i32, i32, i32, i32
  }
}

module attributes {stable_mosaic.version = 11 : i64} {
  func.func @_timeblock_kernel(%arg0: i32, %arg1: memref<2x2x24x64xf32, #tpu.memory_space<vmem>>, %arg2: memref<3x64x192xbf16, #tpu.memory_space<vmem>>, %arg3: memref<1x192xf32, #tpu.memory_space<vmem>>, %arg4: memref<2x2x24x64xf32, #tpu.memory_space<vmem>>) attributes {dimension_semantics = [#tpu.dimension_semantics<parallel>], iteration_bounds = array<i64: 4>, scalar_prefetch = 0 : i64, scratch_operands = 0 : i64, tpu.core_type = #tpu.core_type<tc>, window_params = [{transform_indices = @transform_0, window_bounds = array<i64: 2, 2, 24, 64>}, {pipeline_mode = #tpu.pipeline_mode<synchronous>, transform_indices = @transform_1, window_bounds = array<i64: 3, 64, 192>}, {pipeline_mode = #tpu.pipeline_mode<synchronous>, transform_indices = @transform_2, window_bounds = array<i64: 1, 192>}, {transform_indices = @transform_3, window_bounds = array<i64: 2, 2, 24, 64>}]} {
    %c0 = arith.constant 0 : index
    %c0_0 = arith.constant 0 : index
    %c0_1 = arith.constant 0 : index
    %c0_2 = arith.constant 0 : index
    %0 = vector.load %arg1[%c0, %c0_0, %c0_1, %c0_2] : memref<2x2x24x64xf32, #tpu.memory_space<vmem>>, vector<2x2x16x64xf32>
    %1 = arith.truncf %0 : vector<2x2x16x64xf32> to vector<2x2x16x64xbf16>
    %2 = vector.shape_cast %1 : vector<2x2x16x64xbf16> to vector<64x64xbf16>
    %c0_3 = arith.constant 0 : index
    %c0_4 = arith.constant 0 : index
    %c0_5 = arith.constant 0 : index
    %3 = vector.load %arg2[%c0_3, %c0_4, %c0_5] : memref<3x64x192xbf16, #tpu.memory_space<vmem>>, vector<1x64x192xbf16>
    %4 = vector.shape_cast %3 : vector<1x64x192xbf16> to vector<64x192xbf16>
    %cst = arith.constant dense<0.000000e+00> : vector<64x192xf32>
    %5 = tpu.matmul %2, %4, %cst {dimension_numbers = #tpu.dot_dimension_numbers<[1], [0], [0], [1], [0, 0, 1, 1], [], []>} : vector<64x64xbf16>, vector<64x192xbf16>, vector<64x192xf32> -> vector<64x192xf32>
    %c0_6 = arith.constant 0 : index
    %c0_7 = arith.constant 0 : index
    %c1 = arith.constant 1 : index
    %c0_8 = arith.constant 0 : index
    %6 = vector.load %arg1[%c0_6, %c0_7, %c1, %c0_8] : memref<2x2x24x64xf32, #tpu.memory_space<vmem>>, vector<2x2x16x64xf32>
    %7 = arith.truncf %6 : vector<2x2x16x64xf32> to vector<2x2x16x64xbf16>
    %8 = vector.shape_cast %7 : vector<2x2x16x64xbf16> to vector<64x64xbf16>
    %c1_9 = arith.constant 1 : index
    %c0_10 = arith.constant 0 : index
    %c0_11 = arith.constant 0 : index
    %9 = vector.load %arg2[%c1_9, %c0_10, %c0_11] : memref<3x64x192xbf16, #tpu.memory_space<vmem>>, vector<1x64x192xbf16>
    %10 = vector.shape_cast %9 : vector<1x64x192xbf16> to vector<64x192xbf16>
    %cst_12 = arith.constant dense<0.000000e+00> : vector<64x192xf32>
    %11 = tpu.matmul %8, %10, %cst_12 {dimension_numbers = #tpu.dot_dimension_numbers<[1], [0], [0], [1], [0, 0, 1, 1], [], []>} : vector<64x64xbf16>, vector<64x192xbf16>, vector<64x192xf32> -> vector<64x192xf32>
    %12 = arith.addf %5, %11 : vector<64x192xf32>
    %c0_13 = arith.constant 0 : index
    %c0_14 = arith.constant 0 : index
    %c2 = arith.constant 2 : index
    %c0_15 = arith.constant 0 : index
    %13 = vector.load %arg1[%c0_13, %c0_14, %c2, %c0_15] : memref<2x2x24x64xf32, #tpu.memory_space<vmem>>, vector<2x2x16x64xf32>
    %14 = arith.truncf %13 : vector<2x2x16x64xf32> to vector<2x2x16x64xbf16>
    %15 = vector.shape_cast %14 : vector<2x2x16x64xbf16> to vector<64x64xbf16>
    %c2_16 = arith.constant 2 : index
    %c0_17 = arith.constant 0 : index
    %c0_18 = arith.constant 0 : index
    %16 = vector.load %arg2[%c2_16, %c0_17, %c0_18] : memref<3x64x192xbf16, #tpu.memory_space<vmem>>, vector<1x64x192xbf16>
    %17 = vector.shape_cast %16 : vector<1x64x192xbf16> to vector<64x192xbf16>
    %cst_19 = arith.constant dense<0.000000e+00> : vector<64x192xf32>
    %18 = tpu.matmul %15, %17, %cst_19 {dimension_numbers = #tpu.dot_dimension_numbers<[1], [0], [0], [1], [0, 0, 1, 1], [], []>} : vector<64x64xbf16>, vector<64x192xbf16>, vector<64x192xf32> -> vector<64x192xf32>
    %19 = arith.addf %12, %18 : vector<64x192xf32>
    %c0_20 = arith.constant 0 : index
    %c0_21 = arith.constant 0 : index
    %20 = vector.load %arg3[%c0_20, %c0_21] : memref<1x192xf32, #tpu.memory_space<vmem>>, vector<1x192xf32>
    %21 = vector.broadcast %20 : vector<1x192xf32> to vector<64x192xf32>
    %22 = arith.addf %19, %21 : vector<64x192xf32>
    %23 = vector.extract_strided_slice %22 {offsets = [0, 0], sizes = [64, 64], strides = [1, 1]} : vector<64x192xf32> to vector<64x64xf32>
    %24 = vector.extract_strided_slice %22 {offsets = [0, 64], sizes = [64, 64], strides = [1, 1]} : vector<64x192xf32> to vector<64x64xf32>
    %25 = arith.negf %24 : vector<64x64xf32>
    %26 = math.exp %25 : vector<64x64xf32>
    %cst_22 = arith.constant 1.000000e+00 : f32
    %27 = vector.broadcast %cst_22 : f32 to vector<64x64xf32>
    %28 = arith.addf %27, %26 : vector<64x64xf32>
    %29 = arith.divf %27, %28 : vector<64x64xf32>
    %30 = arith.addf %23, %29 : vector<64x64xf32>
    %31 = vector.extract_strided_slice %22 {offsets = [0, 128], sizes = [64, 64], strides = [1, 1]} : vector<64x192xf32> to vector<64x64xf32>
    %32 = arith.addf %30, %31 : vector<64x64xf32>
    %cst_23 = arith.constant 0.000000e+00 : f32
    %33 = vector.broadcast %cst_23 : f32 to vector<64x64xf32>
    %34 = arith.maximumf %32, %33 : vector<64x64xf32>
    %35 = vector.shape_cast %34 : vector<64x64xf32> to vector<2x2x16x64xf32>
    %c0_24 = arith.constant 0 : index
    %c0_25 = arith.constant 0 : index
    %c0_26 = arith.constant 0 : index
    %c0_27 = arith.constant 0 : index
    %36 = vector.load %arg4[%c0_24, %c0_25, %c0_26, %c0_27] : memref<2x2x24x64xf32, #tpu.memory_space<vmem>>, vector<2x2x16x64xf32>
    tpu.vector_store %arg4[%c0_24, %c0_25, %c0_26, %c0_27], %35 {strides = array<i32>} : memref<2x2x24x64xf32, #tpu.memory_space<vmem>>, vector<2x2x16x64xf32>,
    %cst_28 = arith.constant 0.000000e+00 : f32
    %37 = vector.broadcast %cst_28 : f32 to vector<2x2x8x64xf32>
    %c0_29 = arith.constant 0 : index
    %c0_30 = arith.constant 0 : index
    %c16 = arith.constant 16 : index
    %c0_31 = arith.constant 0 : index
    %38 = vector.load %arg4[%c0_29, %c0_30, %c16, %c0_31] : memref<2x2x24x64xf32, #tpu.memory_space<vmem>>, vector<2x2x8x64xf32>
    tpu.vector_store %arg4[%c0_29, %c0_30, %c16, %c0_31], %37 {strides = array<i32>} : memref<2x2x24x64xf32, #tpu.memory_space<vmem>>, vector<2x2x8x64xf32>,
    return
  }
  func.func @transform_0(%arg0: i32) -> (i32, i32, i32, i32) {
    %c0_i32 = arith.constant 0 : i32
    %c0_i32_0 = arith.constant 0 : i32
    %c0_i32_1 = arith.constant 0 : i32
    %c0_i32_2 = arith.constant 0 : i32
    return %arg0, %c0_i32, %c0_i32_0, %c0_i32_1 : i32, i32, i32, i32
  }
  func.func @transform_1(%arg0: i32) -> (i32, i32, i32) {
    %c0_i32 = arith.constant 0 : i32
    %c0_i32_0 = arith.constant 0 : i32
    %c0_i32_1 = arith.constant 0 : i32
    %c0_i32_2 = arith.constant 0 : i32
    return %c0_i32, %c0_i32_0, %c0_i32_1 : i32, i32, i32
  }
  func.func @transform_2(%arg0: i32) -> (i32, i32) {
    %c0_i32 = arith.constant 0 : i32
    %c0_i32_0 = arith.constant 0 : i32
    %c0_i32_1 = arith.constant 0 : i32
    return %c0_i32, %c0_i32_0 : i32, i32
  }
  func.func @transform_3(%arg0: i32) -> (i32, i32, i32, i32) {
    %c0_i32 = arith.constant 0 : i32
    %c0_i32_0 = arith.constant 0 : i32
    %c0_i32_1 = arith.constant 0 : i32
    %c0_i32_2 = arith.constant 0 : i32
    return %arg0, %c0_i32, %c0_i32_0, %c0_i32_1 : i32, i32, i32, i32
  }
}

</mosaic_0001>

<llo_original>
// kernel: stgcn_forward.8
$region0: #{stgcn_forward.8}
  #allocation0 [shape = 'u32[]', space=smem, size = 0x4, offset = 0x4, fixed_abs, tag = 'smem constant byte address 0x4 - core index']
  #allocation1 [shape = 'u32[144,128]{1,0:T(1,128)}', space=vmem, size = 0x12000, scoped, tag = 'internal scratch']
  %s0 = inlined_call_operand.vmem [shape: f32[8,8], index: 0, kind: input, shape index: {}]
  %s1 = inlined_call_operand.vmem [shape: f32[8,768], index: 1, kind: input, shape index: {}]
  %s2 = inlined_call_operand.vmem [shape: f32[8,768], index: 2, kind: output, shape index: {}]
  %s3 = sld [smem:[#allocation0]]
  $region41: #{stgcn_forward.8} parent=0
    _
  %s5 = ssub.s32 1, %s3
  %s6 = scalar_select 0, %s5, %s3
  loop: start=0, step=1, limit=4
  $region2: #{stgcn_forward.8} parent=0 // loop_pre_header
    _
  $region3: #{stgcn_forward.8} parent=0 // loop_header
    %s8 = sphi 0, %s12
    %p9 = scmp.ge.s32.totalorder %s8, 4
    %s16 = sphi 0, %s16
    %s18 = sphi 0, %s16
    %s19 = sphi 0, %s18
    %s33 = sphi 0, %s19
    %s39 = sphi 0, %s41
    %s42 = sphi 0, %s39
    %s43 = sphi 0, %s42
    %s59 = sphi 0, %s43
    %s65 = sphi 0, %s67
    %s68 = sphi 0, %s65
    %s69 = sphi 0, %s68
    %s85 = sphi 0, %s69
  $region4: #{stgcn_forward.8} parent=0 // loop_header_branch
    %11 = sbr.rel (%p9) target = $region8
  $region5: #{stgcn_forward.8} parent=0 // loop_body
    %s13 = ssub.s32 %s8, 1
    %s14 = ssub.s32 %s8, 2
    %s15 = sadd.s32 %s8, 1
    %s17 = sadd.s32 %s16, 1
    %p20 = scmp.eq.s32.totalorder %s8, 1
    %p21 = scmp.ne.s32.totalorder %s16, %s18
    %p22 = scmp.eq.s32.totalorder %s8, 0
    %p23 = por %p21, %p22
    %p24 = scmp.ne.s32.totalorder %s16, %s18
    %p25 = scmp.eq.s32.totalorder %s13, 1
    %p26 = por %p24, %p25
    %p27 = scmp.ne.s32.totalorder %s18, %s19
    %p28 = scmp.eq.s32.totalorder %s13, 0
    %p29 = por %p27, %p28
    %p30 = scmp.ne.s32.totalorder %s18, %s19
    %p31 = scmp.eq.s32.totalorder %s14, 1
    %p32 = por %p30, %p31
    %p34 = scmp.ne.s32.totalorder %s19, %s33
    %p35 = scmp.eq.s32.totalorder %s14, 0
    %p36 = por %p34, %p35
    %s37 = ssub.s32 %s8, %s15
    %p38 = scmp.eq.s32.totalorder %s37, 0
    %s40 = sadd.s32 %s39, 1
    %s41 = scalar_select %p38, %s39, %s40
    %p44 = pneg %p38
    %p45 = scmp.eq.s32.totalorder %s8, 1
    %p46 = por %p44, %p45
    %p47 = scmp.ne.s32.totalorder %s39, %s42
    %p48 = scmp.eq.s32.totalorder %s8, 0
    %p49 = por %p47, %p48
    %p50 = scmp.ne.s32.totalorder %s39, %s42
    %p51 = scmp.eq.s32.totalorder %s13, 1
    %p52 = por %p50, %p51
    %p53 = scmp.ne.s32.totalorder %s42, %s43
    %p54 = scmp.eq.s32.totalorder %s13, 0
    %p55 = por %p53, %p54
    %p56 = scmp.ne.s32.totalorder %s42, %s43
    %p57 = scmp.eq.s32.totalorder %s14, 1
    %p58 = por %p56, %p57
    %p60 = scmp.ne.s32.totalorder %s43, %s59
    %p61 = scmp.eq.s32.totalorder %s14, 0
    %p62 = por %p60, %p61
    %s63 = ssub.s32 %s8, %s15
    %p64 = scmp.eq.s32.totalorder %s63, 0
    %s66 = sadd.s32 %s65, 1
    %s67 = scalar_select %p64, %s65, %s66
    %p70 = pneg %p64
    %p71 = scmp.eq.s32.totalorder %s8, 1
    %p72 = por %p70, %p71
    %p73 = scmp.ne.s32.totalorder %s65, %s68
    %p74 = scmp.eq.s32.totalorder %s8, 0
    %p75 = por %p73, %p74
    %p76 = scmp.ne.s32.totalorder %s65, %s68
    %p77 = scmp.eq.s32.totalorder %s13, 1
    %p78 = por %p76, %p77
    %p79 = scmp.ne.s32.totalorder %s68, %s69
    %p80 = scmp.eq.s32.totalorder %s13, 0
    %p81 = por %p79, %p80
    %p82 = scmp.ne.s32.totalorder %s68, %s69
    %p83 = scmp.eq.s32.totalorder %s14, 1
    %p84 = por %p82, %p83
    %p86 = scmp.ne.s32.totalorder %s69, %s85
    %p87 = scmp.eq.s32.totalorder %s14, 0
    %p88 = por %p86, %p87
    %p89 = scmp.le.s32.totalorder 1, %s8
    %p90 = scmp.lt.s32.totalorder %s8, 3
    %p91 = pnand %p89, %p90
    %p92 = pneg %p91
    // Predicated region
    $region9: #{stgcn_forward.8} parent=5 // pred_check
      _
    $region10: #{stgcn_forward.8} parent=5 // pred_check_branch
      %94 = sbr.rel (%p91) target = $region12
    $region11: #{stgcn_forward.8} parent=5 // pred_region
      %s95 = ssub.s32 %s8, 1
      // Predicated region
      $region13: #{stgcn_forward.8} parent=11 // pred_check
        %p96 = pneg %p29
      $region14: #{stgcn_forward.8} parent=11 // pred_check_branch
        %98 = sbr.rel (%p96) target = $region16
      $region15: #{stgcn_forward.8} parent=11 // pred_region
        _
      $region16: #{stgcn_forward.8} parent=11 // pred_fallthru
        _
    $region12: #{stgcn_forward.8} parent=5 // pred_fallthru
      _
    %p99 = scmp.lt.s32.totalorder %s8, 2
    // Predicated region
    $region17: #{stgcn_forward.8} parent=5 // pred_check
      %p100 = pneg %p99
    $region18: #{stgcn_forward.8} parent=5 // pred_check_branch
      %102 = sbr.rel (%p100) target = $region20
    $region19: #{stgcn_forward.8} parent=5 // pred_region
      // Predicated region
      $region21: #{stgcn_forward.8} parent=19 // pred_check
        %p103 = pneg %p49
      $region22: #{stgcn_forward.8} parent=19 // pred_check_branch
        %105 = sbr.rel (%p103) target = $region24
      $region23: #{stgcn_forward.8} parent=19 // pred_region
        %s106 = smul.u32 3, %s8
        %p107 = scmp.lt.s32.totalorder %s106, 5
        %s108 = scalar_select %p107, %s106, 5
        %s109 = smul.addr %s108, 8
        %s110 = scalar_lea.vmem %s1, %s109
        %s111 = smul.u32 3, %s8
      $region24: #{stgcn_forward.8} parent=19 // pred_fallthru
        _
    $region20: #{stgcn_forward.8} parent=5 // pred_fallthru
      _
    %p112 = scmp.le.s32.totalorder 1, %s8
    %p113 = scmp.lt.s32.totalorder %s8, 3
    %p114 = pnand %p112, %p113
    %p115 = pneg %p114
    // Predicated region
    $region25: #{stgcn_forward.8} parent=5 // pred_check
      _
    $region26: #{stgcn_forward.8} parent=5 // pred_check_branch
      %117 = sbr.rel (%p114) target = $region28
    $region27: #{stgcn_forward.8} parent=5 // pred_region
      %s118 = ssub.s32 %s8, 1
      %p119 = pneg %p29
      %p120 = pneg %p26
      %s121 = smul.u32 3, %s13
      %p122 = scmp.lt.s32.totalorder %s121, 5
      %s123 = scalar_select %p122, %s121, 5
      %s124 = smul.addr %s123, 8
      %s125 = scalar_lea.vmem %s1, %s124
      %p126 = pneg %p55
      %p127 = pneg %p52
      %p128 = pneg %p81
      %p129 = pneg %p78
      %s130 = smul.u32 3, %s13
      %p131 = scmp.lt.s32.totalorder %s130, 5
      %s132 = scalar_select %p131, %s130, 5
      %s133 = smul.addr %s132, 8
      %s134 = scalar_lea.vmem %s2, %s133
      %s135 = smul.u32 3, %s13
      %p136 = scmp.lt.s32.totalorder %s135, 5
      %s137 = scalar_select %p136, %s135, 5
      %s138 = smul.addr %s137, 8
      %s139 = scalar_lea.vmem %s1, %s138
      %s140 = smul.u32 3, %s13
      %s141 = smul.u32 3, %s13
      %p142 = scmp.lt.s32.totalorder %s141, 5
      %s143 = scalar_select %p142, %s141, 5
      %s144 = smul.addr %s143, 8
      %s145 = scalar_lea.vmem %s2, %s144
      %s146 = smul.u32 3, %s13
      %v148 = vld [vmem:[%s0] sm:$0xff]
      %v149 = vpack.c.bf16 %v148, %v148
      %v150 = vld [vmem:[%s139] sm:$0xff]
      %v151 = vld [vmem:[%s139 + $0x8] sm:$0xff]
      %v152 = vld [vmem:[%s139 + $0x10] sm:$0xff]
      %v153 = vpack.c.bf16 %v150, %v150
      %v154 = vpack.c.bf16 %v151, %v151
      %v155 = vpack.c.bf16 %v152, %v152
      %vm156 = vcmask 64512
      %v158 = vsel %vm156, %v149, 0
      %vm160 = vcmask 1043456
      %v162 = vsel %vm160, %v153, 0
      %v165 = vsel %vm160, %v154, 0
      %v168 = vsel %vm160, %v155, 0
      %170 = vmatprep.subr.bf16.mxu0 %v165
      %171 = vmatpush1.bf16.msra.mxu0 %v162
      %172 = vmatprep.subr.bf16.mxu0 0
      %173 = vmatpush1.bf16.msra.mxu0 0
      %174 = vmatprep.subr.bf16.mxu0 0
      %175 = vmatpush1.bf16.msra.mxu0 0
      %176 = vmatprep.subr.bf16.mxu0 0
      %177 = vmatpush1.bf16.msra.mxu0 0
      %178 = vmatprep.subr.bf16.mxu0 0
      %179 = vmatpush1.bf16.msra.mxu0 0
      %180 = vmatprep.subr.bf16.mxu0 0
      %181 = vmatpush1.bf16.msra.mxu0 0
      %182 = vmatprep.subr.bf16.mxu0 0
      %183 = vmatpush1.bf16.msra.mxu0 0
      %184 = vmatprep.subr.bf16.mxu0 0
      %185 = vmatpush1.bf16.msra.mxu0 0
      %186 = vmatprep.subr.bf16.mxu0 0
      %187 = vmatpush1.bf16.msra.mxu0 0
      %188 = vmatprep.subr.bf16.mxu0 0
      %189 = vmatpush1.bf16.msra.mxu0 0
      %190 = vmatprep.subr.bf16.mxu0 0
      %191 = vmatpush1.bf16.msra.mxu0 0
      %192 = vmatprep.subr.bf16.mxu0 0
      %193 = vmatpush1.bf16.msra.mxu0 0
      %194 = vmatprep.subr.bf16.mxu0 0
      %195 = vmatpush1.bf16.msra.mxu0 0
      %196 = vmatprep.subr.bf16.mxu0 0
      %197 = vmatpush1.bf16.msra.mxu0 0
      %198 = vmatprep.subr.bf16.mxu0 0
      %199 = vmatpush1.bf16.msra.mxu0 0
      %200 = vmatprep.subr.bf16.mxu0 0
      %201 = vmatpush1.bf16.msra.mxu0 0
      %202 = vmatprep.mubr.bf16.mxu0 0
      %203 = vmatmul.mubr.bf16.gmra.mrb[0].mxu0 %v158
      %v204 = vpop.f32.mrb[0].mxu0
      %v205 = vadd.f32 0.0, %v204
      %v206 = vpop.f32.mrb[0].mxu0
      %v207 = vadd.f32 0.0, %v206
      %v208 = vpop.f32.mrb[0].mxu0
      %v209 = vpop.f32.mrb[0].mxu0
      %210 = vdwg.mxu0
      %211 = vmatprep.subr.bf16.mxu0 0
      %212 = vmatpush1.bf16.msra.mxu0 %v168
      %213 = vmatprep.subr.bf16.mxu0 0
      %214 = vmatpush1.bf16.msra.mxu0 0
      %215 = vmatprep.subr.bf16.mxu0 0
      %216 = vmatpush1.bf16.msra.mxu0 0
      %217 = vmatprep.subr.bf16.mxu0 0
      %218 = vmatpush1.bf16.msra.mxu0 0
      %219 = vmatprep.subr.bf16.mxu0 0
      %220 = vmatpush1.bf16.msra.mxu0 0
      %221 = vmatprep.subr.bf16.mxu0 0
      %222 = vmatpush1.bf16.msra.mxu0 0
      %223 = vmatprep.subr.bf16.mxu0 0
      %224 = vmatpush1.bf16.msra.mxu0 0
      %225 = vmatprep.subr.bf16.mxu0 0
      %226 = vmatpush1.bf16.msra.mxu0 0
      %227 = vmatprep.subr.bf16.mxu0 0
      %228 = vmatpush1.bf16.msra.mxu0 0
      %229 = vmatprep.subr.bf16.mxu0 0
      %230 = vmatpush1.bf16.msra.mxu0 0
      %231 = vmatprep.subr.bf16.mxu0 0
      %232 = vmatpush1.bf16.msra.mxu0 0
      %233 = vmatprep.subr.bf16.mxu0 0
      %234 = vmatpush1.bf16.msra.mxu0 0
      %235 = vmatprep.subr.bf16.mxu0 0
      %236 = vmatpush1.bf16.msra.mxu0 0
      %237 = vmatprep.subr.bf16.mxu0 0
      %238 = vmatpush1.bf16.msra.mxu0 0
      %239 = vmatprep.subr.bf16.mxu0 0
      %240 = vmatpush1.bf16.msra.mxu0 0
      %241 = vmatprep.subr.bf16.mxu0 0
      %242 = vmatpush1.bf16.msra.mxu0 0
      %243 = vmatprep.mubr.bf16.mxu0 0
      %244 = vmatmul.mubr.bf16.gmra.mrb[0].mxu0 %v158
      %v245 = vpop.f32.mrb[0].mxu0
      %v246 = vadd.f32 0.0, %v245
      %v247 = vpop.f32.mrb[0].mxu0
      %v248 = vpop.f32.mrb[0].mxu0
      %v249 = vpop.f32.mrb[0].mxu0
      %250 = vdwg.mxu0
      %v251 = vmax.f32 %v205, 0.0
      %v252 = vmax.f32 %v207, 0.0
      %v253 = vmax.f32 %v246, 0.0
      %254 = vst [vmem:[%s145] sm:$0xff] %v251
      %255 = vst [vmem:[%s145 + $0x8] sm:$0xff] %v252
      %256 = vst [vmem:[%s145 + $0x10] sm:$0xff] %v253
      %s257 = smul.u32 3, %s13
      %p258 = scmp.lt.s32.totalorder %s257, 5
      %s259 = scalar_select %p258, %s257, 5
      %s260 = smul.addr %s259, 8
      %s261 = scalar_lea.vmem %s2, %s260
      // Predicated region
      $region29: #{stgcn_forward.8} parent=27 // pred_check
        %p262 = pneg %p78
      $region30: #{stgcn_forward.8} parent=27 // pred_check_branch
        %264 = sbr.rel (%p262) target = $region32
      $region31: #{stgcn_forward.8} parent=27 // pred_region
        %s265 = smul.u32 3, %s13
      $region32: #{stgcn_forward.8} parent=27 // pred_fallthru
        _
    $region28: #{stgcn_forward.8} parent=5 // pred_fallthru
      _
    %p266 = scmp.le.s32.totalorder 2, %s8
    // Predicated region
    $region33: #{stgcn_forward.8} parent=5 // pred_check
      %p267 = pneg %p266
    $region34: #{stgcn_forward.8} parent=5 // pred_check_branch
      %269 = sbr.rel (%p267) target = $region36
    $region35: #{stgcn_forward.8} parent=5 // pred_region
      %s270 = ssub.s32 %s8, 2
      // Predicated region
      $region37: #{stgcn_forward.8} parent=35 // pred_check
        %p271 = pneg %p84
      $region38: #{stgcn_forward.8} parent=35 // pred_check_branch
        %273 = sbr.rel (%p271) target = $region40
      $region39: #{stgcn_forward.8} parent=35 // pred_region
        %s274 = smul.u32 3, %s14
        %p275 = scmp.lt.s32.totalorder %s274, 5
        %s276 = scalar_select %p275, %s274, 5
        %s277 = smul.addr %s276, 8
        %s278 = scalar_lea.vmem %s2, %s277
      $region40: #{stgcn_forward.8} parent=35 // pred_fallthru
        _
    $region36: #{stgcn_forward.8} parent=5 // pred_fallthru
      _
  $region6: #{stgcn_forward.8} parent=0 // loop_footer
    %s12 = sadd.s32 1, %s8
  $region7: #{stgcn_forward.8} parent=0 // loop_footer_branch
    %7 = sbr.rel target = $region3
  $region8: #{stgcn_forward.8} parent=0 // loop_exit
    _

// kernel: stgcn_forward.7
$region0: #{stgcn_forward.7}
  #allocation0 [shape = 'u32[]', space=smem, size = 0x4, offset = 0x4, fixed_abs, tag = 'smem constant byte address 0x4 - core index']
  #allocation1 [shape = 'u32[144,128]{1,0:T(1,128)}', space=vmem, size = 0x12000, scoped, tag = 'internal scratch']
  %s0 = inlined_call_operand.vmem [shape: f32[8,2,24,4], index: 0, kind: input, shape index: {}]
  %s1 = inlined_call_operand.vmem [shape: bf16[3,4,192], index: 1, kind: input, shape index: {}]
  %s2 = inlined_call_operand.vmem [shape: f32[1,192], index: 2, kind: input, shape index: {}]
  %s3 = inlined_call_operand.vmem [shape: bf16[64,16], index: 3, kind: input, shape index: {}]
  %s4 = inlined_call_operand.vmem [shape: f32[8,2,24,16], index: 4, kind: output, shape index: {}]
  %s5 = sld [smem:[#allocation0]]
  $region49: #{stgcn_forward.7} parent=0
    _
  %s7 = ssub.s32 1, %s5
  %s8 = scalar_select 0, %s7, %s5
  loop: start=0, step=1, limit=6
  $region2: #{stgcn_forward.7} parent=0 // loop_pre_header
    _
  $region3: #{stgcn_forward.7} parent=0 // loop_header
    %s10 = sphi 0, %s14
    %p11 = scmp.ge.s32.totalorder %s10, 6
    %s20 = sphi 0, %s22
    %s23 = sphi 0, %s20
    %s24 = sphi 0, %s23
    %s40 = sphi 0, %s24
    %s44 = sphi 0, %s44
    %s46 = sphi 0, %s44
    %s47 = sphi 0, %s46
    %s61 = sphi 0, %s47
    %s65 = sphi 0, %s65
    %s67 = sphi 0, %s65
    %s68 = sphi 0, %s67
    %s82 = sphi 0, %s68
    %s86 = sphi 0, %s86
    %s88 = sphi 0, %s86
    %s89 = sphi 0, %s88
    %s103 = sphi 0, %s89
    %s109 = sphi 0, %s111
    %s112 = sphi 0, %s109
    %s113 = sphi 0, %s112
    %s129 = sphi 0, %s113
  $region4: #{stgcn_forward.7} parent=0 // loop_header_branch
    %13 = sbr.rel (%p11) target = $region8
  $region5: #{stgcn_forward.7} parent=0 // loop_body
    %s15 = ssub.s32 %s10, 1
    %s16 = ssub.s32 %s10, 2
    %s17 = sadd.s32 %s10, 1
    %s18 = ssub.s32 %s10, %s17
    %p19 = scmp.eq.s32.totalorder %s18, 0
    %s21 = sadd.s32 %s20, 1
    %s22 = scalar_select %p19, %s20, %s21
    %p25 = pneg %p19
    %p26 = scmp.eq.s32.totalorder %s10, 3
    %p27 = por %p25, %p26
    %p28 = scmp.ne.s32.totalorder %s20, %s23
    %p29 = scmp.eq.s32.totalorder %s10, 0
    %p30 = por %p28, %p29
    %p31 = scmp.ne.s32.totalorder %s20, %s23
    %p32 = scmp.eq.s32.totalorder %s15, 3
    %p33 = por %p31, %p32
    %p34 = scmp.ne.s32.totalorder %s23, %s24
    %p35 = scmp.eq.s32.totalorder %s15, 0
    %p36 = por %p34, %p35
    %p37 = scmp.ne.s32.totalorder %s23, %s24
    %p38 = scmp.eq.s32.totalorder %s16, 3
    %p39 = por %p37, %p38
    %p41 = scmp.ne.s32.totalorder %s24, %s40
    %p42 = scmp.eq.s32.totalorder %s16, 0
    %p43 = por %p41, %p42
    %s45 = sadd.s32 %s44, 1
    %p48 = scmp.eq.s32.totalorder %s10, 3
    %p49 = scmp.ne.s32.totalorder %s44, %s46
    %p50 = scmp.eq.s32.totalorder %s10, 0
    %p51 = por %p49, %p50
    %p52 = scmp.ne.s32.totalorder %s44, %s46
    %p53 = scmp.eq.s32.totalorder %s15, 3
    %p54 = por %p52, %p53
    %p55 = scmp.ne.s32.totalorder %s46, %s47
    %p56 = scmp.eq.s32.totalorder %s15, 0
    %p57 = por %p55, %p56
    %p58 = scmp.ne.s32.totalorder %s46, %s47
    %p59 = scmp.eq.s32.totalorder %s16, 3
    %p60 = por %p58, %p59
    %p62 = scmp.ne.s32.totalorder %s47, %s61
    %p63 = scmp.eq.s32.totalorder %s16, 0
    %p64 = por %p62, %p63
    %s66 = sadd.s32 %s65, 1
    %p69 = scmp.eq.s32.totalorder %s10, 3
    %p70 = scmp.ne.s32.totalorder %s65, %s67
    %p71 = scmp.eq.s32.totalorder %s10, 0
    %p72 = por %p70, %p71
    %p73 = scmp.ne.s32.totalorder %s65, %s67
    %p74 = scmp.eq.s32.totalorder %s15, 3
    %p75 = por %p73, %p74
    %p76 = scmp.ne.s32.totalorder %s67, %s68
    %p77 = scmp.eq.s32.totalorder %s15, 0
    %p78 = por %p76, %p77
    %p79 = scmp.ne.s32.totalorder %s67, %s68
    %p80 = scmp.eq.s32.totalorder %s16, 3
    %p81 = por %p79, %p80
    %p83 = scmp.ne.s32.totalorder %s68, %s82
    %p84 = scmp.eq.s32.totalorder %s16, 0
    %p85 = por %p83, %p84
    %s87 = sadd.s32 %s86, 1
    %p90 = scmp.eq.s32.totalorder %s10, 3
    %p91 = scmp.ne.s32.totalorder %s86, %s88
    %p92 = scmp.eq.s32.totalorder %s10, 0
    %p93 = por %p91, %p92
    %p94 = scmp.ne.s32.totalorder %s86, %s88
    %p95 = scmp.eq.s32.totalorder %s15, 3
    %p96 = por %p94, %p95
    %p97 = scmp.ne.s32.totalorder %s88, %s89
    %p98 = scmp.eq.s32.totalorder %s15, 0
    %p99 = por %p97, %p98
    %p100 = scmp.ne.s32.totalorder %s88, %s89
    %p101 = scmp.eq.s32.totalorder %s16, 3
    %p102 = por %p100, %p101
    %p104 = scmp.ne.s32.totalorder %s89, %s103
    %p105 = scmp.eq.s32.totalorder %s16, 0
    %p106 = por %p104, %p105
    %s107 = ssub.s32 %s10, %s17
    %p108 = scmp.eq.s32.totalorder %s107, 0
    %s110 = sadd.s32 %s109, 1
    %s111 = scalar_select %p108, %s109, %s110
    %p114 = pneg %p108
    %p115 = scmp.eq.s32.totalorder %s10, 3
    %p116 = por %p114, %p115
    %p117 = scmp.ne.s32.totalorder %s109, %s112
    %p118 = scmp.eq.s32.totalorder %s10, 0
    %p119 = por %p117, %p118
    %p120 = scmp.ne.s32.totalorder %s109, %s112
    %p121 = scmp.eq.s32.totalorder %s15, 3
    %p122 = por %p120, %p121
    %p123 = scmp.ne.s32.totalorder %s112, %s113
    %p124 = scmp.eq.s32.totalorder %s15, 0
    %p125 = por %p123, %p124
    %p126 = scmp.ne.s32.totalorder %s112, %s113
    %p127 = scmp.eq.s32.totalorder %s16, 3
    %p128 = por %p126, %p127
    %p130 = scmp.ne.s32.totalorder %s113, %s129
    %p131 = scmp.eq.s32.totalorder %s16, 0
    %p132 = por %p130, %p131
    %p133 = scmp.le.s32.totalorder 1, %s10
    %p134 = scmp.lt.s32.totalorder %s10, 5
    %p135 = pnand %p133, %p134
    %p136 = pneg %p135
    // Predicated region
    $region9: #{stgcn_forward.7} parent=5 // pred_check
      _
    $region10: #{stgcn_forward.7} parent=5 // pred_check_branch
      %138 = sbr.rel (%p135) target = $region12
    $region11: #{stgcn_forward.7} parent=5 // pred_region
      %s139 = ssub.s32 %s10, 1
      // Predicated region
      $region13: #{stgcn_forward.7} parent=11 // pred_check
        %p140 = pneg %p57
      $region14: #{stgcn_forward.7} parent=11 // pred_check_branch
        %142 = sbr.rel (%p140) target = $region16
      $region15: #{stgcn_forward.7} parent=11 // pred_region
        _
      $region16: #{stgcn_forward.7} parent=11 // pred_fallthru
        _
      // Predicated region
      $region17: #{stgcn_forward.7} parent=11 // pred_check
        %p143 = pneg %p78
      $region18: #{stgcn_forward.7} parent=11 // pred_check_branch
        %145 = sbr.rel (%p143) target = $region20
      $region19: #{stgcn_forward.7} parent=11 // pred_region
        _
      $region20: #{stgcn_forward.7} parent=11 // pred_fallthru
        _
      // Predicated region
      $region21: #{stgcn_forward.7} parent=11 // pred_check
        %p146 = pneg %p99
      $region22: #{stgcn_forward.7} parent=11 // pred_check_branch
        %148 = sbr.rel (%p146) target = $region24
      $region23: #{stgcn_forward.7} parent=11 // pred_region
        _
      $region24: #{stgcn_forward.7} parent=11 // pred_fallthru
        _
    $region12: #{stgcn_forward.7} parent=5 // pred_fallthru
      _
    %p149 = scmp.lt.s32.totalorder %s10, 4
    // Predicated region
    $region25: #{stgcn_forward.7} parent=5 // pred_check
      %p150 = pneg %p149
    $region26: #{stgcn_forward.7} parent=5 // pred_check_branch
      %152 = sbr.rel (%p150) target = $region28
    $region27: #{stgcn_forward.7} parent=5 // pred_region
      // Predicated region
      $region29: #{stgcn_forward.7} parent=27 // pred_check
        %p153 = pneg %p30
      $region30: #{stgcn_forward.7} parent=27 // pred_check_branch
        %155 = sbr.rel (%p153) target = $region32
      $region31: #{stgcn_forward.7} parent=27 // pred_region
        %s156 = smul.u32 2, %s10
        %p157 = scmp.lt.s32.totalorder %s156, 7
        %s158 = scalar_select %p157, %s156, 7
        %s159 = smul.addr %s158, 6
        %s160 = smul.addr %s159, 8
        %s161 = scalar_lea.vmem %s0, %s160
        %s162 = smul.u32 2, %s10
      $region32: #{stgcn_forward.7} parent=27 // pred_fallthru
        _
    $region28: #{stgcn_forward.7} parent=5 // pred_fallthru
      _
    %p163 = scmp.le.s32.totalorder 1, %s10
    %p164 = scmp.lt.s32.totalorder %s10, 5
    %p165 = pnand %p163, %p164
    %p166 = pneg %p165
    // Predicated region
    $region33: #{stgcn_forward.7} parent=5 // pred_check
      _
    $region34: #{stgcn_forward.7} parent=5 // pred_check_branch
      %168 = sbr.rel (%p165) target = $region36
    $region35: #{stgcn_forward.7} parent=5 // pred_region
      %s169 = ssub.s32 %s10, 1
      %s170 = smul.u32 2, %s15
      %p171 = scmp.lt.s32.totalorder %s170, 7
      %s172 = scalar_select %p171, %s170, 7
      %s173 = smul.addr %s172, 6
      %s174 = smul.addr %s173, 8
      %s175 = scalar_lea.vmem %s0, %s174
      %p176 = pneg %p36
      %p177 = pneg %p33
      %p178 = pneg %p57
      %p179 = pneg %p54
      %p180 = pneg %p78
      %p181 = pneg %p75
      %p182 = pneg %p99
      %p183 = pneg %p96
      %p184 = pneg %p125
      %p185 = pneg %p122
      %s186 = smul.u32 2, %s15
      %p187 = scmp.lt.s32.totalorder %s186, 7
      %s188 = scalar_select %p187, %s186, 7
      %s189 = smul.addr %s188, 6
      %s190 = smul.addr %s189, 8
      %s191 = scalar_lea.vmem %s4, %s190
      %s192 = smul.u32 2, %s15
      %p193 = scmp.lt.s32.totalorder %s192, 7
      %s194 = scalar_select %p193, %s192, 7
      %s195 = smul.addr %s194, 6
      %s196 = smul.addr %s195, 8
      %s197 = scalar_lea.vmem %s0, %s196
      %s198 = smul.u32 2, %s15
      %s199 = smul.u32 2, %s15
      %p200 = scmp.lt.s32.totalorder %s199, 7
      %s201 = scalar_select %p200, %s199, 7
      %s202 = smul.addr %s201, 6
      %s203 = smul.addr %s202, 8
      %s204 = scalar_lea.vmem %s4, %s203
      %s205 = smul.u32 2, %s15
      %v207 = vld [vmem:[%s197] sm:$0xff]
      %v208 = vld [vmem:[%s197 + $0x8] sm:$0xff]
      %v209 = vld [vmem:[%s197 + $0x18] sm:$0xff]
      %v210 = vld [vmem:[%s197 + $0x20] sm:$0xff]
      %v211 = vld [vmem:[%s197 + $0x30] sm:$0xff]
      %v212 = vld [vmem:[%s197 + $0x38] sm:$0xff]
      %v213 = vld [vmem:[%s197 + $0x48] sm:$0xff]
      %v214 = vld [vmem:[%s197 + $0x50] sm:$0xff]
      %v215 = vpack.c.bf16 %v208, %v207
      %v216 = vpack.c.bf16 %v210, %v209
      %v217 = vpack.c.bf16 %v212, %v211
      %v218 = vpack.c.bf16 %v214, %v213
      %v219 = vld [vmem:[%s1] sm:$0xf]
      %v220 = vld [vmem:[%s197 + $0x1] sm:$0xff]
      %v221 = vld [vmem:[%s197 + $0x9] sm:$0xff]
      %v222 = vld [vmem:[%s197 + $0x19] sm:$0xff]
      %v223 = vld [vmem:[%s197 + $0x21] sm:$0xff]
      %v224 = vld [vmem:[%s197 + $0x31] sm:$0xff]
      %v225 = vld [vmem:[%s197 + $0x39] sm:$0xff]
      %v226 = vld [vmem:[%s197 + $0x49] sm:$0xff]
      %v227 = vld [vmem:[%s197 + $0x51] sm:$0xff]
      %v228 = vpack.c.bf16 %v221, %v220
      %v229 = vpack.c.bf16 %v223, %v222
      %v230 = vpack.c.bf16 %v225, %v224
      %v231 = vpack.c.bf16 %v227, %v226
      %s232 = scalar_lea.vmem %s1, 4
      %v233 = vld [vmem:[%s232] sm:$0xf]
      %v236 = vunpack.c.l.s4 1983009808
      %v237 = vunpack.c.0.s8 %v236
      %v238 = vlaneseq
      %v239 = vshrl.u32 %v238, 7
      %v240 = vsub.s32 %v237, %v239
      %v241 = vrot.slane %v233, %v240
      %v242 = vcombine.high %v241, %v241
      %vm243 = vcmask 31744
      %v245 = vsel %vm243, %v228, 0
      %v248 = vsel %vm243, %v229, 0
      %v251 = vsel %vm243, %v230, 0
      %v254 = vsel %vm243, %v231, 0
      %vm256 = vcmask 1041408
      %v258 = vsel %vm256, %v241, 0
      %v261 = vsel %vm256, %v242, 0
      %263 = vmatprep.subr.bf16.mxu0 %v261
      %264 = vmatpush1.bf16.msra.mxu0 %v258
      %265 = vmatprep.subr.bf16.mxu0 0
      %266 = vmatpush1.bf16.msra.mxu0 0
      %267 = vmatprep.subr.bf16.mxu0 0
      %268 = vmatpush1.bf16.msra.mxu0 0
      %269 = vmatprep.subr.bf16.mxu0 0
      %270 = vmatpush1.bf16.msra.mxu0 0
      %271 = vmatprep.subr.bf16.mxu0 0
      %272 = vmatpush1.bf16.msra.mxu0 0
      %273 = vmatprep.subr.bf16.mxu0 0
      %274 = vmatpush1.bf16.msra.mxu0 0
      %275 = vmatprep.subr.bf16.mxu0 0
      %276 = vmatpush1.bf16.msra.mxu0 0
      %277 = vmatprep.subr.bf16.mxu0 0
      %278 = vmatpush1.bf16.msra.mxu0 0
      %279 = vmatprep.subr.bf16.mxu0 0
      %280 = vmatpush1.bf16.msra.mxu0 0
      %281 = vmatprep.subr.bf16.mxu0 0
      %282 = vmatpush1.bf16.msra.mxu0 0
      %283 = vmatprep.subr.bf16.mxu0 0
      %284 = vmatpush1.bf16.msra.mxu0 0
      %285 = vmatprep.subr.bf16.mxu0 0
      %286 = vmatpush1.bf16.msra.mxu0 0
      %287 = vmatprep.subr.bf16.mxu0 0
      %288 = vmatpush1.bf16.msra.mxu0 0
      %289 = vmatprep.subr.bf16.mxu0 0
      %290 = vmatpush1.bf16.msra.mxu0 0
      %291 = vmatprep.subr.bf16.mxu0 0
      %292 = vmatpush1.bf16.msra.mxu0 0
      %293 = vmatprep.subr.bf16.mxu0 0
      %294 = vmatpush1.bf16.msra.mxu0 0
      %295 = vmatprep.mubr.bf16.mxu0 0
      %296 = vmatmul.mubr.bf16.gmra.mrb[0].mxu0 %v245
      %v297 = vpop.f32.mrb[0].mxu0
      %v298 = vadd.f32 0.0, %v297
      %v299 = vpop.f32.mrb[0].mxu0
      %v300 = vadd.f32 0.0, %v299
      %v301 = vpop.f32.mrb[0].mxu0
      %v302 = vadd.f32 0.0, %v301
      %v303 = vpop.f32.mrb[0].mxu0
      %v304 = vadd.f32 0.0, %v303
      %305 = vmatprep.mubr.bf16.mxu0 0
      %306 = vmatmul.mubr.bf16.gmra.mrb[0].mxu0 %v248
      %v307 = vpop.f32.mrb[0].mxu0
      %v308 = vadd.f32 0.0, %v307
      %v309 = vpop.f32.mrb[0].mxu0
      %v310 = vadd.f32 0.0, %v309
      %v311 = vpop.f32.mrb[0].mxu0
      %v312 = vadd.f32 0.0, %v311
      %v313 = vpop.f32.mrb[0].mxu0
      %v314 = vadd.f32 0.0, %v313
      %315 = vmatprep.mubr.bf16.mxu0 0
      %316 = vmatmul.mubr.bf16.gmra.mrb[0].mxu0 %v251
      %v317 = vpop.f32.mrb[0].mxu0
      %v318 = vadd.f32 0.0, %v317
      %v319 = vpop.f32.mrb[0].mxu0
      %v320 = vadd.f32 0.0, %v319
      %v321 = vpop.f32.mrb[0].mxu0
      %v322 = vadd.f32 0.0, %v321
      %v323 = vpop.f32.mrb[0].mxu0
      %v324 = vadd.f32 0.0, %v323
      %325 = vmatprep.mubr.bf16.mxu0 0
      %326 = vmatmul.mubr.bf16.gmra.mrb[0].mxu0 %v254
      %v327 = vpop.f32.mrb[0].mxu0
      %v328 = vadd.f32 0.0, %v327
      %v329 = vpop.f32.mrb[0].mxu0
      %v330 = vadd.f32 0.0, %v329
      %v331 = vpop.f32.mrb[0].mxu0
      %v332 = vadd.f32 0.0, %v331
      %v333 = vpop.f32.mrb[0].mxu0
      %v334 = vadd.f32 0.0, %v333
      %335 = vdwg.mxu0
      %v338 = vunpack.c.l.s4 1983009808
      %v339 = vunpack.c.0.s8 %v338
      %v340 = vlaneseq
      %v341 = vshrl.u32 %v340, 7
      %v342 = vsub.s32 %v339, %v341
      %v343 = vrot.slane %v219, %v342
      %v344 = vcombine.high %v343, %v343
      %v346 = vsel %vm243, %v215, 0
      %v349 = vsel %vm243, %v216, 0
      %v352 = vsel %vm243, %v217, 0
      %v355 = vsel %vm243, %v218, 0
      %v358 = vsel %vm256, %v343, 0
      %v361 = vsel %vm256, %v344, 0
      %363 = vmatprep.subr.bf16.mxu0 %v361
      %364 = vmatpush1.bf16.msra.mxu0 %v358
      %365 = vmatprep.subr.bf16.mxu0 0
      %366 = vmatpush1.bf16.msra.mxu0 0
      %367 = vmatprep.subr.bf16.mxu0 0
      %368 = vmatpush1.bf16.msra.mxu0 0
      %369 = vmatprep.subr.bf16.mxu0 0
      %370 = vmatpush1.bf16.msra.mxu0 0
      %371 = vmatprep.subr.bf16.mxu0 0
      %372 = vmatpush1.bf16.msra.mxu0 0
      %373 = vmatprep.subr.bf16.mxu0 0
      %374 = vmatpush1.bf16.msra.mxu0 0
      %375 = vmatprep.subr.bf16.mxu0 0
      %376 = vmatpush1.bf16.msra.mxu0 0
      %377 = vmatprep.subr.bf16.mxu0 0
      %378 = vmatpush1.bf16.msra.mxu0 0
      %379 = vmatprep.subr.bf16.mxu0 0
      %380 = vmatpush1.bf16.msra.mxu0 0
      %381 = vmatprep.subr.bf16.mxu0 0
      %382 = vmatpush1.bf16.msra.mxu0 0
      %383 = vmatprep.subr.bf16.mxu0 0
      %384 = vmatpush1.bf16.msra.mxu0 0
      %385 = vmatprep.subr.bf16.mxu0 0
      %386 = vmatpush1.bf16.msra.mxu0 0
      %387 = vmatprep.subr.bf16.mxu0 0
      %388 = vmatpush1.bf16.msra.mxu0 0
      %389 = vmatprep.subr.bf16.mxu0 0
      %390 = vmatpush1.bf16.msra.mxu0 0
      %391 = vmatprep.subr.bf16.mxu0 0
      %392 = vmatpush1.bf16.msra.mxu0 0
      %393 = vmatprep.subr.bf16.mxu0 0
      %394 = vmatpush1.bf16.msra.mxu0 0
      %395 = vmatprep.mubr.bf16.mxu0 0
      %396 = vmatmul.mubr.bf16.gmra.mrb[0].mxu0 %v346
      %v397 = vpop.f32.mrb[0].mxu0
      %v398 = vadd.f32 %v298, %v397
      %v399 = vpop.f32.mrb[0].mxu0
      %v400 = vadd.f32 %v300, %v399
      %v401 = vpop.f32.mrb[0].mxu0
      %v402 = vadd.f32 %v302, %v401
      %v403 = vpop.f32.mrb[0].mxu0
      %v404 = vadd.f32 %v304, %v403
      %405 = vmatprep.mubr.bf16.mxu0 0
      %406 = vmatmul.mubr.bf16.gmra.mrb[0].mxu0 %v349
      %v407 = vpop.f32.mrb[0].mxu0
      %v408 = vadd.f32 %v308, %v407
      %v409 = vpop.f32.mrb[0].mxu0
      %v410 = vadd.f32 %v310, %v409
      %v411 = vpop.f32.mrb[0].mxu0
      %v412 = vadd.f32 %v312, %v411
      %v413 = vpop.f32.mrb[0].mxu0
      %v414 = vadd.f32 %v314, %v413
      %415 = vmatprep.mubr.bf16.mxu0 0
      %416 = vmatmul.mubr.bf16.gmra.mrb[0].mxu0 %v352
      %v417 = vpop.f32.mrb[0].mxu0
      %v418 = vadd.f32 %v318, %v417
      %v419 = vpop.f32.mrb[0].mxu0
      %v420 = vadd.f32 %v320, %v419
      %v421 = vpop.f32.mrb[0].mxu0
      %v422 = vadd.f32 %v322, %v421
      %v423 = vpop.f32.mrb[0].mxu0
      %v424 = vadd.f32 %v324, %v423
      %425 = vmatprep.mubr.bf16.mxu0 0
      %426 = vmatmul.mubr.bf16.gmra.mrb[0].mxu0 %v355
      %v427 = vpop.f32.mrb[0].mxu0
      %v428 = vadd.f32 %v328, %v427
      %v429 = vpop.f32.mrb[0].mxu0
      %v430 = vadd.f32 %v330, %v429
      %v431 = vpop.f32.mrb[0].mxu0
      %v432 = vadd.f32 %v332, %v431
      %v433 = vpop.f32.mrb[0].mxu0
      %v434 = vadd.f32 %v334, %v433
      %435 = vdwg.mxu0
      %v436 = vld [vmem:[%s197 + $0x2] sm:$0xff]
      %v437 = vld [vmem:[%s197 + $0xa] sm:$0xff]
      %v438 = vld [vmem:[%s197 + $0x1a] sm:$0xff]
      %v439 = vld [vmem:[%s197 + $0x22] sm:$0xff]
      %v440 = vld [vmem:[%s197 + $0x32] sm:$0xff]
      %v441 = vld [vmem:[%s197 + $0x3a] sm:$0xff]
      %v442 = vld [vmem:[%s197 + $0x4a] sm:$0xff]
      %v443 = vld [vmem:[%s197 + $0x52] sm:$0xff]
      %v444 = vpack.c.bf16 %v437, %v436
      %v445 = vpack.c.bf16 %v439, %v438
      %v446 = vpack.c.bf16 %v441, %v440
      %v447 = vpack.c.bf16 %v443, %v442
      %s448 = scalar_lea.vmem %s1, 8
      %v449 = vld [vmem:[%s448] sm:$0xf]
      %v452 = vunpack.c.l.s4 1983009808
      %v453 = vunpack.c.0.s8 %v452
      %v454 = vlaneseq
      %v455 = vshrl.u32 %v454, 7
      %v456 = vsub.s32 %v453, %v455
      %v457 = vrot.slane %v449, %v456
      %v458 = vcombine.high %v457, %v457
      %v460 = vsel %vm243, %v444, 0
      %v463 = vsel %vm243, %v445, 0
      %v466 = vsel %vm243, %v446, 0
      %v469 = vsel %vm243, %v447, 0
      %v472 = vsel %vm256, %v457, 0
      %v475 = vsel %vm256, %v458, 0
      %477 = vmatprep.subr.bf16.mxu0 %v475
      %478 = vmatpush1.bf16.msra.mxu0 %v472
      %479 = vmatprep.subr.bf16.mxu0 0
      %480 = vmatpush1.bf16.msra.mxu0 0
      %481 = vmatprep.subr.bf16.mxu0 0
      %482 = vmatpush1.bf16.msra.mxu0 0
      %483 = vmatprep.subr.bf16.mxu0 0
      %484 = vmatpush1.bf16.msra.mxu0 0
      %485 = vmatprep.subr.bf16.mxu0 0
      %486 = vmatpush1.bf16.msra.mxu0 0
      %487 = vmatprep.subr.bf16.mxu0 0
      %488 = vmatpush1.bf16.msra.mxu0 0
      %489 = vmatprep.subr.bf16.mxu0 0
      %490 = vmatpush1.bf16.msra.mxu0 0
      %491 = vmatprep.subr.bf16.mxu0 0
      %492 = vmatpush1.bf16.msra.mxu0 0
      %493 = vmatprep.subr.bf16.mxu0 0
      %494 = vmatpush1.bf16.msra.mxu0 0
      %495 = vmatprep.subr.bf16.mxu0 0
      %496 = vmatpush1.bf16.msra.mxu0 0
      %497 = vmatprep.subr.bf16.mxu0 0
      %498 = vmatpush1.bf16.msra.mxu0 0
      %499 = vmatprep.subr.bf16.mxu0 0
      %500 = vmatpush1.bf16.msra.mxu0 0
      %501 = vmatprep.subr.bf16.mxu0 0
      %502 = vmatpush1.bf16.msra.mxu0 0
      %503 = vmatprep.subr.bf16.mxu0 0
      %504 = vmatpush1.bf16.msra.mxu0 0
      %505 = vmatprep.subr.bf16.mxu0 0
      %506 = vmatpush1.bf16.msra.mxu0 0
      %507 = vmatprep.subr.bf16.mxu0 0
      %508 = vmatpush1.bf16.msra.mxu0 0
      %509 = vmatprep.mubr.bf16.mxu0 0
      %510 = vmatmul.mubr.bf16.gmra.mrb[0].mxu0 %v460
      %v511 = vpop.f32.mrb[0].mxu0
      %v512 = vadd.f32 0.0, %v511
      %v513 = vpop.f32.mrb[0].mxu0
      %v514 = vadd.f32 0.0, %v513
      %v515 = vpop.f32.mrb[0].mxu0
      %v516 = vadd.f32 0.0, %v515
      %v517 = vpop.f32.mrb[0].mxu0
      %v518 = vadd.f32 0.0, %v517
      %519 = vmatprep.mubr.bf16.mxu0 0
      %520 = vmatmul.mubr.bf16.gmra.mrb[0].mxu0 %v463
      %v521 = vpop.f32.mrb[0].mxu0
      %v522 = vadd.f32 0.0, %v521
      %v523 = vpop.f32.mrb[0].mxu0
      %v524 = vadd.f32 0.0, %v523
      %v525 = vpop.f32.mrb[0].mxu0
      %v526 = vadd.f32 0.0, %v525
      %v527 = vpop.f32.mrb[0].mxu0
      %v528 = vadd.f32 0.0, %v527
      %529 = vmatprep.mubr.bf16.mxu0 0
      %530 = vmatmul.mubr.bf16.gmra.mrb[0].mxu0 %v466
      %v531 = vpop.f32.mrb[0].mxu0
      %v532 = vadd.f32 0.0, %v531
      %v533 = vpop.f32.mrb[0].mxu0
      %v534 = vadd.f32 0.0, %v533
      %v535 = vpop.f32.mrb[0].mxu0
      %v536 = vadd.f32 0.0, %v535
      %v537 = vpop.f32.mrb[0].mxu0
      %v538 = vadd.f32 0.0, %v537
      %539 = vmatprep.mubr.bf16.mxu0 0
      %540 = vmatmul.mubr.bf16.gmra.mrb[0].mxu0 %v469
      %v541 = vpop.f32.mrb[0].mxu0
      %v542 = vadd.f32 0.0, %v541
      %v543 = vpop.f32.mrb[0].mxu0
      %v544 = vadd.f32 0.0, %v543
      %v545 = vpop.f32.mrb[0].mxu0
      %v546 = vadd.f32 0.0, %v545
      %v547 = vpop.f32.mrb[0].mxu0
      %v548 = vadd.f32 0.0, %v547
      %549 = vdwg.mxu0
      %v550 = vadd.f32 %v398, %v512
      %v551 = vadd.f32 %v400, %v514
      %v552 = vadd.f32 %v402, %v516
      %v553 = vadd.f32 %v404, %v518
      %v554 = vadd.f32 %v408, %v522
      %v555 = vadd.f32 %v410, %v524
      %v556 = vadd.f32 %v412, %v526
      %v557 = vadd.f32 %v414, %v528
      %v558 = vadd.f32 %v418, %v532
      %v559 = vadd.f32 %v420, %v534
      %v560 = vadd.f32 %v422, %v536
      %v561 = vadd.f32 %v424, %v538
      %v562 = vadd.f32 %v428, %v542
      %v563 = vadd.f32 %v430, %v544
      %v564 = vadd.f32 %v432, %v546
      %v565 = vadd.f32 %v434, %v548
      %v566 = vld [vmem:[%s2] sm:$0x3]
      %v568 = vlaneseq
      %v569 = vshrl.u32 %v568, 7
      %v570 = vsub.s32 0, %v569
      %v571 = vrot.slane %v566, %v570
      %v572 = vlaneseq
      %v573 = vshrl.u32 %v572, 7
      %v574 = vsub.s32 1, %v573
      %v575 = vrot.slane %v566, %v574
      %v578 = vadd.f32 %v550, %v571
      %v579 = vadd.f32 %v551, %v575
      %v580 = vadd.f32 %v552, %v571
      %v581 = vadd.f32 %v553, %v575
      %v582 = vadd.f32 %v554, %v571
      %v583 = vadd.f32 %v555, %v575
      %v584 = vadd.f32 %v556, %v571
      %v585 = vadd.f32 %v557, %v575
      %v586 = vadd.f32 %v558, %v571
      %v587 = vadd.f32 %v559, %v575
      %v588 = vadd.f32 %v560, %v571
      %v589 = vadd.f32 %v561, %v575
      %v590 = vadd.f32 %v562, %v571
      %v591 = vadd.f32 %v563, %v575
      %v592 = vadd.f32 %v564, %v571
      %v593 = vadd.f32 %v565, %v575
      %v594 = vxor.u32 %v578, 2147483648
      %v595 = vxor.u32 %v580, 2147483648
      %v596 = vxor.u32 %v582, 2147483648
      %v597 = vxor.u32 %v584, 2147483648
      %v598 = vxor.u32 %v586, 2147483648
      %v599 = vxor.u32 %v588, 2147483648
      %v600 = vxor.u32 %v590, 2147483648
      %v601 = vxor.u32 %v592, 2147483648
      %v602 = vmul.f32 %v594, 1.442695
      %v603 = vpow.pop %v602
      %v604 = vmul.f32 %v595, 1.442695
      %v605 = vpow.pop %v604
      %v606 = vmul.f32 %v596, 1.442695
      %v607 = vpow.pop %v606
      %v608 = vmul.f32 %v597, 1.442695
      %v609 = vpow.pop %v608
      %v610 = vmul.f32 %v598, 1.442695
      %v611 = vpow.pop %v610
      %v612 = vmul.f32 %v599, 1.442695
      %v613 = vpow.pop %v612
      %v614 = vmul.f32 %v600, 1.442695
      %v615 = vpow.pop %v614
      %v616 = vmul.f32 %v601, 1.442695
      %v617 = vpow.pop %v616
      %v618 = vadd.f32 %v603, 1.0
      %v619 = vadd.f32 %v605, 1.0
      %v620 = vadd.f32 %v607, 1.0
      %v621 = vadd.f32 %v609, 1.0
      %v622 = vadd.f32 %v611, 1.0
      %v623 = vadd.f32 %v613, 1.0
      %v624 = vadd.f32 %v615, 1.0
      %v625 = vadd.f32 %v617, 1.0
      %v626 = vrcp.pop %v618
      %v627 = vmul.f32 1.0, %v626
      %v628 = vrcp.pop %v619
      %v629 = vmul.f32 1.0, %v628
      %v630 = vrcp.pop %v620
      %v631 = vmul.f32 1.0, %v630
      %v632 = vrcp.pop %v621
      %v633 = vmul.f32 1.0, %v632
      %v634 = vrcp.pop %v622
      %v635 = vmul.f32 1.0, %v634
      %v636 = vrcp.pop %v623
      %v637 = vmul.f32 1.0, %v636
      %v638 = vrcp.pop %v624
      %v639 = vmul.f32 1.0, %v638
      %v640 = vrcp.pop %v625
      %v641 = vmul.f32 1.0, %v640
      %650 = vrot.lane.b32.xlu0 %v627, 64
      %v651 = vpop.permute.xlu0 %650
      %652 = vrot.lane.b32.xlu0 %v629, 64
      %v653 = vpop.permute.xlu0 %652
      %654 = vrot.lane.b32.xlu0 %v631, 64
      %v655 = vpop.permute.xlu0 %654
      %656 = vrot.lane.b32.xlu0 %v633, 64
      %v657 = vpop.permute.xlu0 %656
      %658 = vrot.lane.b32.xlu0 %v635, 64
      %v659 = vpop.permute.xlu0 %658
      %660 = vrot.lane.b32.xlu0 %v637, 64
      %v661 = vpop.permute.xlu0 %660
      %662 = vrot.lane.b32.xlu0 %v639, 64
      %v663 = vpop.permute.xlu0 %662
      %664 = vrot.lane.b32.xlu0 %v641, 64
      %v665 = vpop.permute.xlu0 %664
      %v674 = vadd.f32 %v578, %v651
      %v675 = vadd.f32 %v580, %v653
      %v676 = vadd.f32 %v582, %v655
      %v677 = vadd.f32 %v584, %v657
      %v678 = vadd.f32 %v586, %v659
      %v679 = vadd.f32 %v588, %v661
      %v680 = vadd.f32 %v590, %v663
      %v681 = vadd.f32 %v592, %v665
      %v682 = vadd.f32 %v674, %v579
      %v683 = vadd.f32 %v675, %v581
      %v684 = vadd.f32 %v676, %v583
      %v685 = vadd.f32 %v677, %v585
      %v686 = vadd.f32 %v678, %v587
      %v687 = vadd.f32 %v679, %v589
      %v688 = vadd.f32 %v680, %v591
      %v689 = vadd.f32 %v681, %v593
      %v690 = vmax.f32 %v682, 0.0
      %v691 = vmax.f32 %v683, 0.0
      %v692 = vmax.f32 %v684, 0.0
      %v693 = vmax.f32 %v685, 0.0
      %v694 = vmax.f32 %v686, 0.0
      %v695 = vmax.f32 %v687, 0.0
      %v696 = vmax.f32 %v688, 0.0
      %v697 = vmax.f32 %v689, 0.0
      %v698 = vpack.c.bf16 %v691, %v690
      %v699 = vpack.c.bf16 %v693, %v692
      %v700 = vpack.c.bf16 %v695, %v694
      %v701 = vpack.c.bf16 %v697, %v696
      %v702 = vld [vmem:[%s3] sm:$0xf]
      %v703 = vld [vmem:[%s3 + $0x4] sm:$0xf]
      %v704 = vld [vmem:[%s3 + $0x8] sm:$0xf]
      %v705 = vld [vmem:[%s3 + $0xc] sm:$0xf]
      %v706 = vld [vmem:[%s3 + $0x10] sm:$0xf]
      %v707 = vld [vmem:[%s3 + $0x14] sm:$0xf]
      %v708 = vld [vmem:[%s3 + $0x18] sm:$0xf]
      %v709 = vld [vmem:[%s3 + $0x1c] sm:$0xf]
      %v718 = vunpack.c.l.b16 %v702
      %v719 = vunpack.c.l.b16 %v703
      %v720 = vunpack.c.l.b16 %v704
      %v721 = vunpack.c.l.b16 %v705
      %v722 = vunpack.c.l.b16 %v706
      %v723 = vunpack.c.l.b16 %v707
      %v724 = vunpack.c.l.b16 %v708
      %v725 = vunpack.c.l.b16 %v709
      %v726 = vpack.c.b16 %v719, %v718
      %v727 = vpack.c.b16 %v721, %v720
      %v728 = vpack.c.b16 %v723, %v722
      %v729 = vpack.c.b16 %v725, %v724
      %vm734 = vcmask 523264
      %v736 = vsel %vm734, %v698, 0
      %v739 = vsel %vm734, %v699, 0
      %v742 = vsel %vm734, %v700, 0
      %v745 = vsel %vm734, %v701, 0
      %747 = vmatprep.subr.bf16.mxu0 0
      %748 = vmatpush1.bf16.msra.mxu0 %v726
      %749 = vmatprep.subr.bf16.mxu0 0
      %750 = vmatpush1.bf16.msra.mxu0 %v727
      %751 = vmatprep.subr.bf16.mxu0 0
      %752 = vmatpush1.bf16.msra.mxu0 %v728
      %753 = vmatprep.subr.bf16.mxu0 0
      %754 = vmatpush1.bf16.msra.mxu0 %v729
      %755 = vmatprep.subr.bf16.mxu0 0
      %756 = vmatpush1.bf16.msra.mxu0 0
      %757 = vmatprep.subr.bf16.mxu0 0
      %758 = vmatpush1.bf16.msra.mxu0 0
      %759 = vmatprep.subr.bf16.mxu0 0
      %760 = vmatpush1.bf16.msra.mxu0 0
      %761 = vmatprep.subr.bf16.mxu0 0
      %762 = vmatpush1.bf16.msra.mxu0 0
      %763 = vmatprep.subr.bf16.mxu0 0
      %764 = vmatpush1.bf16.msra.mxu0 0
      %765 = vmatprep.subr.bf16.mxu0 0
      %766 = vmatpush1.bf16.msra.mxu0 0
      %767 = vmatprep.subr.bf16.mxu0 0
      %768 = vmatpush1.bf16.msra.mxu0 0
      %769 = vmatprep.subr.bf16.mxu0 0
      %770 = vmatpush1.bf16.msra.mxu0 0
      %771 = vmatprep.subr.bf16.mxu0 0
      %772 = vmatpush1.bf16.msra.mxu0 0
      %773 = vmatprep.subr.bf16.mxu0 0
      %774 = vmatpush1.bf16.msra.mxu0 0
      %775 = vmatprep.subr.bf16.mxu0 0
      %776 = vmatpush1.bf16.msra.mxu0 0
      %777 = vmatprep.subr.bf16.mxu0 0
      %778 = vmatpush1.bf16.msra.mxu0 0
      %779 = vmatprep.mubr.bf16.mxu0 0
      %780 = vmatmul.mubr.bf16.gmra.mrb[0].mxu0 %v736
      %v781 = vpop.f32.mrb[0].mxu0
      %v782 = vadd.f32 0.0, %v781
      %v783 = vpop.f32.mrb[0].mxu0
      %v784 = vpop.f32.mrb[0].mxu0
      %v785 = vadd.f32 0.0, %v784
      %v786 = vpop.f32.mrb[0].mxu0
      %787 = vmatprep.mubr.bf16.mxu0 0
      %788 = vmatmul.mubr.bf16.gmra.mrb[0].mxu0 %v739
      %v789 = vpop.f32.mrb[0].mxu0
      %v790 = vadd.f32 0.0, %v789
      %v791 = vpop.f32.mrb[0].mxu0
      %v792 = vpop.f32.mrb[0].mxu0
      %v793 = vadd.f32 0.0, %v792
      %v794 = vpop.f32.mrb[0].mxu0
      %795 = vmatprep.mubr.bf16.mxu0 0
      %796 = vmatmul.mubr.bf16.gmra.mrb[0].mxu0 %v742
      %v797 = vpop.f32.mrb[0].mxu0
      %v798 = vadd.f32 0.0, %v797
      %v799 = vpop.f32.mrb[0].mxu0
      %v800 = vpop.f32.mrb[0].mxu0
      %v801 = vadd.f32 0.0, %v800
      %v802 = vpop.f32.mrb[0].mxu0
      %803 = vmatprep.mubr.bf16.mxu0 0
      %804 = vmatmul.mubr.bf16.gmra.mrb[0].mxu0 %v745
      %v805 = vpop.f32.mrb[0].mxu0
      %v806 = vadd.f32 0.0, %v805
      %v807 = vpop.f32.mrb[0].mxu0
      %v808 = vpop.f32.mrb[0].mxu0
      %v809 = vadd.f32 0.0, %v808
      %v810 = vpop.f32.mrb[0].mxu0
      %811 = vdwg.mxu0
      %vm812 = vcmask 130048
      %813 = vst.msk [vmem:[%s204] sm:$0xff] %vm812, %v782
      %814 = vst.msk [vmem:[%s204 + $0x8] sm:$0xff] %vm812, %v785
      %815 = vst.msk [vmem:[%s204 + $0x18] sm:$0xff] %vm812, %v790
      %816 = vst.msk [vmem:[%s204 + $0x20] sm:$0xff] %vm812, %v793
      %817 = vst.msk [vmem:[%s204 + $0x30] sm:$0xff] %vm812, %v798
      %818 = vst.msk [vmem:[%s204 + $0x38] sm:$0xff] %vm812, %v801
      %819 = vst.msk [vmem:[%s204 + $0x48] sm:$0xff] %vm812, %v806
      %820 = vst.msk [vmem:[%s204 + $0x50] sm:$0xff] %vm812, %v809
      %821 = vst.msk [vmem:[%s204 + $0x10] sm:$0xff] %vm812, 0.0
      %822 = vst.msk [vmem:[%s204 + $0x28] sm:$0xff] %vm812, 0.0
      %823 = vst.msk [vmem:[%s204 + $0x40] sm:$0xff] %vm812, 0.0
      %824 = vst.msk [vmem:[%s204 + $0x58] sm:$0xff] %vm812, 0.0
      %s825 = smul.u32 2, %s15
      %p826 = scmp.lt.s32.totalorder %s825, 7
      %s827 = scalar_select %p826, %s825, 7
      %s828 = smul.addr %s827, 6
      %s829 = smul.addr %s828, 8
      %s830 = scalar_lea.vmem %s4, %s829
      // Predicated region
      $region37: #{stgcn_forward.7} parent=35 // pred_check
        %p831 = pneg %p122
      $region38: #{stgcn_forward.7} parent=35 // pred_check_branch
        %833 = sbr.rel (%p831) target = $region40
      $region39: #{stgcn_forward.7} parent=35 // pred_region
        %s834 = smul.u32 2, %s15
      $region40: #{stgcn_forward.7} parent=35 // pred_fallthru
        _
    $region36: #{stgcn_forward.7} parent=5 // pred_fallthru
      _
    %p835 = scmp.le.s32.totalorder 2, %s10
    // Predicated region
    $region41: #{stgcn_forward.7} parent=5 // pred_check
      %p836 = pneg %p835
    $region42: #{stgcn_forward.7} parent=5 // pred_check_branch
      %838 = sbr.rel (%p836) target = $region44
    $region43: #{stgcn_forward.7} parent=5 // pred_region
      %s839 = ssub.s32 %s10, 2
      // Predicated region
      $region45: #{stgcn_forward.7} parent=43 // pred_check
        %p840 = pneg %p128
      $region46: #{stgcn_forward.7} parent=43 // pred_check_branch
        %842 = sbr.rel (%p840) target = $region48
      $region47: #{stgcn_forward.7} parent=43 // pred_region
        %s843 = smul.u32 2, %s16
        %p844 = scmp.lt.s32.totalorder %s843, 7
        %s845 = scalar_select %p844, %s843, 7
        %s846 = smul.addr %s845, 6
        %s847 = smul.addr %s846, 8
        %s848 = scalar_lea.vmem %s4, %s847
      $region48: #{stgcn_forward.7} parent=43 // pred_fallthru
        _
    $region44: #{stgcn_forward.7} parent=5 // pred_fallthru
      _
  $region6: #{stgcn_forward.7} parent=0 // loop_footer
    %s14 = sadd.s32 1, %s10
  $region7: #{stgcn_forward.7} parent=0 // loop_footer_branch
    %9 = sbr.rel target = $region3
  $region8: #{stgcn_forward.7} parent=0 // loop_exit
    _

// kernel: stgcn_forward.10
$region0: #{stgcn_forward.10}
  #allocation0 [shape = 'u32[]', space=smem, size = 0x4, offset = 0x4, fixed_abs, tag = 'smem constant byte address 0x4 - core index']
  #allocation1 [shape = 'u32[144,128]{1,0:T(1,128)}', space=vmem, size = 0x12000, scoped, tag = 'internal scratch']
  %s0 = inlined_call_operand.vmem [shape: f32[8,2,24,64], index: 0, kind: input, shape index: {}]
  %s1 = inlined_call_operand.vmem [shape: bf16[3,64,192], index: 1, kind: input, shape index: {}]
  %s2 = inlined_call_operand.vmem [shape: f32[1,192], index: 2, kind: input, shape index: {}]
  %s3 = inlined_call_operand.vmem [shape: bf16[64,16], index: 3, kind: input, shape index: {}]
  %s4 = inlined_call_operand.vmem [shape: f32[8,2,24,16], index: 4, kind: output, shape index: {}]
  %s5 = sld [smem:[#allocation0]]
  $region49: #{stgcn_forward.10} parent=0
    _
  %s7 = ssub.s32 1, %s5
  %s8 = scalar_select 0, %s7, %s5
  loop: start=0, step=1, limit=6
  $region2: #{stgcn_forward.10} parent=0 // loop_pre_header
    _
  $region3: #{stgcn_forward.10} parent=0 // loop_header
    %s10 = sphi 0, %s14
    %p11 = scmp.ge.s32.totalorder %s10, 6
    %s20 = sphi 0, %s22
    %s23 = sphi 0, %s20
    %s24 = sphi 0, %s23
    %s40 = sphi 0, %s24
    %s44 = sphi 0, %s44
    %s46 = sphi 0, %s44
    %s47 = sphi 0, %s46
    %s61 = sphi 0, %s47
    %s65 = sphi 0, %s65
    %s67 = sphi 0, %s65
    %s68 = sphi 0, %s67
    %s82 = sphi 0, %s68
    %s86 = sphi 0, %s86
    %s88 = sphi 0, %s86
    %s89 = sphi 0, %s88
    %s103 = sphi 0, %s89
    %s109 = sphi 0, %s111
    %s112 = sphi 0, %s109
    %s113 = sphi 0, %s112
    %s129 = sphi 0, %s113
  $region4: #{stgcn_forward.10} parent=0 // loop_header_branch
    %13 = sbr.rel (%p11) target = $region8
  $region5: #{stgcn_forward.10} parent=0 // loop_body
    %s15 = ssub.s32 %s10, 1
    %s16 = ssub.s32 %s10, 2
    %s17 = sadd.s32 %s10, 1
    %s18 = ssub.s32 %s10, %s17
    %p19 = scmp.eq.s32.totalorder %s18, 0
    %s21 = sadd.s32 %s20, 1
    %s22 = scalar_select %p19, %s20, %s21
    %p25 = pneg %p19
    %p26 = scmp.eq.s32.totalorder %s10, 3
    %p27 = por %p25, %p26
    %p28 = scmp.ne.s32.totalorder %s20, %s23
    %p29 = scmp.eq.s32.totalorder %s10, 0
    %p30 = por %p28, %p29
    %p31 = scmp.ne.s32.totalorder %s20, %s23
    %p32 = scmp.eq.s32.totalorder %s15, 3
    %p33 = por %p31, %p32
    %p34 = scmp.ne.s32.totalorder %s23, %s24
    %p35 = scmp.eq.s32.totalorder %s15, 0
    %p36 = por %p34, %p35
    %p37 = scmp.ne.s32.totalorder %s23, %s24
    %p38 = scmp.eq.s32.totalorder %s16, 3
    %p39 = por %p37, %p38
    %p41 = scmp.ne.s32.totalorder %s24, %s40
    %p42 = scmp.eq.s32.totalorder %s16, 0
    %p43 = por %p41, %p42
    %s45 = sadd.s32 %s44, 1
    %p48 = scmp.eq.s32.totalorder %s10, 3
    %p49 = scmp.ne.s32.totalorder %s44, %s46
    %p50 = scmp.eq.s32.totalorder %s10, 0
    %p51 = por %p49, %p50
    %p52 = scmp.ne.s32.totalorder %s44, %s46
    %p53 = scmp.eq.s32.totalorder %s15, 3
    %p54 = por %p52, %p53
    %p55 = scmp.ne.s32.totalorder %s46, %s47
    %p56 = scmp.eq.s32.totalorder %s15, 0
    %p57 = por %p55, %p56
    %p58 = scmp.ne.s32.totalorder %s46, %s47
    %p59 = scmp.eq.s32.totalorder %s16, 3
    %p60 = por %p58, %p59
    %p62 = scmp.ne.s32.totalorder %s47, %s61
    %p63 = scmp.eq.s32.totalorder %s16, 0
    %p64 = por %p62, %p63
    %s66 = sadd.s32 %s65, 1
    %p69 = scmp.eq.s32.totalorder %s10, 3
    %p70 = scmp.ne.s32.totalorder %s65, %s67
    %p71 = scmp.eq.s32.totalorder %s10, 0
    %p72 = por %p70, %p71
    %p73 = scmp.ne.s32.totalorder %s65, %s67
    %p74 = scmp.eq.s32.totalorder %s15, 3
    %p75 = por %p73, %p74
    %p76 = scmp.ne.s32.totalorder %s67, %s68
    %p77 = scmp.eq.s32.totalorder %s15, 0
    %p78 = por %p76, %p77
    %p79 = scmp.ne.s32.totalorder %s67, %s68
    %p80 = scmp.eq.s32.totalorder %s16, 3
    %p81 = por %p79, %p80
    %p83 = scmp.ne.s32.totalorder %s68, %s82
    %p84 = scmp.eq.s32.totalorder %s16, 0
    %p85 = por %p83, %p84
    %s87 = sadd.s32 %s86, 1
    %p90 = scmp.eq.s32.totalorder %s10, 3
    %p91 = scmp.ne.s32.totalorder %s86, %s88
    %p92 = scmp.eq.s32.totalorder %s10, 0
    %p93 = por %p91, %p92
    %p94 = scmp.ne.s32.totalorder %s86, %s88
    %p95 = scmp.eq.s32.totalorder %s15, 3
    %p96 = por %p94, %p95
    %p97 = scmp.ne.s32.totalorder %s88, %s89
    %p98 = scmp.eq.s32.totalorder %s15, 0
    %p99 = por %p97, %p98
    %p100 = scmp.ne.s32.totalorder %s88, %s89
    %p101 = scmp.eq.s32.totalorder %s16, 3
    %p102 = por %p100, %p101
    %p104 = scmp.ne.s32.totalorder %s89, %s103
    %p105 = scmp.eq.s32.totalorder %s16, 0
    %p106 = por %p104, %p105
    %s107 = ssub.s32 %s10, %s17
    %p108 = scmp.eq.s32.totalorder %s107, 0
    %s110 = sadd.s32 %s109, 1
    %s111 = scalar_select %p108, %s109, %s110
    %p114 = pneg %p108
    %p115 = scmp.eq.s32.totalorder %s10, 3
    %p116 = por %p114, %p115
    %p117 = scmp.ne.s32.totalorder %s109, %s112
    %p118 = scmp.eq.s32.totalorder %s10, 0
    %p119 = por %p117, %p118
    %p120 = scmp.ne.s32.totalorder %s109, %s112
    %p121 = scmp.eq.s32.totalorder %s15, 3
    %p122 = por %p120, %p121
    %p123 = scmp.ne.s32.totalorder %s112, %s113
    %p124 = scmp.eq.s32.totalorder %s15, 0
    %p125 = por %p123, %p124
    %p126 = scmp.ne.s32.totalorder %s112, %s113
    %p127 = scmp.eq.s32.totalorder %s16, 3
    %p128 = por %p126, %p127
    %p130 = scmp.ne.s32.totalorder %s113, %s129
    %p131 = scmp.eq.s32.totalorder %s16, 0
    %p132 = por %p130, %p131
    %p133 = scmp.le.s32.totalorder 1, %s10
    %p134 = scmp.lt.s32.totalorder %s10, 5
    %p135 = pnand %p133, %p134
    %p136 = pneg %p135
    // Predicated region
    $region9: #{stgcn_forward.10} parent=5 // pred_check
      _
    $region10: #{stgcn_forward.10} parent=5 // pred_check_branch
      %138 = sbr.rel (%p135) target = $region12
    $region11: #{stgcn_forward.10} parent=5 // pred_region
      %s139 = ssub.s32 %s10, 1
      // Predicated region
      $region13: #{stgcn_forward.10} parent=11 // pred_check
        %p140 = pneg %p57
      $region14: #{stgcn_forward.10} parent=11 // pred_check_branch
        %142 = sbr.rel (%p140) target = $region16
      $region15: #{stgcn_forward.10} parent=11 // pred_region
        _
      $region16: #{stgcn_forward.10} parent=11 // pred_fallthru
        _
      // Predicated region
      $region17: #{stgcn_forward.10} parent=11 // pred_check
        %p143 = pneg %p78
      $region18: #{stgcn_forward.10} parent=11 // pred_check_branch
        %145 = sbr.rel (%p143) target = $region20
      $region19: #{stgcn_forward.10} parent=11 // pred_region
        _
      $region20: #{stgcn_forward.10} parent=11 // pred_fallthru
        _
      // Predicated region
      $region21: #{stgcn_forward.10} parent=11 // pred_check
        %p146 = pneg %p99
      $region22: #{stgcn_forward.10} parent=11 // pred_check_branch
        %148 = sbr.rel (%p146) target = $region24
      $region23: #{stgcn_forward.10} parent=11 // pred_region
        _
      $region24: #{stgcn_forward.10} parent=11 // pred_fallthru
        _
    $region12: #{stgcn_forward.10} parent=5 // pred_fallthru
      _
    %p149 = scmp.lt.s32.totalorder %s10, 4
    // Predicated region
    $region25: #{stgcn_forward.10} parent=5 // pred_check
      %p150 = pneg %p149
    $region26: #{stgcn_forward.10} parent=5 // pred_check_branch
      %152 = sbr.rel (%p150) target = $region28
    $region27: #{stgcn_forward.10} parent=5 // pred_region
      // Predicated region
      $region29: #{stgcn_forward.10} parent=27 // pred_check
        %p153 = pneg %p30
      $region30: #{stgcn_forward.10} parent=27 // pred_check_branch
        %155 = sbr.rel (%p153) target = $region32
      $region31: #{stgcn_forward.10} parent=27 // pred_region
        %s156 = smul.u32 2, %s10
        %p157 = scmp.lt.s32.totalorder %s156, 7
        %s158 = scalar_select %p157, %s156, 7
        %s159 = smul.addr %s158, 6
        %s160 = smul.addr %s159, 8
        %s161 = scalar_lea.vmem %s0, %s160
        %s162 = smul.u32 2, %s10
      $region32: #{stgcn_forward.10} parent=27 // pred_fallthru
        _
    $region28: #{stgcn_forward.10} parent=5 // pred_fallthru
      _
    %p163 = scmp.le.s32.totalorder 1, %s10
    %p164 = scmp.lt.s32.totalorder %s10, 5
    %p165 = pnand %p163, %p164
    %p166 = pneg %p165
    // Predicated region
    $region33: #{stgcn_forward.10} parent=5 // pred_check
      _
    $region34: #{stgcn_forward.10} parent=5 // pred_check_branch
      %168 = sbr.rel (%p165) target = $region36
    $region35: #{stgcn_forward.10} parent=5 // pred_region
      %s169 = ssub.s32 %s10, 1
      %s170 = smul.u32 2, %s15
      %p171 = scmp.lt.s32.totalorder %s170, 7
      %s172 = scalar_select %p171, %s170, 7
      %s173 = smul.addr %s172, 6
      %s174 = smul.addr %s173, 8
      %s175 = scalar_lea.vmem %s0, %s174
      %p176 = pneg %p36
      %p177 = pneg %p33
      %p178 = pneg %p57
      %p179 = pneg %p54
      %p180 = pneg %p78
      %p181 = pneg %p75
      %p182 = pneg %p99
      %p183 = pneg %p96
      %p184 = pneg %p125
      %p185 = pneg %p122
      %s186 = smul.u32 2, %s15
      %p187 = scmp.lt.s32.totalorder %s186, 7
      %s188 = scalar_select %p187, %s186, 7
      %s189 = smul.addr %s188, 6
      %s190 = smul.addr %s189, 8
      %s191 = scalar_lea.vmem %s4, %s190
      %s192 = smul.u32 2, %s15
      %p193 = scmp.lt.s32.totalorder %s192, 7
      %s194 = scalar_select %p193, %s192, 7
      %s195 = smul.addr %s194, 6
      %s196 = smul.addr %s195, 8
      %s197 = scalar_lea.vmem %s0, %s196
      %s198 = smul.u32 2, %s15
      %s199 = smul.u32 2, %s15
      %p200 = scmp.lt.s32.totalorder %s199, 7
      %s201 = scalar_select %p200, %s199, 7
      %s202 = smul.addr %s201, 6
      %s203 = smul.addr %s202, 8
      %s204 = scalar_lea.vmem %s4, %s203
      %s205 = smul.u32 2, %s15
      %v207 = vld [vmem:[%s197] sm:$0xff]
      %v208 = vld [vmem:[%s197 + $0x8] sm:$0xff]
      %v209 = vld [vmem:[%s197 + $0x18] sm:$0xff]
      %v210 = vld [vmem:[%s197 + $0x20] sm:$0xff]
      %v211 = vld [vmem:[%s197 + $0x30] sm:$0xff]
      %v212 = vld [vmem:[%s197 + $0x38] sm:$0xff]
      %v213 = vld [vmem:[%s197 + $0x48] sm:$0xff]
      %v214 = vld [vmem:[%s197 + $0x50] sm:$0xff]
      %v215 = vpack.c.bf16 %v208, %v207
      %v216 = vpack.c.bf16 %v210, %v209
      %v217 = vpack.c.bf16 %v212, %v211
      %v218 = vpack.c.bf16 %v214, %v213
      %v219 = vld [vmem:[%s1] sm:$0xff]
      %v220 = vld [vmem:[%s1 + $0x8] sm:$0xff]
      %v221 = vld [vmem:[%s1 + $0x10] sm:$0xff]
      %v222 = vld [vmem:[%s1 + $0x18] sm:$0xff]
      %v223 = vld [vmem:[%s1 + $0x20] sm:$0xff]
      %v224 = vld [vmem:[%s1 + $0x28] sm:$0xff]
      %v225 = vld [vmem:[%s1 + $0x30] sm:$0xff]
      %v226 = vld [vmem:[%s1 + $0x38] sm:$0xff]
      %v227 = vld [vmem:[%s197 + $0x1] sm:$0xff]
      %v228 = vld [vmem:[%s197 + $0x9] sm:$0xff]
      %v229 = vld [vmem:[%s197 + $0x19] sm:$0xff]
      %v230 = vld [vmem:[%s197 + $0x21] sm:$0xff]
      %v231 = vld [vmem:[%s197 + $0x31] sm:$0xff]
      %v232 = vld [vmem:[%s197 + $0x39] sm:$0xff]
      %v233 = vld [vmem:[%s197 + $0x49] sm:$0xff]
      %v234 = vld [vmem:[%s197 + $0x51] sm:$0xff]
      %v235 = vpack.c.bf16 %v228, %v227
      %v236 = vpack.c.bf16 %v230, %v229
      %v237 = vpack.c.bf16 %v232, %v231
      %v238 = vpack.c.bf16 %v234, %v233
      %s239 = scalar_lea.vmem %s1, 64
      %v240 = vld [vmem:[%s239] sm:$0xff]
      %v241 = vld [vmem:[%s239 + $0x8] sm:$0xff]
      %v242 = vld [vmem:[%s239 + $0x10] sm:$0xff]
      %v243 = vld [vmem:[%s239 + $0x18] sm:$0xff]
      %v244 = vld [vmem:[%s239 + $0x20] sm:$0xff]
      %v245 = vld [vmem:[%s239 + $0x28] sm:$0xff]
      %v246 = vld [vmem:[%s239 + $0x30] sm:$0xff]
      %v247 = vld [vmem:[%s239 + $0x38] sm:$0xff]
      %v256 = vunpack.c.l.b16 %v240
      %v257 = vunpack.c.h.b16 %v240
      %v258 = vunpack.c.l.b16 %v241
      %v259 = vunpack.c.h.b16 %v241
      %v260 = vunpack.c.l.b16 %v242
      %v261 = vunpack.c.h.b16 %v242
      %v262 = vunpack.c.l.b16 %v243
      %v263 = vunpack.c.h.b16 %v243
      %v264 = vunpack.c.l.b16 %v244
      %v265 = vunpack.c.h.b16 %v244
      %v266 = vunpack.c.l.b16 %v245
      %v267 = vunpack.c.h.b16 %v245
      %v268 = vunpack.c.l.b16 %v246
      %v269 = vunpack.c.h.b16 %v246
      %v270 = vunpack.c.l.b16 %v247
      %v271 = vunpack.c.h.b16 %v247
      %v272 = vpack.c.b16 %v258, %v256
      %v273 = vpack.c.b16 %v259, %v257
      %v274 = vpack.c.b16 %v262, %v260
      %v275 = vpack.c.b16 %v263, %v261
      %v276 = vpack.c.b16 %v266, %v264
      %v277 = vpack.c.b16 %v267, %v265
      %v278 = vpack.c.b16 %v270, %v268
      %v279 = vpack.c.b16 %v271, %v269
      %vm288 = vcmask 523264
      %v290 = vsel %vm288, %v235, 0
      %v293 = vsel %vm288, %v236, 0
      %v296 = vsel %vm288, %v237, 0
      %v299 = vsel %vm288, %v238, 0
      %301 = vmatprep.subr.bf16.mxu0 %v273
      %302 = vmatpush1.bf16.msra.mxu0 %v272
      %303 = vmatprep.subr.bf16.mxu0 %v275
      %304 = vmatpush1.bf16.msra.mxu0 %v274
      %305 = vmatprep.subr.bf16.mxu0 %v277
      %306 = vmatpush1.bf16.msra.mxu0 %v276
      %307 = vmatprep.subr.bf16.mxu0 %v279
      %308 = vmatpush1.bf16.msra.mxu0 %v278
      %309 = vmatprep.subr.bf16.mxu0 0
      %310 = vmatpush1.bf16.msra.mxu0 0
      %311 = vmatprep.subr.bf16.mxu0 0
      %312 = vmatpush1.bf16.msra.mxu0 0
      %313 = vmatprep.subr.bf16.mxu0 0
      %314 = vmatpush1.bf16.msra.mxu0 0
      %315 = vmatprep.subr.bf16.mxu0 0
      %316 = vmatpush1.bf16.msra.mxu0 0
      %317 = vmatprep.subr.bf16.mxu0 0
      %318 = vmatpush1.bf16.msra.mxu0 0
      %319 = vmatprep.subr.bf16.mxu0 0
      %320 = vmatpush1.bf16.msra.mxu0 0
      %321 = vmatprep.subr.bf16.mxu0 0
      %322 = vmatpush1.bf16.msra.mxu0 0
      %323 = vmatprep.subr.bf16.mxu0 0
      %324 = vmatpush1.bf16.msra.mxu0 0
      %325 = vmatprep.subr.bf16.mxu0 0
      %326 = vmatpush1.bf16.msra.mxu0 0
      %327 = vmatprep.subr.bf16.mxu0 0
      %328 = vmatpush1.bf16.msra.mxu0 0
      %329 = vmatprep.subr.bf16.mxu0 0
      %330 = vmatpush1.bf16.msra.mxu0 0
      %331 = vmatprep.subr.bf16.mxu0 0
      %332 = vmatpush1.bf16.msra.mxu0 0
      %333 = vmatprep.mubr.bf16.mxu0 0
      %334 = vmatmul.mubr.bf16.gmra.mrb[0].mxu0 %v290
      %v335 = vpop.f32.mrb[0].mxu0
      %v336 = vadd.f32 0.0, %v335
      %v337 = vpop.f32.mrb[0].mxu0
      %v338 = vadd.f32 0.0, %v337
      %v339 = vpop.f32.mrb[0].mxu0
      %v340 = vadd.f32 0.0, %v339
      %v341 = vpop.f32.mrb[0].mxu0
      %v342 = vadd.f32 0.0, %v341
      %343 = vmatprep.mubr.bf16.mxu0 0
      %344 = vmatmul.mubr.bf16.gmra.mrb[0].mxu0 %v293
      %v345 = vpop.f32.mrb[0].mxu0
      %v346 = vadd.f32 0.0, %v345
      %v347 = vpop.f32.mrb[0].mxu0
      %v348 = vadd.f32 0.0, %v347
      %v349 = vpop.f32.mrb[0].mxu0
      %v350 = vadd.f32 0.0, %v349
      %v351 = vpop.f32.mrb[0].mxu0
      %v352 = vadd.f32 0.0, %v351
      %353 = vmatprep.mubr.bf16.mxu0 0
      %354 = vmatmul.mubr.bf16.gmra.mrb[0].mxu0 %v296
      %v355 = vpop.f32.mrb[0].mxu0
      %v356 = vadd.f32 0.0, %v355
      %v357 = vpop.f32.mrb[0].mxu0
      %v358 = vadd.f32 0.0, %v357
      %v359 = vpop.f32.mrb[0].mxu0
      %v360 = vadd.f32 0.0, %v359
      %v361 = vpop.f32.mrb[0].mxu0
      %v362 = vadd.f32 0.0, %v361
      %363 = vmatprep.mubr.bf16.mxu0 0
      %364 = vmatmul.mubr.bf16.gmra.mrb[0].mxu0 %v299
      %v365 = vpop.f32.mrb[0].mxu0
      %v366 = vadd.f32 0.0, %v365
      %v367 = vpop.f32.mrb[0].mxu0
      %v368 = vadd.f32 0.0, %v367
      %v369 = vpop.f32.mrb[0].mxu0
      %v370 = vadd.f32 0.0, %v369
      %v371 = vpop.f32.mrb[0].mxu0
      %v372 = vadd.f32 0.0, %v371
      %373 = vdwg.mxu0
      %v382 = vunpack.c.l.b16 %v219
      %v383 = vunpack.c.h.b16 %v219
      %v384 = vunpack.c.l.b16 %v220
      %v385 = vunpack.c.h.b16 %v220
      %v386 = vunpack.c.l.b16 %v221
      %v387 = vunpack.c.h.b16 %v221
      %v388 = vunpack.c.l.b16 %v222
      %v389 = vunpack.c.h.b16 %v222
      %v390 = vunpack.c.l.b16 %v223
      %v391 = vunpack.c.h.b16 %v223
      %v392 = vunpack.c.l.b16 %v224
      %v393 = vunpack.c.h.b16 %v224
      %v394 = vunpack.c.l.b16 %v225
      %v395 = vunpack.c.h.b16 %v225
      %v396 = vunpack.c.l.b16 %v226
      %v397 = vunpack.c.h.b16 %v226
      %v398 = vpack.c.b16 %v384, %v382
      %v399 = vpack.c.b16 %v385, %v383
      %v400 = vpack.c.b16 %v388, %v386
      %v401 = vpack.c.b16 %v389, %v387
      %v402 = vpack.c.b16 %v392, %v390
      %v403 = vpack.c.b16 %v393, %v391
      %v404 = vpack.c.b16 %v396, %v394
      %v405 = vpack.c.b16 %v397, %v395
      %v415 = vsel %vm288, %v215, 0
      %v418 = vsel %vm288, %v216, 0
      %v421 = vsel %vm288, %v217, 0
      %v424 = vsel %vm288, %v218, 0
      %426 = vmatprep.subr.bf16.mxu0 %v399
      %427 = vmatpush1.bf16.msra.mxu0 %v398
      %428 = vmatprep.subr.bf16.mxu0 %v401
      %429 = vmatpush1.bf16.msra.mxu0 %v400
      %430 = vmatprep.subr.bf16.mxu0 %v403
      %431 = vmatpush1.bf16.msra.mxu0 %v402
      %432 = vmatprep.subr.bf16.mxu0 %v405
      %433 = vmatpush1.bf16.msra.mxu0 %v404
      %434 = vmatprep.subr.bf16.mxu0 0
      %435 = vmatpush1.bf16.msra.mxu0 0
      %436 = vmatprep.subr.bf16.mxu0 0
      %437 = vmatpush1.bf16.msra.mxu0 0
      %438 = vmatprep.subr.bf16.mxu0 0
      %439 = vmatpush1.bf16.msra.mxu0 0
      %440 = vmatprep.subr.bf16.mxu0 0
      %441 = vmatpush1.bf16.msra.mxu0 0
      %442 = vmatprep.subr.bf16.mxu0 0
      %443 = vmatpush1.bf16.msra.mxu0 0
      %444 = vmatprep.subr.bf16.mxu0 0
      %445 = vmatpush1.bf16.msra.mxu0 0
      %446 = vmatprep.subr.bf16.mxu0 0
      %447 = vmatpush1.bf16.msra.mxu0 0
      %448 = vmatprep.subr.bf16.mxu0 0
      %449 = vmatpush1.bf16.msra.mxu0 0
      %450 = vmatprep.subr.bf16.mxu0 0
      %451 = vmatpush1.bf16.msra.mxu0 0
      %452 = vmatprep.subr.bf16.mxu0 0
      %453 = vmatpush1.bf16.msra.mxu0 0
      %454 = vmatprep.subr.bf16.mxu0 0
      %455 = vmatpush1.bf16.msra.mxu0 0
      %456 = vmatprep.subr.bf16.mxu0 0
      %457 = vmatpush1.bf16.msra.mxu0 0
      %458 = vmatprep.mubr.bf16.mxu0 0
      %459 = vmatmul.mubr.bf16.gmra.mrb[0].mxu0 %v415
      %v460 = vpop.f32.mrb[0].mxu0
      %v461 = vadd.f32 %v336, %v460
      %v462 = vpop.f32.mrb[0].mxu0
      %v463 = vadd.f32 %v338, %v462
      %v464 = vpop.f32.mrb[0].mxu0
      %v465 = vadd.f32 %v340, %v464
      %v466 = vpop.f32.mrb[0].mxu0
      %v467 = vadd.f32 %v342, %v466
      %468 = vmatprep.mubr.bf16.mxu0 0
      %469 = vmatmul.mubr.bf16.gmra.mrb[0].mxu0 %v418
      %v470 = vpop.f32.mrb[0].mxu0
      %v471 = vadd.f32 %v346, %v470
      %v472 = vpop.f32.mrb[0].mxu0
      %v473 = vadd.f32 %v348, %v472
      %v474 = vpop.f32.mrb[0].mxu0
      %v475 = vadd.f32 %v350, %v474
      %v476 = vpop.f32.mrb[0].mxu0
      %v477 = vadd.f32 %v352, %v476
      %478 = vmatprep.mubr.bf16.mxu0 0
      %479 = vmatmul.mubr.bf16.gmra.mrb[0].mxu0 %v421
      %v480 = vpop.f32.mrb[0].mxu0
      %v481 = vadd.f32 %v356, %v480
      %v482 = vpop.f32.mrb[0].mxu0
      %v483 = vadd.f32 %v358, %v482
      %v484 = vpop.f32.mrb[0].mxu0
      %v485 = vadd.f32 %v360, %v484
      %v486 = vpop.f32.mrb[0].mxu0
      %v487 = vadd.f32 %v362, %v486
      %488 = vmatprep.mubr.bf16.mxu0 0
      %489 = vmatmul.mubr.bf16.gmra.mrb[0].mxu0 %v424
      %v490 = vpop.f32.mrb[0].mxu0
      %v491 = vadd.f32 %v366, %v490
      %v492 = vpop.f32.mrb[0].mxu0
      %v493 = vadd.f32 %v368, %v492
      %v494 = vpop.f32.mrb[0].mxu0
      %v495 = vadd.f32 %v370, %v494
      %v496 = vpop.f32.mrb[0].mxu0
      %v497 = vadd.f32 %v372, %v496
      %498 = vdwg.mxu0
      %v499 = vld [vmem:[%s197 + $0x2] sm:$0xff]
      %v500 = vld [vmem:[%s197 + $0xa] sm:$0xff]
      %v501 = vld [vmem:[%s197 + $0x1a] sm:$0xff]
      %v502 = vld [vmem:[%s197 + $0x22] sm:$0xff]
      %v503 = vld [vmem:[%s197 + $0x32] sm:$0xff]
      %v504 = vld [vmem:[%s197 + $0x3a] sm:$0xff]
      %v505 = vld [vmem:[%s197 + $0x4a] sm:$0xff]
      %v506 = vld [vmem:[%s197 + $0x52] sm:$0xff]
      %v507 = vpack.c.bf16 %v500, %v499
      %v508 = vpack.c.bf16 %v502, %v501
      %v509 = vpack.c.bf16 %v504, %v503
      %v510 = vpack.c.bf16 %v506, %v505
      %s511 = scalar_lea.vmem %s1, 128
      %v512 = vld [vmem:[%s511] sm:$0xff]
      %v513 = vld [vmem:[%s511 + $0x8] sm:$0xff]
      %v514 = vld [vmem:[%s511 + $0x10] sm:$0xff]
      %v515 = vld [vmem:[%s511 + $0x18] sm:$0xff]
      %v516 = vld [vmem:[%s511 + $0x20] sm:$0xff]
      %v517 = vld [vmem:[%s511 + $0x28] sm:$0xff]
      %v518 = vld [vmem:[%s511 + $0x30] sm:$0xff]
      %v519 = vld [vmem:[%s511 + $0x38] sm:$0xff]
      %v528 = vunpack.c.l.b16 %v512
      %v529 = vunpack.c.h.b16 %v512
      %v530 = vunpack.c.l.b16 %v513
      %v531 = vunpack.c.h.b16 %v513
      %v532 = vunpack.c.l.b16 %v514
      %v533 = vunpack.c.h.b16 %v514
      %v534 = vunpack.c.l.b16 %v515
      %v535 = vunpack.c.h.b16 %v515
      %v536 = vunpack.c.l.b16 %v516
      %v537 = vunpack.c.h.b16 %v516
      %v538 = vunpack.c.l.b16 %v517
      %v539 = vunpack.c.h.b16 %v517
      %v540 = vunpack.c.l.b16 %v518
      %v541 = vunpack.c.h.b16 %v518
      %v542 = vunpack.c.l.b16 %v519
      %v543 = vunpack.c.h.b16 %v519
      %v544 = vpack.c.b16 %v530, %v528
      %v545 = vpack.c.b16 %v531, %v529
      %v546 = vpack.c.b16 %v534, %v532
      %v547 = vpack.c.b16 %v535, %v533
      %v548 = vpack.c.b16 %v538, %v536
      %v549 = vpack.c.b16 %v539, %v537
      %v550 = vpack.c.b16 %v542, %v540
      %v551 = vpack.c.b16 %v543, %v541
      %v561 = vsel %vm288, %v507, 0
      %v564 = vsel %vm288, %v508, 0
      %v567 = vsel %vm288, %v509, 0
      %v570 = vsel %vm288, %v510, 0
      %572 = vmatprep.subr.bf16.mxu0 %v545
      %573 = vmatpush1.bf16.msra.mxu0 %v544
      %574 = vmatprep.subr.bf16.mxu0 %v547
      %575 = vmatpush1.bf16.msra.mxu0 %v546
      %576 = vmatprep.subr.bf16.mxu0 %v549
      %577 = vmatpush1.bf16.msra.mxu0 %v548
      %578 = vmatprep.subr.bf16.mxu0 %v551
      %579 = vmatpush1.bf16.msra.mxu0 %v550
      %580 = vmatprep.subr.bf16.mxu0 0
      %581 = vmatpush1.bf16.msra.mxu0 0
      %582 = vmatprep.subr.bf16.mxu0 0
      %583 = vmatpush1.bf16.msra.mxu0 0
      %584 = vmatprep.subr.bf16.mxu0 0
      %585 = vmatpush1.bf16.msra.mxu0 0
      %586 = vmatprep.subr.bf16.mxu0 0
      %587 = vmatpush1.bf16.msra.mxu0 0
      %588 = vmatprep.subr.bf16.mxu0 0
      %589 = vmatpush1.bf16.msra.mxu0 0
      %590 = vmatprep.subr.bf16.mxu0 0
      %591 = vmatpush1.bf16.msra.mxu0 0
      %592 = vmatprep.subr.bf16.mxu0 0
      %593 = vmatpush1.bf16.msra.mxu0 0
      %594 = vmatprep.subr.bf16.mxu0 0
      %595 = vmatpush1.bf16.msra.mxu0 0
      %596 = vmatprep.subr.bf16.mxu0 0
      %597 = vmatpush1.bf16.msra.mxu0 0
      %598 = vmatprep.subr.bf16.mxu0 0
      %599 = vmatpush1.bf16.msra.mxu0 0
      %600 = vmatprep.subr.bf16.mxu0 0
      %601 = vmatpush1.bf16.msra.mxu0 0
      %602 = vmatprep.subr.bf16.mxu0 0
      %603 = vmatpush1.bf16.msra.mxu0 0
      %604 = vmatprep.mubr.bf16.mxu0 0
      %605 = vmatmul.mubr.bf16.gmra.mrb[0].mxu0 %v561
      %v606 = vpop.f32.mrb[0].mxu0
      %v607 = vadd.f32 0.0, %v606
      %v608 = vpop.f32.mrb[0].mxu0
      %v609 = vadd.f32 0.0, %v608
      %v610 = vpop.f32.mrb[0].mxu0
      %v611 = vadd.f32 0.0, %v610
      %v612 = vpop.f32.mrb[0].mxu0
      %v613 = vadd.f32 0.0, %v612
      %614 = vmatprep.mubr.bf16.mxu0 0
      %615 = vmatmul.mubr.bf16.gmra.mrb[0].mxu0 %v564
      %v616 = vpop.f32.mrb[0].mxu0
      %v617 = vadd.f32 0.0, %v616
      %v618 = vpop.f32.mrb[0].mxu0
      %v619 = vadd.f32 0.0, %v618
      %v620 = vpop.f32.mrb[0].mxu0
      %v621 = vadd.f32 0.0, %v620
      %v622 = vpop.f32.mrb[0].mxu0
      %v623 = vadd.f32 0.0, %v622
      %624 = vmatprep.mubr.bf16.mxu0 0
      %625 = vmatmul.mubr.bf16.gmra.mrb[0].mxu0 %v567
      %v626 = vpop.f32.mrb[0].mxu0
      %v627 = vadd.f32 0.0, %v626
      %v628 = vpop.f32.mrb[0].mxu0
      %v629 = vadd.f32 0.0, %v628
      %v630 = vpop.f32.mrb[0].mxu0
      %v631 = vadd.f32 0.0, %v630
      %v632 = vpop.f32.mrb[0].mxu0
      %v633 = vadd.f32 0.0, %v632
      %634 = vmatprep.mubr.bf16.mxu0 0
      %635 = vmatmul.mubr.bf16.gmra.mrb[0].mxu0 %v570
      %v636 = vpop.f32.mrb[0].mxu0
      %v637 = vadd.f32 0.0, %v636
      %v638 = vpop.f32.mrb[0].mxu0
      %v639 = vadd.f32 0.0, %v638
      %v640 = vpop.f32.mrb[0].mxu0
      %v641 = vadd.f32 0.0, %v640
      %v642 = vpop.f32.mrb[0].mxu0
      %v643 = vadd.f32 0.0, %v642
      %644 = vdwg.mxu0
      %v645 = vadd.f32 %v461, %v607
      %v646 = vadd.f32 %v463, %v609
      %v647 = vadd.f32 %v465, %v611
      %v648 = vadd.f32 %v467, %v613
      %v649 = vadd.f32 %v471, %v617
      %v650 = vadd.f32 %v473, %v619
      %v651 = vadd.f32 %v475, %v621
      %v652 = vadd.f32 %v477, %v623
      %v653 = vadd.f32 %v481, %v627
      %v654 = vadd.f32 %v483, %v629
      %v655 = vadd.f32 %v485, %v631
      %v656 = vadd.f32 %v487, %v633
      %v657 = vadd.f32 %v491, %v637
      %v658 = vadd.f32 %v493, %v639
      %v659 = vadd.f32 %v495, %v641
      %v660 = vadd.f32 %v497, %v643
      %v661 = vld [vmem:[%s2] sm:$0x3]
      %v663 = vlaneseq
      %v664 = vshrl.u32 %v663, 7
      %v665 = vsub.s32 0, %v664
      %v666 = vrot.slane %v661, %v665
      %v667 = vlaneseq
      %v668 = vshrl.u32 %v667, 7
      %v669 = vsub.s32 1, %v668
      %v670 = vrot.slane %v661, %v669
      %v673 = vadd.f32 %v645, %v666
      %v674 = vadd.f32 %v646, %v670
      %v675 = vadd.f32 %v647, %v666
      %v676 = vadd.f32 %v648, %v670
      %v677 = vadd.f32 %v649, %v666
      %v678 = vadd.f32 %v650, %v670
      %v679 = vadd.f32 %v651, %v666
      %v680 = vadd.f32 %v652, %v670
      %v681 = vadd.f32 %v653, %v666
      %v682 = vadd.f32 %v654, %v670
      %v683 = vadd.f32 %v655, %v666
      %v684 = vadd.f32 %v656, %v670
      %v685 = vadd.f32 %v657, %v666
      %v686 = vadd.f32 %v658, %v670
      %v687 = vadd.f32 %v659, %v666
      %v688 = vadd.f32 %v660, %v670
      %v689 = vxor.u32 %v673, 2147483648
      %v690 = vxor.u32 %v675, 2147483648
      %v691 = vxor.u32 %v677, 2147483648
      %v692 = vxor.u32 %v679, 2147483648
      %v693 = vxor.u32 %v681, 2147483648
      %v694 = vxor.u32 %v683, 2147483648
      %v695 = vxor.u32 %v685, 2147483648
      %v696 = vxor.u32 %v687, 2147483648
      %v697 = vmul.f32 %v689, 1.442695
      %v698 = vpow.pop %v697
      %v699 = vmul.f32 %v690, 1.442695
      %v700 = vpow.pop %v699
      %v701 = vmul.f32 %v691, 1.442695
      %v702 = vpow.pop %v701
      %v703 = vmul.f32 %v692, 1.442695
      %v704 = vpow.pop %v703
      %v705 = vmul.f32 %v693, 1.442695
      %v706 = vpow.pop %v705
      %v707 = vmul.f32 %v694, 1.442695
      %v708 = vpow.pop %v707
      %v709 = vmul.f32 %v695, 1.442695
      %v710 = vpow.pop %v709
      %v711 = vmul.f32 %v696, 1.442695
      %v712 = vpow.pop %v711
      %v713 = vadd.f32 %v698, 1.0
      %v714 = vadd.f32 %v700, 1.0
      %v715 = vadd.f32 %v702, 1.0
      %v716 = vadd.f32 %v704, 1.0
      %v717 = vadd.f32 %v706, 1.0
      %v718 = vadd.f32 %v708, 1.0
      %v719 = vadd.f32 %v710, 1.0
      %v720 = vadd.f32 %v712, 1.0
      %v721 = vrcp.pop %v713
      %v722 = vmul.f32 1.0, %v721
      %v723 = vrcp.pop %v714
      %v724 = vmul.f32 1.0, %v723
      %v725 = vrcp.pop %v715
      %v726 = vmul.f32 1.0, %v725
      %v727 = vrcp.pop %v716
      %v728 = vmul.f32 1.0, %v727
      %v729 = vrcp.pop %v717
      %v730 = vmul.f32 1.0, %v729
      %v731 = vrcp.pop %v718
      %v732 = vmul.f32 1.0, %v731
      %v733 = vrcp.pop %v719
      %v734 = vmul.f32 1.0, %v733
      %v735 = vrcp.pop %v720
      %v736 = vmul.f32 1.0, %v735
      %745 = vrot.lane.b32.xlu0 %v722, 64
      %v746 = vpop.permute.xlu0 %745
      %747 = vrot.lane.b32.xlu0 %v724, 64
      %v748 = vpop.permute.xlu0 %747
      %749 = vrot.lane.b32.xlu0 %v726, 64
      %v750 = vpop.permute.xlu0 %749
      %751 = vrot.lane.b32.xlu0 %v728, 64
      %v752 = vpop.permute.xlu0 %751
      %753 = vrot.lane.b32.xlu0 %v730, 64
      %v754 = vpop.permute.xlu0 %753
      %755 = vrot.lane.b32.xlu0 %v732, 64
      %v756 = vpop.permute.xlu0 %755
      %757 = vrot.lane.b32.xlu0 %v734, 64
      %v758 = vpop.permute.xlu0 %757
      %759 = vrot.lane.b32.xlu0 %v736, 64
      %v760 = vpop.permute.xlu0 %759
      %v769 = vadd.f32 %v673, %v746
      %v770 = vadd.f32 %v675, %v748
      %v771 = vadd.f32 %v677, %v750
      %v772 = vadd.f32 %v679, %v752
      %v773 = vadd.f32 %v681, %v754
      %v774 = vadd.f32 %v683, %v756
      %v775 = vadd.f32 %v685, %v758
      %v776 = vadd.f32 %v687, %v760
      %v777 = vadd.f32 %v769, %v674
      %v778 = vadd.f32 %v770, %v676
      %v779 = vadd.f32 %v771, %v678
      %v780 = vadd.f32 %v772, %v680
      %v781 = vadd.f32 %v773, %v682
      %v782 = vadd.f32 %v774, %v684
      %v783 = vadd.f32 %v775, %v686
      %v784 = vadd.f32 %v776, %v688
      %v785 = vmax.f32 %v777, 0.0
      %v786 = vmax.f32 %v778, 0.0
      %v787 = vmax.f32 %v779, 0.0
      %v788 = vmax.f32 %v780, 0.0
      %v789 = vmax.f32 %v781, 0.0
      %v790 = vmax.f32 %v782, 0.0
      %v791 = vmax.f32 %v783, 0.0
      %v792 = vmax.f32 %v784, 0.0
      %v793 = vpack.c.bf16 %v786, %v785
      %v794 = vpack.c.bf16 %v788, %v787
      %v795 = vpack.c.bf16 %v790, %v789
      %v796 = vpack.c.bf16 %v792, %v791
      %v797 = vld [vmem:[%s3] sm:$0xf]
      %v798 = vld [vmem:[%s3 + $0x4] sm:$0xf]
      %v799 = vld [vmem:[%s3 + $0x8] sm:$0xf]
      %v800 = vld [vmem:[%s3 + $0xc] sm:$0xf]
      %v801 = vld [vmem:[%s3 + $0x10] sm:$0xf]
      %v802 = vld [vmem:[%s3 + $0x14] sm:$0xf]
      %v803 = vld [vmem:[%s3 + $0x18] sm:$0xf]
      %v804 = vld [vmem:[%s3 + $0x1c] sm:$0xf]
      %v813 = vunpack.c.l.b16 %v797
      %v814 = vunpack.c.l.b16 %v798
      %v815 = vunpack.c.l.b16 %v799
      %v816 = vunpack.c.l.b16 %v800
      %v817 = vunpack.c.l.b16 %v801
      %v818 = vunpack.c.l.b16 %v802
      %v819 = vunpack.c.l.b16 %v803
      %v820 = vunpack.c.l.b16 %v804
      %v821 = vpack.c.b16 %v814, %v813
      %v822 = vpack.c.b16 %v816, %v815
      %v823 = vpack.c.b16 %v818, %v817
      %v824 = vpack.c.b16 %v820, %v819
      %v830 = vsel %vm288, %v793, 0
      %v833 = vsel %vm288, %v794, 0
      %v836 = vsel %vm288, %v795, 0
      %v839 = vsel %vm288, %v796, 0
      %841 = vmatprep.subr.bf16.mxu0 0
      %842 = vmatpush1.bf16.msra.mxu0 %v821
      %843 = vmatprep.subr.bf16.mxu0 0
      %844 = vmatpush1.bf16.msra.mxu0 %v822
      %845 = vmatprep.subr.bf16.mxu0 0
      %846 = vmatpush1.bf16.msra.mxu0 %v823
      %847 = vmatprep.subr.bf16.mxu0 0
      %848 = vmatpush1.bf16.msra.mxu0 %v824
      %849 = vmatprep.subr.bf16.mxu0 0
      %850 = vmatpush1.bf16.msra.mxu0 0
      %851 = vmatprep.subr.bf16.mxu0 0
      %852 = vmatpush1.bf16.msra.mxu0 0
      %853 = vmatprep.subr.bf16.mxu0 0
      %854 = vmatpush1.bf16.msra.mxu0 0
      %855 = vmatprep.subr.bf16.mxu0 0
      %856 = vmatpush1.bf16.msra.mxu0 0
      %857 = vmatprep.subr.bf16.mxu0 0
      %858 = vmatpush1.bf16.msra.mxu0 0
      %859 = vmatprep.subr.bf16.mxu0 0
      %860 = vmatpush1.bf16.msra.mxu0 0
      %861 = vmatprep.subr.bf16.mxu0 0
      %862 = vmatpush1.bf16.msra.mxu0 0
      %863 = vmatprep.subr.bf16.mxu0 0
      %864 = vmatpush1.bf16.msra.mxu0 0
      %865 = vmatprep.subr.bf16.mxu0 0
      %866 = vmatpush1.bf16.msra.mxu0 0
      %867 = vmatprep.subr.bf16.mxu0 0
      %868 = vmatpush1.bf16.msra.mxu0 0
      %869 = vmatprep.subr.bf16.mxu0 0
      %870 = vmatpush1.bf16.msra.mxu0 0
      %871 = vmatprep.subr.bf16.mxu0 0
      %872 = vmatpush1.bf16.msra.mxu0 0
      %873 = vmatprep.mubr.bf16.mxu0 0
      %874 = vmatmul.mubr.bf16.gmra.mrb[0].mxu0 %v830
      %v875 = vpop.f32.mrb[0].mxu0
      %v876 = vadd.f32 0.0, %v875
      %v877 = vpop.f32.mrb[0].mxu0
      %v878 = vpop.f32.mrb[0].mxu0
      %v879 = vadd.f32 0.0, %v878
      %v880 = vpop.f32.mrb[0].mxu0
      %881 = vmatprep.mubr.bf16.mxu0 0
      %882 = vmatmul.mubr.bf16.gmra.mrb[0].mxu0 %v833
      %v883 = vpop.f32.mrb[0].mxu0
      %v884 = vadd.f32 0.0, %v883
      %v885 = vpop.f32.mrb[0].mxu0
      %v886 = vpop.f32.mrb[0].mxu0
      %v887 = vadd.f32 0.0, %v886
      %v888 = vpop.f32.mrb[0].mxu0
      %889 = vmatprep.mubr.bf16.mxu0 0
      %890 = vmatmul.mubr.bf16.gmra.mrb[0].mxu0 %v836
      %v891 = vpop.f32.mrb[0].mxu0
      %v892 = vadd.f32 0.0, %v891
      %v893 = vpop.f32.mrb[0].mxu0
      %v894 = vpop.f32.mrb[0].mxu0
      %v895 = vadd.f32 0.0, %v894
      %v896 = vpop.f32.mrb[0].mxu0
      %897 = vmatprep.mubr.bf16.mxu0 0
      %898 = vmatmul.mubr.bf16.gmra.mrb[0].mxu0 %v839
      %v899 = vpop.f32.mrb[0].mxu0
      %v900 = vadd.f32 0.0, %v899
      %v901 = vpop.f32.mrb[0].mxu0
      %v902 = vpop.f32.mrb[0].mxu0
      %v903 = vadd.f32 0.0, %v902
      %v904 = vpop.f32.mrb[0].mxu0
      %905 = vdwg.mxu0
      %vm906 = vcmask 130048
      %907 = vst.msk [vmem:[%s204] sm:$0xff] %vm906, %v876
      %908 = vst.msk [vmem:[%s204 + $0x8] sm:$0xff] %vm906, %v879
      %909 = vst.msk [vmem:[%s204 + $0x18] sm:$0xff] %vm906, %v884
      %910 = vst.msk [vmem:[%s204 + $0x20] sm:$0xff] %vm906, %v887
      %911 = vst.msk [vmem:[%s204 + $0x30] sm:$0xff] %vm906, %v892
      %912 = vst.msk [vmem:[%s204 + $0x38] sm:$0xff] %vm906, %v895
      %913 = vst.msk [vmem:[%s204 + $0x48] sm:$0xff] %vm906, %v900
      %914 = vst.msk [vmem:[%s204 + $0x50] sm:$0xff] %vm906, %v903
      %915 = vst.msk [vmem:[%s204 + $0x10] sm:$0xff] %vm906, 0.0
      %916 = vst.msk [vmem:[%s204 + $0x28] sm:$0xff] %vm906, 0.0
      %917 = vst.msk [vmem:[%s204 + $0x40] sm:$0xff] %vm906, 0.0
      %918 = vst.msk [vmem:[%s204 + $0x58] sm:$0xff] %vm906, 0.0
      %s919 = smul.u32 2, %s15
      %p920 = scmp.lt.s32.totalorder %s919, 7
      %s921 = scalar_select %p920, %s919, 7
      %s922 = smul.addr %s921, 6
      %s923 = smul.addr %s922, 8
      %s924 = scalar_lea.vmem %s4, %s923
      // Predicated region
      $region37: #{stgcn_forward.10} parent=35 // pred_check
        %p925 = pneg %p122
      $region38: #{stgcn_forward.10} parent=35 // pred_check_branch
        %927 = sbr.rel (%p925) target = $region40
      $region39: #{stgcn_forward.10} parent=35 // pred_region
        %s928 = smul.u32 2, %s15
      $region40: #{stgcn_forward.10} parent=35 // pred_fallthru
        _
    $region36: #{stgcn_forward.10} parent=5 // pred_fallthru
      _
    %p929 = scmp.le.s32.totalorder 2, %s10
    // Predicated region
    $region41: #{stgcn_forward.10} parent=5 // pred_check
      %p930 = pneg %p929
    $region42: #{stgcn_forward.10} parent=5 // pred_check_branch
      %932 = sbr.rel (%p930) target = $region44
    $region43: #{stgcn_forward.10} parent=5 // pred_region
      %s933 = ssub.s32 %s10, 2
      // Predicated region
      $region45: #{stgcn_forward.10} parent=43 // pred_check
        %p934 = pneg %p128
      $region46: #{stgcn_forward.10} parent=43 // pred_check_branch
        %936 = sbr.rel (%p934) target = $region48
      $region47: #{stgcn_forward.10} parent=43 // pred_region
        %s937 = smul.u32 2, %s16
        %p938 = scmp.lt.s32.totalorder %s937, 7
        %s939 = scalar_select %p938, %s937, 7
        %s940 = smul.addr %s939, 6
        %s941 = smul.addr %s940, 8
        %s942 = scalar_lea.vmem %s4, %s941
      $region48: #{stgcn_forward.10} parent=43 // pred_fallthru
        _
    $region44: #{stgcn_forward.10} parent=5 // pred_fallthru
      _
  $region6: #{stgcn_forward.10} parent=0 // loop_footer
    %s14 = sadd.s32 1, %s10
  $region7: #{stgcn_forward.10} parent=0 // loop_footer_branch
    %9 = sbr.rel target = $region3
  $region8: #{stgcn_forward.10} parent=0 // loop_exit
    _

// kernel: stgcn_forward.9
$region0: #{stgcn_forward.9}
  #allocation0 [shape = 'u32[]', space=smem, size = 0x4, offset = 0x4, fixed_abs, tag = 'smem constant byte address 0x4 - core index']
  #allocation1 [shape = 'u32[144,128]{1,0:T(1,128)}', space=vmem, size = 0x12000, scoped, tag = 'internal scratch']
  %s0 = inlined_call_operand.vmem [shape: f32[8,2,24,16], index: 0, kind: input, shape index: {}]
  %s1 = inlined_call_operand.vmem [shape: bf16[3,16,192], index: 1, kind: input, shape index: {}]
  %s2 = inlined_call_operand.vmem [shape: f32[1,192], index: 2, kind: input, shape index: {}]
  %s3 = inlined_call_operand.vmem [shape: f32[8,1,1,1], index: 3, kind: input, shape index: {}]
  %s4 = inlined_call_operand.vmem [shape: f32[8,1,1,1], index: 4, kind: input, shape index: {}]
  %s5 = inlined_call_operand.vmem [shape: f32[8,2,24,64], index: 5, kind: output, shape index: {}]
  %s6 = sld [smem:[#allocation0]]
  $region53: #{stgcn_forward.9} parent=0
    _
  %s8 = ssub.s32 1, %s6
  %s9 = scalar_select 0, %s8, %s6
  loop: start=0, step=1, limit=6
  $region2: #{stgcn_forward.9} parent=0 // loop_pre_header
    _
  $region3: #{stgcn_forward.9} parent=0 // loop_header
    %s11 = sphi 0, %s15
    %p12 = scmp.ge.s32.totalorder %s11, 6
    %s21 = sphi 0, %s23
    %s24 = sphi 0, %s21
    %s25 = sphi 0, %s24
    %s41 = sphi 0, %s25
    %s45 = sphi 0, %s45
    %s47 = sphi 0, %s45
    %s48 = sphi 0, %s47
    %s62 = sphi 0, %s48
    %s66 = sphi 0, %s66
    %s68 = sphi 0, %s66
    %s69 = sphi 0, %s68
    %s83 = sphi 0, %s69
    %s89 = sphi 0, %s91
    %s92 = sphi 0, %s89
    %s93 = sphi 0, %s92
    %s109 = sphi 0, %s93
    %s115 = sphi 0, %s117
    %s118 = sphi 0, %s115
    %s119 = sphi 0, %s118
    %s135 = sphi 0, %s119
    %s141 = sphi 0, %s143
    %s144 = sphi 0, %s141
    %s145 = sphi 0, %s144
    %s161 = sphi 0, %s145
  $region4: #{stgcn_forward.9} parent=0 // loop_header_branch
    %14 = sbr.rel (%p12) target = $region8
  $region5: #{stgcn_forward.9} parent=0 // loop_body
    %s16 = ssub.s32 %s11, 1
    %s17 = ssub.s32 %s11, 2
    %s18 = sadd.s32 %s11, 1
    %s19 = ssub.s32 %s11, %s18
    %p20 = scmp.eq.s32.totalorder %s19, 0
    %s22 = sadd.s32 %s21, 1
    %s23 = scalar_select %p20, %s21, %s22
    %p26 = pneg %p20
    %p27 = scmp.eq.s32.totalorder %s11, 3
    %p28 = por %p26, %p27
    %p29 = scmp.ne.s32.totalorder %s21, %s24
    %p30 = scmp.eq.s32.totalorder %s11, 0
    %p31 = por %p29, %p30
    %p32 = scmp.ne.s32.totalorder %s21, %s24
    %p33 = scmp.eq.s32.totalorder %s16, 3
    %p34 = por %p32, %p33
    %p35 = scmp.ne.s32.totalorder %s24, %s25
    %p36 = scmp.eq.s32.totalorder %s16, 0
    %p37 = por %p35, %p36
    %p38 = scmp.ne.s32.totalorder %s24, %s25
    %p39 = scmp.eq.s32.totalorder %s17, 3
    %p40 = por %p38, %p39
    %p42 = scmp.ne.s32.totalorder %s25, %s41
    %p43 = scmp.eq.s32.totalorder %s17, 0
    %p44 = por %p42, %p43
    %s46 = sadd.s32 %s45, 1
    %p49 = scmp.eq.s32.totalorder %s11, 3
    %p50 = scmp.ne.s32.totalorder %s45, %s47
    %p51 = scmp.eq.s32.totalorder %s11, 0
    %p52 = por %p50, %p51
    %p53 = scmp.ne.s32.totalorder %s45, %s47
    %p54 = scmp.eq.s32.totalorder %s16, 3
    %p55 = por %p53, %p54
    %p56 = scmp.ne.s32.totalorder %s47, %s48
    %p57 = scmp.eq.s32.totalorder %s16, 0
    %p58 = por %p56, %p57
    %p59 = scmp.ne.s32.totalorder %s47, %s48
    %p60 = scmp.eq.s32.totalorder %s17, 3
    %p61 = por %p59, %p60
    %p63 = scmp.ne.s32.totalorder %s48, %s62
    %p64 = scmp.eq.s32.totalorder %s17, 0
    %p65 = por %p63, %p64
    %s67 = sadd.s32 %s66, 1
    %p70 = scmp.eq.s32.totalorder %s11, 3
    %p71 = scmp.ne.s32.totalorder %s66, %s68
    %p72 = scmp.eq.s32.totalorder %s11, 0
    %p73 = por %p71, %p72
    %p74 = scmp.ne.s32.totalorder %s66, %s68
    %p75 = scmp.eq.s32.totalorder %s16, 3
    %p76 = por %p74, %p75
    %p77 = scmp.ne.s32.totalorder %s68, %s69
    %p78 = scmp.eq.s32.totalorder %s16, 0
    %p79 = por %p77, %p78
    %p80 = scmp.ne.s32.totalorder %s68, %s69
    %p81 = scmp.eq.s32.totalorder %s17, 3
    %p82 = por %p80, %p81
    %p84 = scmp.ne.s32.totalorder %s69, %s83
    %p85 = scmp.eq.s32.totalorder %s17, 0
    %p86 = por %p84, %p85
    %s87 = ssub.s32 %s11, %s18
    %p88 = scmp.eq.s32.totalorder %s87, 0
    %s90 = sadd.s32 %s89, 1
    %s91 = scalar_select %p88, %s89, %s90
    %p94 = pneg %p88
    %p95 = scmp.eq.s32.totalorder %s11, 3
    %p96 = por %p94, %p95
    %p97 = scmp.ne.s32.totalorder %s89, %s92
    %p98 = scmp.eq.s32.totalorder %s11, 0
    %p99 = por %p97, %p98
    %p100 = scmp.ne.s32.totalorder %s89, %s92
    %p101 = scmp.eq.s32.totalorder %s16, 3
    %p102 = por %p100, %p101
    %p103 = scmp.ne.s32.totalorder %s92, %s93
    %p104 = scmp.eq.s32.totalorder %s16, 0
    %p105 = por %p103, %p104
    %p106 = scmp.ne.s32.totalorder %s92, %s93
    %p107 = scmp.eq.s32.totalorder %s17, 3
    %p108 = por %p106, %p107
    %p110 = scmp.ne.s32.totalorder %s93, %s109
    %p111 = scmp.eq.s32.totalorder %s17, 0
    %p112 = por %p110, %p111
    %s113 = ssub.s32 %s11, %s18
    %p114 = scmp.eq.s32.totalorder %s113, 0
    %s116 = sadd.s32 %s115, 1
    %s117 = scalar_select %p114, %s115, %s116
    %p120 = pneg %p114
    %p121 = scmp.eq.s32.totalorder %s11, 3
    %p122 = por %p120, %p121
    %p123 = scmp.ne.s32.totalorder %s115, %s118
    %p124 = scmp.eq.s32.totalorder %s11, 0
    %p125 = por %p123, %p124
    %p126 = scmp.ne.s32.totalorder %s115, %s118
    %p127 = scmp.eq.s32.totalorder %s16, 3
    %p128 = por %p126, %p127
    %p129 = scmp.ne.s32.totalorder %s118, %s119
    %p130 = scmp.eq.s32.totalorder %s16, 0
    %p131 = por %p129, %p130
    %p132 = scmp.ne.s32.totalorder %s118, %s119
    %p133 = scmp.eq.s32.totalorder %s17, 3
    %p134 = por %p132, %p133
    %p136 = scmp.ne.s32.totalorder %s119, %s135
    %p137 = scmp.eq.s32.totalorder %s17, 0
    %p138 = por %p136, %p137
    %s139 = ssub.s32 %s11, %s18
    %p140 = scmp.eq.s32.totalorder %s139, 0
    %s142 = sadd.s32 %s141, 1
    %s143 = scalar_select %p140, %s141, %s142
    %p146 = pneg %p140
    %p147 = scmp.eq.s32.totalorder %s11, 3
    %p148 = por %p146, %p147
    %p149 = scmp.ne.s32.totalorder %s141, %s144
    %p150 = scmp.eq.s32.totalorder %s11, 0
    %p151 = por %p149, %p150
    %p152 = scmp.ne.s32.totalorder %s141, %s144
    %p153 = scmp.eq.s32.totalorder %s16, 3
    %p154 = por %p152, %p153
    %p155 = scmp.ne.s32.totalorder %s144, %s145
    %p156 = scmp.eq.s32.totalorder %s16, 0
    %p157 = por %p155, %p156
    %p158 = scmp.ne.s32.totalorder %s144, %s145
    %p159 = scmp.eq.s32.totalorder %s17, 3
    %p160 = por %p158, %p159
    %p162 = scmp.ne.s32.totalorder %s145, %s161
    %p163 = scmp.eq.s32.totalorder %s17, 0
    %p164 = por %p162, %p163
    %p165 = scmp.le.s32.totalorder 1, %s11
    %p166 = scmp.lt.s32.totalorder %s11, 5
    %p167 = pnand %p165, %p166
    %p168 = pneg %p167
    // Predicated region
    $region9: #{stgcn_forward.9} parent=5 // pred_check
      _
    $region10: #{stgcn_forward.9} parent=5 // pred_check_branch
      %170 = sbr.rel (%p167) target = $region12
    $region11: #{stgcn_forward.9} parent=5 // pred_region
      %s171 = ssub.s32 %s11, 1
      // Predicated region
      $region13: #{stgcn_forward.9} parent=11 // pred_check
        %p172 = pneg %p58
      $region14: #{stgcn_forward.9} parent=11 // pred_check_branch
        %174 = sbr.rel (%p172) target = $region16
      $region15: #{stgcn_forward.9} parent=11 // pred_region
        _
      $region16: #{stgcn_forward.9} parent=11 // pred_fallthru
        _
      // Predicated region
      $region17: #{stgcn_forward.9} parent=11 // pred_check
        %p175 = pneg %p79
      $region18: #{stgcn_forward.9} parent=11 // pred_check_branch
        %177 = sbr.rel (%p175) target = $region20
      $region19: #{stgcn_forward.9} parent=11 // pred_region
        _
      $region20: #{stgcn_forward.9} parent=11 // pred_fallthru
        _
    $region12: #{stgcn_forward.9} parent=5 // pred_fallthru
      _
    %p178 = scmp.lt.s32.totalorder %s11, 4
    // Predicated region
    $region21: #{stgcn_forward.9} parent=5 // pred_check
      %p179 = pneg %p178
    $region22: #{stgcn_forward.9} parent=5 // pred_check_branch
      %181 = sbr.rel (%p179) target = $region24
    $region23: #{stgcn_forward.9} parent=5 // pred_region
      // Predicated region
      $region25: #{stgcn_forward.9} parent=23 // pred_check
        %p182 = pneg %p31
      $region26: #{stgcn_forward.9} parent=23 // pred_check_branch
        %184 = sbr.rel (%p182) target = $region28
      $region27: #{stgcn_forward.9} parent=23 // pred_region
        %s185 = smul.u32 2, %s11
        %p186 = scmp.lt.s32.totalorder %s185, 7
        %s187 = scalar_select %p186, %s185, 7
        %s188 = smul.addr %s187, 6
        %s189 = smul.addr %s188, 8
        %s190 = scalar_lea.vmem %s0, %s189
        %s191 = smul.u32 2, %s11
      $region28: #{stgcn_forward.9} parent=23 // pred_fallthru
        _
      // Predicated region
      $region29: #{stgcn_forward.9} parent=23 // pred_check
        %p192 = pneg %p99
      $region30: #{stgcn_forward.9} parent=23 // pred_check_branch
        %194 = sbr.rel (%p192) target = $region32
      $region31: #{stgcn_forward.9} parent=23 // pred_region
        %s195 = smul.u32 2, %s11
        %p196 = scmp.lt.s32.totalorder %s195, 7
        %s197 = scalar_select %p196, %s195, 7
        %s198 = scalar_lea.vmem %s3, %s197
        %s199 = smul.u32 2, %s11
      $region32: #{stgcn_forward.9} parent=23 // pred_fallthru
        _
      // Predicated region
      $region33: #{stgcn_forward.9} parent=23 // pred_check
        %p200 = pneg %p125
      $region34: #{stgcn_forward.9} parent=23 // pred_check_branch
        %202 = sbr.rel (%p200) target = $region36
      $region35: #{stgcn_forward.9} parent=23 // pred_region
        %s203 = smul.u32 2, %s11
        %p204 = scmp.lt.s32.totalorder %s203, 7
        %s205 = scalar_select %p204, %s203, 7
        %s206 = scalar_lea.vmem %s4, %s205
        %s207 = smul.u32 2, %s11
      $region36: #{stgcn_forward.9} parent=23 // pred_fallthru
        _
    $region24: #{stgcn_forward.9} parent=5 // pred_fallthru
      _
    %p208 = scmp.le.s32.totalorder 1, %s11
    %p209 = scmp.lt.s32.totalorder %s11, 5
    %p210 = pnand %p208, %p209
    %p211 = pneg %p210
    // Predicated region
    $region37: #{stgcn_forward.9} parent=5 // pred_check
      _
    $region38: #{stgcn_forward.9} parent=5 // pred_check_branch
      %213 = sbr.rel (%p210) target = $region40
    $region39: #{stgcn_forward.9} parent=5 // pred_region
      %s214 = ssub.s32 %s11, 1
      %s215 = smul.u32 2, %s16
      %p216 = scmp.lt.s32.totalorder %s215, 7
      %s217 = scalar_select %p216, %s215, 7
      %s218 = smul.addr %s217, 6
      %s219 = smul.addr %s218, 8
      %s220 = scalar_lea.vmem %s0, %s219
      %p221 = pneg %p37
      %p222 = pneg %p34
      %p223 = pneg %p58
      %p224 = pneg %p55
      %p225 = pneg %p79
      %p226 = pneg %p76
      %s227 = smul.u32 2, %s16
      %p228 = scmp.lt.s32.totalorder %s227, 7
      %s229 = scalar_select %p228, %s227, 7
      %s230 = scalar_lea.vmem %s3, %s229
      %p231 = pneg %p105
      %p232 = pneg %p102
      %s233 = smul.u32 2, %s16
      %p234 = scmp.lt.s32.totalorder %s233, 7
      %s235 = scalar_select %p234, %s233, 7
      %s236 = scalar_lea.vmem %s4, %s235
      %p237 = pneg %p131
      %p238 = pneg %p128
      %p239 = pneg %p157
      %p240 = pneg %p154
      %s241 = smul.u32 2, %s16
      %p242 = scmp.lt.s32.totalorder %s241, 7
      %s243 = scalar_select %p242, %s241, 7
      %s244 = smul.addr %s243, 6
      %s245 = smul.addr %s244, 8
      %s246 = scalar_lea.vmem %s5, %s245
      %s247 = smul.u32 2, %s16
      %p248 = scmp.lt.s32.totalorder %s247, 7
      %s249 = scalar_select %p248, %s247, 7
      %s250 = smul.addr %s249, 6
      %s251 = smul.addr %s250, 8
      %s252 = scalar_lea.vmem %s0, %s251
      %s253 = smul.u32 2, %s16
      %s254 = smul.u32 2, %s16
      %p255 = scmp.lt.s32.totalorder %s254, 7
      %s256 = scalar_select %p255, %s254, 7
      %s257 = scalar_lea.vmem %s3, %s256
      %s258 = smul.u32 2, %s16
      %s259 = smul.u32 2, %s16
      %p260 = scmp.lt.s32.totalorder %s259, 7
      %s261 = scalar_select %p260, %s259, 7
      %s262 = scalar_lea.vmem %s4, %s261
      %s263 = smul.u32 2, %s16
      %s264 = smul.u32 2, %s16
      %p265 = scmp.lt.s32.totalorder %s264, 7
      %s266 = scalar_select %p265, %s264, 7
      %s267 = smul.addr %s266, 6
      %s268 = smul.addr %s267, 8
      %s269 = scalar_lea.vmem %s5, %s268
      %s270 = smul.u32 2, %s16
      %v272 = vld [vmem:[%s252] sm:$0xff]
      %v273 = vld [vmem:[%s252 + $0x8] sm:$0xff]
      %v274 = vld [vmem:[%s252 + $0x18] sm:$0xff]
      %v275 = vld [vmem:[%s252 + $0x20] sm:$0xff]
      %v276 = vld [vmem:[%s252 + $0x30] sm:$0xff]
      %v277 = vld [vmem:[%s252 + $0x38] sm:$0xff]
      %v278 = vld [vmem:[%s252 + $0x48] sm:$0xff]
      %v279 = vld [vmem:[%s252 + $0x50] sm:$0xff]
      %v280 = vpack.c.bf16 %v273, %v272
      %v281 = vpack.c.bf16 %v275, %v274
      %v282 = vpack.c.bf16 %v277, %v276
      %v283 = vpack.c.bf16 %v279, %v278
      %v284 = vld [vmem:[%s1] sm:$0xff]
      %v285 = vld [vmem:[%s1 + $0x8] sm:$0xff]
      %v286 = vld [vmem:[%s252 + $0x1] sm:$0xff]
      %v287 = vld [vmem:[%s252 + $0x9] sm:$0xff]
      %v288 = vld [vmem:[%s252 + $0x19] sm:$0xff]
      %v289 = vld [vmem:[%s252 + $0x21] sm:$0xff]
      %v290 = vld [vmem:[%s252 + $0x31] sm:$0xff]
      %v291 = vld [vmem:[%s252 + $0x39] sm:$0xff]
      %v292 = vld [vmem:[%s252 + $0x49] sm:$0xff]
      %v293 = vld [vmem:[%s252 + $0x51] sm:$0xff]
      %v294 = vpack.c.bf16 %v287, %v286
      %v295 = vpack.c.bf16 %v289, %v288
      %v296 = vpack.c.bf16 %v291, %v290
      %v297 = vpack.c.bf16 %v293, %v292
      %s298 = scalar_lea.vmem %s1, 16
      %v299 = vld [vmem:[%s298] sm:$0xff]
      %v300 = vld [vmem:[%s298 + $0x8] sm:$0xff]
      %v303 = vunpack.c.l.b16 %v299
      %v304 = vunpack.c.h.b16 %v299
      %v305 = vunpack.c.l.b16 %v300
      %v306 = vunpack.c.h.b16 %v300
      %v307 = vpack.c.b16 %v305, %v303
      %v308 = vpack.c.b16 %v306, %v304
      %vm311 = vcmask 130048
      %v313 = vsel %vm311, %v294, 0
      %v316 = vsel %vm311, %v295, 0
      %v319 = vsel %vm311, %v296, 0
      %v322 = vsel %vm311, %v297, 0
      %324 = vmatprep.subr.bf16.mxu0 %v308
      %325 = vmatpush1.bf16.msra.mxu0 %v307
      %326 = vmatprep.subr.bf16.mxu0 0
      %327 = vmatpush1.bf16.msra.mxu0 0
      %328 = vmatprep.subr.bf16.mxu0 0
      %329 = vmatpush1.bf16.msra.mxu0 0
      %330 = vmatprep.subr.bf16.mxu0 0
      %331 = vmatpush1.bf16.msra.mxu0 0
      %332 = vmatprep.subr.bf16.mxu0 0
      %333 = vmatpush1.bf16.msra.mxu0 0
      %334 = vmatprep.subr.bf16.mxu0 0
      %335 = vmatpush1.bf16.msra.mxu0 0
      %336 = vmatprep.subr.bf16.mxu0 0
      %337 = vmatpush1.bf16.msra.mxu0 0
      %338 = vmatprep.subr.bf16.mxu0 0
      %339 = vmatpush1.bf16.msra.mxu0 0
      %340 = vmatprep.subr.bf16.mxu0 0
      %341 = vmatpush1.bf16.msra.mxu0 0
      %342 = vmatprep.subr.bf16.mxu0 0
      %343 = vmatpush1.bf16.msra.mxu0 0
      %344 = vmatprep.subr.bf16.mxu0 0
      %345 = vmatpush1.bf16.msra.mxu0 0
      %346 = vmatprep.subr.bf16.mxu0 0
      %347 = vmatpush1.bf16.msra.mxu0 0
      %348 = vmatprep.subr.bf16.mxu0 0
      %349 = vmatpush1.bf16.msra.mxu0 0
      %350 = vmatprep.subr.bf16.mxu0 0
      %351 = vmatpush1.bf16.msra.mxu0 0
      %352 = vmatprep.subr.bf16.mxu0 0
      %353 = vmatpush1.bf16.msra.mxu0 0
      %354 = vmatprep.subr.bf16.mxu0 0
      %355 = vmatpush1.bf16.msra.mxu0 0
      %356 = vmatprep.mubr.bf16.mxu0 0
      %357 = vmatmul.mubr.bf16.gmra.mrb[0].mxu0 %v313
      %v358 = vpop.f32.mrb[0].mxu0
      %v359 = vadd.f32 0.0, %v358
      %v360 = vpop.f32.mrb[0].mxu0
      %v361 = vadd.f32 0.0, %v360
      %v362 = vpop.f32.mrb[0].mxu0
      %v363 = vadd.f32 0.0, %v362
      %v364 = vpop.f32.mrb[0].mxu0
      %v365 = vadd.f32 0.0, %v364
      %366 = vmatprep.mubr.bf16.mxu0 0
      %367 = vmatmul.mubr.bf16.gmra.mrb[0].mxu0 %v316
      %v368 = vpop.f32.mrb[0].mxu0
      %v369 = vadd.f32 0.0, %v368
      %v370 = vpop.f32.mrb[0].mxu0
      %v371 = vadd.f32 0.0, %v370
      %v372 = vpop.f32.mrb[0].mxu0
      %v373 = vadd.f32 0.0, %v372
      %v374 = vpop.f32.mrb[0].mxu0
      %v375 = vadd.f32 0.0, %v374
      %376 = vmatprep.mubr.bf16.mxu0 0
      %377 = vmatmul.mubr.bf16.gmra.mrb[0].mxu0 %v319
      %v378 = vpop.f32.mrb[0].mxu0
      %v379 = vadd.f32 0.0, %v378
      %v380 = vpop.f32.mrb[0].mxu0
      %v381 = vadd.f32 0.0, %v380
      %v382 = vpop.f32.mrb[0].mxu0
      %v383 = vadd.f32 0.0, %v382
      %v384 = vpop.f32.mrb[0].mxu0
      %v385 = vadd.f32 0.0, %v384
      %386 = vmatprep.mubr.bf16.mxu0 0
      %387 = vmatmul.mubr.bf16.gmra.mrb[0].mxu0 %v322
      %v388 = vpop.f32.mrb[0].mxu0
      %v389 = vadd.f32 0.0, %v388
      %v390 = vpop.f32.mrb[0].mxu0
      %v391 = vadd.f32 0.0, %v390
      %v392 = vpop.f32.mrb[0].mxu0
      %v393 = vadd.f32 0.0, %v392
      %v394 = vpop.f32.mrb[0].mxu0
      %v395 = vadd.f32 0.0, %v394
      %396 = vdwg.mxu0
      %v399 = vunpack.c.l.b16 %v284
      %v400 = vunpack.c.h.b16 %v284
      %v401 = vunpack.c.l.b16 %v285
      %v402 = vunpack.c.h.b16 %v285
      %v403 = vpack.c.b16 %v401, %v399
      %v404 = vpack.c.b16 %v402, %v400
      %v408 = vsel %vm311, %v280, 0
      %v411 = vsel %vm311, %v281, 0
      %v414 = vsel %vm311, %v282, 0
      %v417 = vsel %vm311, %v283, 0
      %419 = vmatprep.subr.bf16.mxu0 %v404
      %420 = vmatpush1.bf16.msra.mxu0 %v403
      %421 = vmatprep.subr.bf16.mxu0 0
      %422 = vmatpush1.bf16.msra.mxu0 0
      %423 = vmatprep.subr.bf16.mxu0 0
      %424 = vmatpush1.bf16.msra.mxu0 0
      %425 = vmatprep.subr.bf16.mxu0 0
      %426 = vmatpush1.bf16.msra.mxu0 0
      %427 = vmatprep.subr.bf16.mxu0 0
      %428 = vmatpush1.bf16.msra.mxu0 0
      %429 = vmatprep.subr.bf16.mxu0 0
      %430 = vmatpush1.bf16.msra.mxu0 0
      %431 = vmatprep.subr.bf16.mxu0 0
      %432 = vmatpush1.bf16.msra.mxu0 0
      %433 = vmatprep.subr.bf16.mxu0 0
      %434 = vmatpush1.bf16.msra.mxu0 0
      %435 = vmatprep.subr.bf16.mxu0 0
      %436 = vmatpush1.bf16.msra.mxu0 0
      %437 = vmatprep.subr.bf16.mxu0 0
      %438 = vmatpush1.bf16.msra.mxu0 0
      %439 = vmatprep.subr.bf16.mxu0 0
      %440 = vmatpush1.bf16.msra.mxu0 0
      %441 = vmatprep.subr.bf16.mxu0 0
      %442 = vmatpush1.bf16.msra.mxu0 0
      %443 = vmatprep.subr.bf16.mxu0 0
      %444 = vmatpush1.bf16.msra.mxu0 0
      %445 = vmatprep.subr.bf16.mxu0 0
      %446 = vmatpush1.bf16.msra.mxu0 0
      %447 = vmatprep.subr.bf16.mxu0 0
      %448 = vmatpush1.bf16.msra.mxu0 0
      %449 = vmatprep.subr.bf16.mxu0 0
      %450 = vmatpush1.bf16.msra.mxu0 0
      %451 = vmatprep.mubr.bf16.mxu0 0
      %452 = vmatmul.mubr.bf16.gmra.mrb[0].mxu0 %v408
      %v453 = vpop.f32.mrb[0].mxu0
      %v454 = vadd.f32 %v359, %v453
      %v455 = vpop.f32.mrb[0].mxu0
      %v456 = vadd.f32 %v361, %v455
      %v457 = vpop.f32.mrb[0].mxu0
      %v458 = vadd.f32 %v363, %v457
      %v459 = vpop.f32.mrb[0].mxu0
      %v460 = vadd.f32 %v365, %v459
      %461 = vmatprep.mubr.bf16.mxu0 0
      %462 = vmatmul.mubr.bf16.gmra.mrb[0].mxu0 %v411
      %v463 = vpop.f32.mrb[0].mxu0
      %v464 = vadd.f32 %v369, %v463
      %v465 = vpop.f32.mrb[0].mxu0
      %v466 = vadd.f32 %v371, %v465
      %v467 = vpop.f32.mrb[0].mxu0
      %v468 = vadd.f32 %v373, %v467
      %v469 = vpop.f32.mrb[0].mxu0
      %v470 = vadd.f32 %v375, %v469
      %471 = vmatprep.mubr.bf16.mxu0 0
      %472 = vmatmul.mubr.bf16.gmra.mrb[0].mxu0 %v414
      %v473 = vpop.f32.mrb[0].mxu0
      %v474 = vadd.f32 %v379, %v473
      %v475 = vpop.f32.mrb[0].mxu0
      %v476 = vadd.f32 %v381, %v475
      %v477 = vpop.f32.mrb[0].mxu0
      %v478 = vadd.f32 %v383, %v477
      %v479 = vpop.f32.mrb[0].mxu0
      %v480 = vadd.f32 %v385, %v479
      %481 = vmatprep.mubr.bf16.mxu0 0
      %482 = vmatmul.mubr.bf16.gmra.mrb[0].mxu0 %v417
      %v483 = vpop.f32.mrb[0].mxu0
      %v484 = vadd.f32 %v389, %v483
      %v485 = vpop.f32.mrb[0].mxu0
      %v486 = vadd.f32 %v391, %v485
      %v487 = vpop.f32.mrb[0].mxu0
      %v488 = vadd.f32 %v393, %v487
      %v489 = vpop.f32.mrb[0].mxu0
      %v490 = vadd.f32 %v395, %v489
      %491 = vdwg.mxu0
      %v492 = vld [vmem:[%s252 + $0x2] sm:$0xff]
      %v493 = vld [vmem:[%s252 + $0xa] sm:$0xff]
      %v494 = vld [vmem:[%s252 + $0x1a] sm:$0xff]
      %v495 = vld [vmem:[%s252 + $0x22] sm:$0xff]
      %v496 = vld [vmem:[%s252 + $0x32] sm:$0xff]
      %v497 = vld [vmem:[%s252 + $0x3a] sm:$0xff]
      %v498 = vld [vmem:[%s252 + $0x4a] sm:$0xff]
      %v499 = vld [vmem:[%s252 + $0x52] sm:$0xff]
      %v500 = vpack.c.bf16 %v493, %v492
      %v501 = vpack.c.bf16 %v495, %v494
      %v502 = vpack.c.bf16 %v497, %v496
      %v503 = vpack.c.bf16 %v499, %v498
      %s504 = scalar_lea.vmem %s1, 32
      %v505 = vld [vmem:[%s504] sm:$0xff]
      %v506 = vld [vmem:[%s504 + $0x8] sm:$0xff]
      %v509 = vunpack.c.l.b16 %v505
      %v510 = vunpack.c.h.b16 %v505
      %v511 = vunpack.c.l.b16 %v506
      %v512 = vunpack.c.h.b16 %v506
      %v513 = vpack.c.b16 %v511, %v509
      %v514 = vpack.c.b16 %v512, %v510
      %v518 = vsel %vm311, %v500, 0
      %v521 = vsel %vm311, %v501, 0
      %v524 = vsel %vm311, %v502, 0
      %v527 = vsel %vm311, %v503, 0
      %529 = vmatprep.subr.bf16.mxu0 %v514
      %530 = vmatpush1.bf16.msra.mxu0 %v513
      %531 = vmatprep.subr.bf16.mxu0 0
      %532 = vmatpush1.bf16.msra.mxu0 0
      %533 = vmatprep.subr.bf16.mxu0 0
      %534 = vmatpush1.bf16.msra.mxu0 0
      %535 = vmatprep.subr.bf16.mxu0 0
      %536 = vmatpush1.bf16.msra.mxu0 0
      %537 = vmatprep.subr.bf16.mxu0 0
      %538 = vmatpush1.bf16.msra.mxu0 0
      %539 = vmatprep.subr.bf16.mxu0 0
      %540 = vmatpush1.bf16.msra.mxu0 0
      %541 = vmatprep.subr.bf16.mxu0 0
      %542 = vmatpush1.bf16.msra.mxu0 0
      %543 = vmatprep.subr.bf16.mxu0 0
      %544 = vmatpush1.bf16.msra.mxu0 0
      %545 = vmatprep.subr.bf16.mxu0 0
      %546 = vmatpush1.bf16.msra.mxu0 0
      %547 = vmatprep.subr.bf16.mxu0 0
      %548 = vmatpush1.bf16.msra.mxu0 0
      %549 = vmatprep.subr.bf16.mxu0 0
      %550 = vmatpush1.bf16.msra.mxu0 0
      %551 = vmatprep.subr.bf16.mxu0 0
      %552 = vmatpush1.bf16.msra.mxu0 0
      %553 = vmatprep.subr.bf16.mxu0 0
      %554 = vmatpush1.bf16.msra.mxu0 0
      %555 = vmatprep.subr.bf16.mxu0 0
      %556 = vmatpush1.bf16.msra.mxu0 0
      %557 = vmatprep.subr.bf16.mxu0 0
      %558 = vmatpush1.bf16.msra.mxu0 0
      %559 = vmatprep.subr.bf16.mxu0 0
      %560 = vmatpush1.bf16.msra.mxu0 0
      %561 = vmatprep.mubr.bf16.mxu0 0
      %562 = vmatmul.mubr.bf16.gmra.mrb[0].mxu0 %v518
      %v563 = vpop.f32.mrb[0].mxu0
      %v564 = vadd.f32 0.0, %v563
      %v565 = vpop.f32.mrb[0].mxu0
      %v566 = vadd.f32 0.0, %v565
      %v567 = vpop.f32.mrb[0].mxu0
      %v568 = vadd.f32 0.0, %v567
      %v569 = vpop.f32.mrb[0].mxu0
      %v570 = vadd.f32 0.0, %v569
      %571 = vmatprep.mubr.bf16.mxu0 0
      %572 = vmatmul.mubr.bf16.gmra.mrb[0].mxu0 %v521
      %v573 = vpop.f32.mrb[0].mxu0
      %v574 = vadd.f32 0.0, %v573
      %v575 = vpop.f32.mrb[0].mxu0
      %v576 = vadd.f32 0.0, %v575
      %v577 = vpop.f32.mrb[0].mxu0
      %v578 = vadd.f32 0.0, %v577
      %v579 = vpop.f32.mrb[0].mxu0
      %v580 = vadd.f32 0.0, %v579
      %581 = vmatprep.mubr.bf16.mxu0 0
      %582 = vmatmul.mubr.bf16.gmra.mrb[0].mxu0 %v524
      %v583 = vpop.f32.mrb[0].mxu0
      %v584 = vadd.f32 0.0, %v583
      %v585 = vpop.f32.mrb[0].mxu0
      %v586 = vadd.f32 0.0, %v585
      %v587 = vpop.f32.mrb[0].mxu0
      %v588 = vadd.f32 0.0, %v587
      %v589 = vpop.f32.mrb[0].mxu0
      %v590 = vadd.f32 0.0, %v589
      %591 = vmatprep.mubr.bf16.mxu0 0
      %592 = vmatmul.mubr.bf16.gmra.mrb[0].mxu0 %v527
      %v593 = vpop.f32.mrb[0].mxu0
      %v594 = vadd.f32 0.0, %v593
      %v595 = vpop.f32.mrb[0].mxu0
      %v596 = vadd.f32 0.0, %v595
      %v597 = vpop.f32.mrb[0].mxu0
      %v598 = vadd.f32 0.0, %v597
      %v599 = vpop.f32.mrb[0].mxu0
      %v600 = vadd.f32 0.0, %v599
      %601 = vdwg.mxu0
      %v602 = vadd.f32 %v454, %v564
      %v603 = vadd.f32 %v456, %v566
      %v604 = vadd.f32 %v458, %v568
      %v605 = vadd.f32 %v460, %v570
      %v606 = vadd.f32 %v464, %v574
      %v607 = vadd.f32 %v466, %v576
      %v608 = vadd.f32 %v468, %v578
      %v609 = vadd.f32 %v470, %v580
      %v610 = vadd.f32 %v474, %v584
      %v611 = vadd.f32 %v476, %v586
      %v612 = vadd.f32 %v478, %v588
      %v613 = vadd.f32 %v480, %v590
      %v614 = vadd.f32 %v484, %v594
      %v615 = vadd.f32 %v486, %v596
      %v616 = vadd.f32 %v488, %v598
      %v617 = vadd.f32 %v490, %v600
      %v618 = vld [vmem:[%s2] sm:$0x3]
      %v620 = vlaneseq
      %v621 = vshrl.u32 %v620, 7
      %v622 = vsub.s32 0, %v621
      %v623 = vrot.slane %v618, %v622
      %v624 = vlaneseq
      %v625 = vshrl.u32 %v624, 7
      %v626 = vsub.s32 1, %v625
      %v627 = vrot.slane %v618, %v626
      %v630 = vadd.f32 %v602, %v623
      %v631 = vadd.f32 %v603, %v627
      %v632 = vadd.f32 %v604, %v623
      %v633 = vadd.f32 %v605, %v627
      %v634 = vadd.f32 %v606, %v623
      %v635 = vadd.f32 %v607, %v627
      %v636 = vadd.f32 %v608, %v623
      %v637 = vadd.f32 %v609, %v627
      %v638 = vadd.f32 %v610, %v623
      %v639 = vadd.f32 %v611, %v627
      %v640 = vadd.f32 %v612, %v623
      %v641 = vadd.f32 %v613, %v627
      %v642 = vadd.f32 %v614, %v623
      %v643 = vadd.f32 %v615, %v627
      %v644 = vadd.f32 %v616, %v623
      %v645 = vadd.f32 %v617, %v627
      %v646 = vxor.u32 %v630, 2147483648
      %v647 = vxor.u32 %v632, 2147483648
      %v648 = vxor.u32 %v634, 2147483648
      %v649 = vxor.u32 %v636, 2147483648
      %v650 = vxor.u32 %v638, 2147483648
      %v651 = vxor.u32 %v640, 2147483648
      %v652 = vxor.u32 %v642, 2147483648
      %v653 = vxor.u32 %v644, 2147483648
      %v654 = vmul.f32 %v646, 1.442695
      %v655 = vpow.pop %v654
      %v656 = vmul.f32 %v647, 1.442695
      %v657 = vpow.pop %v656
      %v658 = vmul.f32 %v648, 1.442695
      %v659 = vpow.pop %v658
      %v660 = vmul.f32 %v649, 1.442695
      %v661 = vpow.pop %v660
      %v662 = vmul.f32 %v650, 1.442695
      %v663 = vpow.pop %v662
      %v664 = vmul.f32 %v651, 1.442695
      %v665 = vpow.pop %v664
      %v666 = vmul.f32 %v652, 1.442695
      %v667 = vpow.pop %v666
      %v668 = vmul.f32 %v653, 1.442695
      %v669 = vpow.pop %v668
      %v670 = vadd.f32 %v655, 1.0
      %v671 = vadd.f32 %v657, 1.0
      %v672 = vadd.f32 %v659, 1.0
      %v673 = vadd.f32 %v661, 1.0
      %v674 = vadd.f32 %v663, 1.0
      %v675 = vadd.f32 %v665, 1.0
      %v676 = vadd.f32 %v667, 1.0
      %v677 = vadd.f32 %v669, 1.0
      %v678 = vrcp.pop %v670
      %v679 = vmul.f32 1.0, %v678
      %v680 = vrcp.pop %v671
      %v681 = vmul.f32 1.0, %v680
      %v682 = vrcp.pop %v672
      %v683 = vmul.f32 1.0, %v682
      %v684 = vrcp.pop %v673
      %v685 = vmul.f32 1.0, %v684
      %v686 = vrcp.pop %v674
      %v687 = vmul.f32 1.0, %v686
      %v688 = vrcp.pop %v675
      %v689 = vmul.f32 1.0, %v688
      %v690 = vrcp.pop %v676
      %v691 = vmul.f32 1.0, %v690
      %v692 = vrcp.pop %v677
      %v693 = vmul.f32 1.0, %v692
      %702 = vrot.lane.b32.xlu0 %v679, 64
      %v703 = vpop.permute.xlu0 %702
      %704 = vrot.lane.b32.xlu0 %v681, 64
      %v705 = vpop.permute.xlu0 %704
      %706 = vrot.lane.b32.xlu0 %v683, 64
      %v707 = vpop.permute.xlu0 %706
      %708 = vrot.lane.b32.xlu0 %v685, 64
      %v709 = vpop.permute.xlu0 %708
      %710 = vrot.lane.b32.xlu0 %v687, 64
      %v711 = vpop.permute.xlu0 %710
      %712 = vrot.lane.b32.xlu0 %v689, 64
      %v713 = vpop.permute.xlu0 %712
      %714 = vrot.lane.b32.xlu0 %v691, 64
      %v715 = vpop.permute.xlu0 %714
      %716 = vrot.lane.b32.xlu0 %v693, 64
      %v717 = vpop.permute.xlu0 %716
      %v726 = vadd.f32 %v630, %v703
      %v727 = vadd.f32 %v632, %v705
      %v728 = vadd.f32 %v634, %v707
      %v729 = vadd.f32 %v636, %v709
      %v730 = vadd.f32 %v638, %v711
      %v731 = vadd.f32 %v640, %v713
      %v732 = vadd.f32 %v642, %v715
      %v733 = vadd.f32 %v644, %v717
      %v734 = vadd.f32 %v726, %v631
      %v735 = vadd.f32 %v727, %v633
      %v736 = vadd.f32 %v728, %v635
      %v737 = vadd.f32 %v729, %v637
      %v738 = vadd.f32 %v730, %v639
      %v739 = vadd.f32 %v731, %v641
      %v740 = vadd.f32 %v732, %v643
      %v741 = vadd.f32 %v733, %v645
      %v742 = vmax.f32 %v734, 0.0
      %v743 = vmax.f32 %v735, 0.0
      %v744 = vmax.f32 %v736, 0.0
      %v745 = vmax.f32 %v737, 0.0
      %v746 = vmax.f32 %v738, 0.0
      %v747 = vmax.f32 %v739, 0.0
      %v748 = vmax.f32 %v740, 0.0
      %v749 = vmax.f32 %v741, 0.0
      %vm750 = vcmask 523264
      %v751 = vsel %vm750, %v742, 0.0
      %752 = vadd.xlane.f32.xlu0 %v751
      %v753 = vpop.xlane.xlu0 %752
      %vm754 = vcmask 519168
      %v755 = vsel %vm754, %v743, 0.0
      %756 = vadd.xlane.f32.xlu0 %v755
      %v757 = vpop.xlane.xlu0 %756
      %v758 = vsel %vm750, %v744, 0.0
      %759 = vadd.xlane.f32.xlu0 %v758
      %v760 = vpop.xlane.xlu0 %759
      %v761 = vsel %vm754, %v745, 0.0
      %762 = vadd.xlane.f32.xlu0 %v761
      %v763 = vpop.xlane.xlu0 %762
      %v764 = vsel %vm750, %v746, 0.0
      %765 = vadd.xlane.f32.xlu0 %v764
      %v766 = vpop.xlane.xlu0 %765
      %v767 = vsel %vm754, %v747, 0.0
      %768 = vadd.xlane.f32.xlu0 %v767
      %v769 = vpop.xlane.xlu0 %768
      %v770 = vsel %vm750, %v748, 0.0
      %771 = vadd.xlane.f32.xlu0 %v770
      %v772 = vpop.xlane.xlu0 %771
      %v773 = vsel %vm754, %v749, 0.0
      %774 = vadd.xlane.f32.xlu0 %v773
      %v775 = vpop.xlane.xlu0 %774
      %vm776 = vcmask 1043456
      %v777 = vsel %vm776, %v757, 0.0
      %v778 = vadd.f32 %v753, %v777
      %v779 = vrot.slane %v778, 4
      %v780 = vadd.f32 %v778, %v779
      %v781 = vrot.slane %v780, 2
      %v782 = vadd.f32 %v780, %v781
      %v783 = vrot.slane %v782, 1
      %v784 = vadd.f32 %v782, %v783
      %v785 = vsel %vm776, %v763, 0.0
      %v786 = vadd.f32 %v760, %v785
      %v787 = vrot.slane %v786, 4
      %v788 = vadd.f32 %v786, %v787
      %v789 = vrot.slane %v788, 2
      %v790 = vadd.f32 %v788, %v789
      %v791 = vrot.slane %v790, 1
      %v792 = vadd.f32 %v790, %v791
      %v793 = vsel %vm776, %v769, 0.0
      %v794 = vadd.f32 %v766, %v793
      %v795 = vrot.slane %v794, 4
      %v796 = vadd.f32 %v794, %v795
      %v797 = vrot.slane %v796, 2
      %v798 = vadd.f32 %v796, %v797
      %v799 = vrot.slane %v798, 1
      %v800 = vadd.f32 %v798, %v799
      %v801 = vsel %vm776, %v775, 0.0
      %v802 = vadd.f32 %v772, %v801
      %v803 = vrot.slane %v802, 4
      %v804 = vadd.f32 %v802, %v803
      %v805 = vrot.slane %v804, 2
      %v806 = vadd.f32 %v804, %v805
      %v807 = vrot.slane %v806, 1
      %v808 = vadd.f32 %v806, %v807
      %v809 = vadd.f32 %v784, %v792
      %v810 = vadd.f32 %v800, %v808
      %v811 = vmul.f32 %v809, 0.0006510417
      %v812 = vmul.f32 %v810, 0.0006510417
      %v813 = vsub.f32 %v742, %v811
      %v814 = vsub.f32 %v743, %v811
      %v815 = vsub.f32 %v744, %v811
      %v816 = vsub.f32 %v745, %v811
      %v817 = vsub.f32 %v746, %v812
      %v818 = vsub.f32 %v747, %v812
      %v819 = vsub.f32 %v748, %v812
      %v820 = vsub.f32 %v749, %v812
      %v821 = vmul.f32 %v813, %v813
      %v822 = vmul.f32 %v814, %v814
      %v823 = vmul.f32 %v815, %v815
      %v824 = vmul.f32 %v816, %v816
      %v825 = vmul.f32 %v817, %v817
      %v826 = vmul.f32 %v818, %v818
      %v827 = vmul.f32 %v819, %v819
      %v828 = vmul.f32 %v820, %v820
      %v829 = vsel %vm750, %v821, 0.0
      %830 = vadd.xlane.f32.xlu0 %v829
      %v831 = vpop.xlane.xlu0 %830
      %v832 = vsel %vm754, %v822, 0.0
      %833 = vadd.xlane.f32.xlu0 %v832
      %v834 = vpop.xlane.xlu0 %833
      %v835 = vsel %vm750, %v823, 0.0
      %836 = vadd.xlane.f32.xlu0 %v835
      %v837 = vpop.xlane.xlu0 %836
      %v838 = vsel %vm754, %v824, 0.0
      %839 = vadd.xlane.f32.xlu0 %v838
      %v840 = vpop.xlane.xlu0 %839
      %v841 = vsel %vm750, %v825, 0.0
      %842 = vadd.xlane.f32.xlu0 %v841
      %v843 = vpop.xlane.xlu0 %842
      %v844 = vsel %vm754, %v826, 0.0
      %845 = vadd.xlane.f32.xlu0 %v844
      %v846 = vpop.xlane.xlu0 %845
      %v847 = vsel %vm750, %v827, 0.0
      %848 = vadd.xlane.f32.xlu0 %v847
      %v849 = vpop.xlane.xlu0 %848
      %v850 = vsel %vm754, %v828, 0.0
      %851 = vadd.xlane.f32.xlu0 %v850
      %v852 = vpop.xlane.xlu0 %851
      %v853 = vsel %vm776, %v834, 0.0
      %v854 = vadd.f32 %v831, %v853
      %v855 = vrot.slane %v854, 4
      %v856 = vadd.f32 %v854, %v855
      %v857 = vrot.slane %v856, 2
      %v858 = vadd.f32 %v856, %v857
      %v859 = vrot.slane %v858, 1
      %v860 = vadd.f32 %v858, %v859
      %v861 = vsel %vm776, %v840, 0.0
      %v862 = vadd.f32 %v837, %v861
      %v863 = vrot.slane %v862, 4
      %v864 = vadd.f32 %v862, %v863
      %v865 = vrot.slane %v864, 2
      %v866 = vadd.f32 %v864, %v865
      %v867 = vrot.slane %v866, 1
      %v868 = vadd.f32 %v866, %v867
      %v869 = vsel %vm776, %v846, 0.0
      %v870 = vadd.f32 %v843, %v869
      %v871 = vrot.slane %v870, 4
      %v872 = vadd.f32 %v870, %v871
      %v873 = vrot.slane %v872, 2
      %v874 = vadd.f32 %v872, %v873
      %v875 = vrot.slane %v874, 1
      %v876 = vadd.f32 %v874, %v875
      %v877 = vsel %vm776, %v852, 0.0
      %v878 = vadd.f32 %v849, %v877
      %v879 = vrot.slane %v878, 4
      %v880 = vadd.f32 %v878, %v879
      %v881 = vrot.slane %v880, 2
      %v882 = vadd.f32 %v880, %v881
      %v883 = vrot.slane %v882, 1
      %v884 = vadd.f32 %v882, %v883
      %v885 = vadd.f32 %v860, %v868
      %v886 = vadd.f32 %v876, %v884
      %v887 = vmul.f32 %v885, 0.0006510417
      %v888 = vmul.f32 %v886, 0.0006510417
      %v889 = vadd.f32 %v887, 1e-05
      %v890 = vadd.f32 %v888, 1e-05
      %v891 = vrsqrt.pop %v889
      %v892 = vrsqrt.pop %v890
      %v893 = vld [vmem:[%s257] sm:$0x1]
      %v894 = vld [vmem:[%s257 + $0x1] sm:$0x1]
      %v895 = vmul.f32 %v891, %v893
      %v896 = vmul.f32 %v892, %v894
      %v897 = vld [vmem:[%s262] sm:$0x1]
      %v898 = vld [vmem:[%s262 + $0x1] sm:$0x1]
      %v899 = vmul.f32 %v811, %v895
      %v900 = vmul.f32 %v812, %v896
      %v901 = vsub.f32 %v897, %v899
      %v902 = vsub.f32 %v898, %v900
      %v905 = vlaneseq
      %v906 = vshrl.u32 %v905, 7
      %v907 = vsub.s32 0, %v906
      %v908 = vrot.slane %v895, %v907
      %v909 = vlaneseq
      %v910 = vshrl.u32 %v909, 7
      %v911 = vsub.s32 0, %v910
      %v912 = vrot.slane %v896, %v911
      %913 = vset.pattern.permute.xlu0 0
      %914 = vperm.xlu0 %913, %v908
      %v915 = vpop.permute.xlu0 %914
      %917 = vset.pattern.permute.xlu0 0
      %918 = vperm.xlu0 %917, %v912
      %v919 = vpop.permute.xlu0 %918
      %v921 = vmul.f32 %v742, %v915
      %v922 = vmul.f32 %v743, %v915
      %v923 = vmul.f32 %v744, %v915
      %v924 = vmul.f32 %v745, %v915
      %v925 = vmul.f32 %v746, %v919
      %v926 = vmul.f32 %v747, %v919
      %v927 = vmul.f32 %v748, %v919
      %v928 = vmul.f32 %v749, %v919
      %v931 = vlaneseq
      %v932 = vshrl.u32 %v931, 7
      %v933 = vsub.s32 0, %v932
      %v934 = vrot.slane %v901, %v933
      %v935 = vlaneseq
      %v936 = vshrl.u32 %v935, 7
      %v937 = vsub.s32 0, %v936
      %v938 = vrot.slane %v902, %v937
      %939 = vset.pattern.permute.xlu0 0
      %940 = vperm.xlu0 %939, %v934
      %v941 = vpop.permute.xlu0 %940
      %943 = vset.pattern.permute.xlu0 0
      %944 = vperm.xlu0 %943, %v938
      %v945 = vpop.permute.xlu0 %944
      %v947 = vadd.f32 %v921, %v941
      %v948 = vadd.f32 %v922, %v941
      %v949 = vadd.f32 %v923, %v941
      %v950 = vadd.f32 %v924, %v941
      %v951 = vadd.f32 %v925, %v945
      %v952 = vadd.f32 %v926, %v945
      %v953 = vadd.f32 %v927, %v945
      %v954 = vadd.f32 %v928, %v945
      %955 = vst.msk [vmem:[%s269] sm:$0xff] %vm750, %v947
      %956 = vst.msk [vmem:[%s269 + $0x8] sm:$0xff] %vm750, %v948
      %957 = vst.msk [vmem:[%s269 + $0x18] sm:$0xff] %vm750, %v949
      %958 = vst.msk [vmem:[%s269 + $0x20] sm:$0xff] %vm750, %v950
      %959 = vst.msk [vmem:[%s269 + $0x30] sm:$0xff] %vm750, %v951
      %960 = vst.msk [vmem:[%s269 + $0x38] sm:$0xff] %vm750, %v952
      %961 = vst.msk [vmem:[%s269 + $0x48] sm:$0xff] %vm750, %v953
      %962 = vst.msk [vmem:[%s269 + $0x50] sm:$0xff] %vm750, %v954
      %963 = vst.msk [vmem:[%s269 + $0x10] sm:$0xff] %vm750, 0.0
      %964 = vst.msk [vmem:[%s269 + $0x28] sm:$0xff] %vm750, 0.0
      %965 = vst.msk [vmem:[%s269 + $0x40] sm:$0xff] %vm750, 0.0
      %966 = vst.msk [vmem:[%s269 + $0x58] sm:$0xff] %vm750, 0.0
      %s967 = smul.u32 2, %s16
      %p968 = scmp.lt.s32.totalorder %s967, 7
      %s969 = scalar_select %p968, %s967, 7
      %s970 = smul.addr %s969, 6
      %s971 = smul.addr %s970, 8
      %s972 = scalar_lea.vmem %s5, %s971
      // Predicated region
      $region41: #{stgcn_forward.9} parent=39 // pred_check
        %p973 = pneg %p154
      $region42: #{stgcn_forward.9} parent=39 // pred_check_branch
        %975 = sbr.rel (%p973) target = $region44
      $region43: #{stgcn_forward.9} parent=39 // pred_region
        %s976 = smul.u32 2, %s16
      $region44: #{stgcn_forward.9} parent=39 // pred_fallthru
        _
    $region40: #{stgcn_forward.9} parent=5 // pred_fallthru
      _
    %p977 = scmp.le.s32.totalorder 2, %s11
    // Predicated region
    $region45: #{stgcn_forward.9} parent=5 // pred_check
      %p978 = pneg %p977
    $region46: #{stgcn_forward.9} parent=5 // pred_check_branch
      %980 = sbr.rel (%p978) target = $region48
    $region47: #{stgcn_forward.9} parent=5 // pred_region
      %s981 = ssub.s32 %s11, 2
      // Predicated region
      $region49: #{stgcn_forward.9} parent=47 // pred_check
        %p982 = pneg %p160
      $region50: #{stgcn_forward.9} parent=47 // pred_check_branch
        %984 = sbr.rel (%p982) target = $region52
      $region51: #{stgcn_forward.9} parent=47 // pred_region
        %s985 = smul.u32 2, %s17
        %p986 = scmp.lt.s32.totalorder %s985, 7
        %s987 = scalar_select %p986, %s985, 7
        %s988 = smul.addr %s987, 6
        %s989 = smul.addr %s988, 8
        %s990 = scalar_lea.vmem %s5, %s989
      $region52: #{stgcn_forward.9} parent=47 // pred_fallthru
        _
    $region48: #{stgcn_forward.9} parent=5 // pred_fallthru
      _
  $region6: #{stgcn_forward.9} parent=0 // loop_footer
    %s15 = sadd.s32 1, %s11
  $region7: #{stgcn_forward.9} parent=0 // loop_footer_branch
    %10 = sbr.rel target = $region3
  $region8: #{stgcn_forward.9} parent=0 // loop_exit
    _

// kernel: stgcn_forward.12
$region0: #{stgcn_forward.12}
  #allocation0 [shape = 'u32[]', space=smem, size = 0x4, offset = 0x4, fixed_abs, tag = 'smem constant byte address 0x4 - core index']
  #allocation1 [shape = 'u32[144,128]{1,0:T(1,128)}', space=vmem, size = 0x12000, scoped, tag = 'internal scratch']
  %s0 = inlined_call_operand.vmem [shape: f32[8,2,24,16], index: 0, kind: input, shape index: {}]
  %s1 = inlined_call_operand.vmem [shape: bf16[3,16,192], index: 1, kind: input, shape index: {}]
  %s2 = inlined_call_operand.vmem [shape: f32[1,192], index: 2, kind: input, shape index: {}]
  %s3 = inlined_call_operand.vmem [shape: f32[8,1,1,1], index: 3, kind: input, shape index: {}]
  %s4 = inlined_call_operand.vmem [shape: f32[8,1,1,1], index: 4, kind: input, shape index: {}]
  %s5 = inlined_call_operand.vmem [shape: f32[8,2,24,64], index: 5, kind: output, shape index: {}]
  %s6 = sld [smem:[#allocation0]]
  $region53: #{stgcn_forward.12} parent=0
    _
  %s8 = ssub.s32 1, %s6
  %s9 = scalar_select 0, %s8, %s6
  loop: start=0, step=1, limit=6
  $region2: #{stgcn_forward.12} parent=0 // loop_pre_header
    _
  $region3: #{stgcn_forward.12} parent=0 // loop_header
    %s11 = sphi 0, %s15
    %p12 = scmp.ge.s32.totalorder %s11, 6
    %s21 = sphi 0, %s23
    %s24 = sphi 0, %s21
    %s25 = sphi 0, %s24
    %s41 = sphi 0, %s25
    %s45 = sphi 0, %s45
    %s47 = sphi 0, %s45
    %s48 = sphi 0, %s47
    %s62 = sphi 0, %s48
    %s66 = sphi 0, %s66
    %s68 = sphi 0, %s66
    %s69 = sphi 0, %s68
    %s83 = sphi 0, %s69
    %s89 = sphi 0, %s91
    %s92 = sphi 0, %s89
    %s93 = sphi 0, %s92
    %s109 = sphi 0, %s93
    %s115 = sphi 0, %s117
    %s118 = sphi 0, %s115
    %s119 = sphi 0, %s118
    %s135 = sphi 0, %s119
    %s141 = sphi 0, %s143
    %s144 = sphi 0, %s141
    %s145 = sphi 0, %s144
    %s161 = sphi 0, %s145
  $region4: #{stgcn_forward.12} parent=0 // loop_header_branch
    %14 = sbr.rel (%p12) target = $region8
  $region5: #{stgcn_forward.12} parent=0 // loop_body
    %s16 = ssub.s32 %s11, 1
    %s17 = ssub.s32 %s11, 2
    %s18 = sadd.s32 %s11, 1
    %s19 = ssub.s32 %s11, %s18
    %p20 = scmp.eq.s32.totalorder %s19, 0
    %s22 = sadd.s32 %s21, 1
    %s23 = scalar_select %p20, %s21, %s22
    %p26 = pneg %p20
    %p27 = scmp.eq.s32.totalorder %s11, 3
    %p28 = por %p26, %p27
    %p29 = scmp.ne.s32.totalorder %s21, %s24
    %p30 = scmp.eq.s32.totalorder %s11, 0
    %p31 = por %p29, %p30
    %p32 = scmp.ne.s32.totalorder %s21, %s24
    %p33 = scmp.eq.s32.totalorder %s16, 3
    %p34 = por %p32, %p33
    %p35 = scmp.ne.s32.totalorder %s24, %s25
    %p36 = scmp.eq.s32.totalorder %s16, 0
    %p37 = por %p35, %p36
    %p38 = scmp.ne.s32.totalorder %s24, %s25
    %p39 = scmp.eq.s32.totalorder %s17, 3
    %p40 = por %p38, %p39
    %p42 = scmp.ne.s32.totalorder %s25, %s41
    %p43 = scmp.eq.s32.totalorder %s17, 0
    %p44 = por %p42, %p43
    %s46 = sadd.s32 %s45, 1
    %p49 = scmp.eq.s32.totalorder %s11, 3
    %p50 = scmp.ne.s32.totalorder %s45, %s47
    %p51 = scmp.eq.s32.totalorder %s11, 0
    %p52 = por %p50, %p51
    %p53 = scmp.ne.s32.totalorder %s45, %s47
    %p54 = scmp.eq.s32.totalorder %s16, 3
    %p55 = por %p53, %p54
    %p56 = scmp.ne.s32.totalorder %s47, %s48
    %p57 = scmp.eq.s32.totalorder %s16, 0
    %p58 = por %p56, %p57
    %p59 = scmp.ne.s32.totalorder %s47, %s48
    %p60 = scmp.eq.s32.totalorder %s17, 3
    %p61 = por %p59, %p60
    %p63 = scmp.ne.s32.totalorder %s48, %s62
    %p64 = scmp.eq.s32.totalorder %s17, 0
    %p65 = por %p63, %p64
    %s67 = sadd.s32 %s66, 1
    %p70 = scmp.eq.s32.totalorder %s11, 3
    %p71 = scmp.ne.s32.totalorder %s66, %s68
    %p72 = scmp.eq.s32.totalorder %s11, 0
    %p73 = por %p71, %p72
    %p74 = scmp.ne.s32.totalorder %s66, %s68
    %p75 = scmp.eq.s32.totalorder %s16, 3
    %p76 = por %p74, %p75
    %p77 = scmp.ne.s32.totalorder %s68, %s69
    %p78 = scmp.eq.s32.totalorder %s16, 0
    %p79 = por %p77, %p78
    %p80 = scmp.ne.s32.totalorder %s68, %s69
    %p81 = scmp.eq.s32.totalorder %s17, 3
    %p82 = por %p80, %p81
    %p84 = scmp.ne.s32.totalorder %s69, %s83
    %p85 = scmp.eq.s32.totalorder %s17, 0
    %p86 = por %p84, %p85
    %s87 = ssub.s32 %s11, %s18
    %p88 = scmp.eq.s32.totalorder %s87, 0
    %s90 = sadd.s32 %s89, 1
    %s91 = scalar_select %p88, %s89, %s90
    %p94 = pneg %p88
    %p95 = scmp.eq.s32.totalorder %s11, 3
    %p96 = por %p94, %p95
    %p97 = scmp.ne.s32.totalorder %s89, %s92
    %p98 = scmp.eq.s32.totalorder %s11, 0
    %p99 = por %p97, %p98
    %p100 = scmp.ne.s32.totalorder %s89, %s92
    %p101 = scmp.eq.s32.totalorder %s16, 3
    %p102 = por %p100, %p101
    %p103 = scmp.ne.s32.totalorder %s92, %s93
    %p104 = scmp.eq.s32.totalorder %s16, 0
    %p105 = por %p103, %p104
    %p106 = scmp.ne.s32.totalorder %s92, %s93
    %p107 = scmp.eq.s32.totalorder %s17, 3
    %p108 = por %p106, %p107
    %p110 = scmp.ne.s32.totalorder %s93, %s109
    %p111 = scmp.eq.s32.totalorder %s17, 0
    %p112 = por %p110, %p111
    %s113 = ssub.s32 %s11, %s18
    %p114 = scmp.eq.s32.totalorder %s113, 0
    %s116 = sadd.s32 %s115, 1
    %s117 = scalar_select %p114, %s115, %s116
    %p120 = pneg %p114
    %p121 = scmp.eq.s32.totalorder %s11, 3
    %p122 = por %p120, %p121
    %p123 = scmp.ne.s32.totalorder %s115, %s118
    %p124 = scmp.eq.s32.totalorder %s11, 0
    %p125 = por %p123, %p124
    %p126 = scmp.ne.s32.totalorder %s115, %s118
    %p127 = scmp.eq.s32.totalorder %s16, 3
    %p128 = por %p126, %p127
    %p129 = scmp.ne.s32.totalorder %s118, %s119
    %p130 = scmp.eq.s32.totalorder %s16, 0
    %p131 = por %p129, %p130
    %p132 = scmp.ne.s32.totalorder %s118, %s119
    %p133 = scmp.eq.s32.totalorder %s17, 3
    %p134 = por %p132, %p133
    %p136 = scmp.ne.s32.totalorder %s119, %s135
    %p137 = scmp.eq.s32.totalorder %s17, 0
    %p138 = por %p136, %p137
    %s139 = ssub.s32 %s11, %s18
    %p140 = scmp.eq.s32.totalorder %s139, 0
    %s142 = sadd.s32 %s141, 1
    %s143 = scalar_select %p140, %s141, %s142
    %p146 = pneg %p140
    %p147 = scmp.eq.s32.totalorder %s11, 3
    %p148 = por %p146, %p147
    %p149 = scmp.ne.s32.totalorder %s141, %s144
    %p150 = scmp.eq.s32.totalorder %s11, 0
    %p151 = por %p149, %p150
    %p152 = scmp.ne.s32.totalorder %s141, %s144
    %p153 = scmp.eq.s32.totalorder %s16, 3
    %p154 = por %p152, %p153
    %p155 = scmp.ne.s32.totalorder %s144, %s145
    %p156 = scmp.eq.s32.totalorder %s16, 0
    %p157 = por %p155, %p156
    %p158 = scmp.ne.s32.totalorder %s144, %s145
    %p159 = scmp.eq.s32.totalorder %s17, 3
    %p160 = por %p158, %p159
    %p162 = scmp.ne.s32.totalorder %s145, %s161
    %p163 = scmp.eq.s32.totalorder %s17, 0
    %p164 = por %p162, %p163
    %p165 = scmp.le.s32.totalorder 1, %s11
    %p166 = scmp.lt.s32.totalorder %s11, 5
    %p167 = pnand %p165, %p166
    %p168 = pneg %p167
    // Predicated region
    $region9: #{stgcn_forward.12} parent=5 // pred_check
      _
    $region10: #{stgcn_forward.12} parent=5 // pred_check_branch
      %170 = sbr.rel (%p167) target = $region12
    $region11: #{stgcn_forward.12} parent=5 // pred_region
      %s171 = ssub.s32 %s11, 1
      // Predicated region
      $region13: #{stgcn_forward.12} parent=11 // pred_check
        %p172 = pneg %p58
      $region14: #{stgcn_forward.12} parent=11 // pred_check_branch
        %174 = sbr.rel (%p172) target = $region16
      $region15: #{stgcn_forward.12} parent=11 // pred_region
        _
      $region16: #{stgcn_forward.12} parent=11 // pred_fallthru
        _
      // Predicated region
      $region17: #{stgcn_forward.12} parent=11 // pred_check
        %p175 = pneg %p79
      $region18: #{stgcn_forward.12} parent=11 // pred_check_branch
        %177 = sbr.rel (%p175) target = $region20
      $region19: #{stgcn_forward.12} parent=11 // pred_region
        _
      $region20: #{stgcn_forward.12} parent=11 // pred_fallthru
        _
    $region12: #{stgcn_forward.12} parent=5 // pred_fallthru
      _
    %p178 = scmp.lt.s32.totalorder %s11, 4
    // Predicated region
    $region21: #{stgcn_forward.12} parent=5 // pred_check
      %p179 = pneg %p178
    $region22: #{stgcn_forward.12} parent=5 // pred_check_branch
      %181 = sbr.rel (%p179) target = $region24
    $region23: #{stgcn_forward.12} parent=5 // pred_region
      // Predicated region
      $region25: #{stgcn_forward.12} parent=23 // pred_check
        %p182 = pneg %p31
      $region26: #{stgcn_forward.12} parent=23 // pred_check_branch
        %184 = sbr.rel (%p182) target = $region28
      $region27: #{stgcn_forward.12} parent=23 // pred_region
        %s185 = smul.u32 2, %s11
        %p186 = scmp.lt.s32.totalorder %s185, 7
        %s187 = scalar_select %p186, %s185, 7
        %s188 = smul.addr %s187, 6
        %s189 = smul.addr %s188, 8
        %s190 = scalar_lea.vmem %s0, %s189
        %s191 = smul.u32 2, %s11
      $region28: #{stgcn_forward.12} parent=23 // pred_fallthru
        _
      // Predicated region
      $region29: #{stgcn_forward.12} parent=23 // pred_check
        %p192 = pneg %p99
      $region30: #{stgcn_forward.12} parent=23 // pred_check_branch
        %194 = sbr.rel (%p192) target = $region32
      $region31: #{stgcn_forward.12} parent=23 // pred_region
        %s195 = smul.u32 2, %s11
        %p196 = scmp.lt.s32.totalorder %s195, 7
        %s197 = scalar_select %p196, %s195, 7
        %s198 = scalar_lea.vmem %s3, %s197
        %s199 = smul.u32 2, %s11
      $region32: #{stgcn_forward.12} parent=23 // pred_fallthru
        _
      // Predicated region
      $region33: #{stgcn_forward.12} parent=23 // pred_check
        %p200 = pneg %p125
      $region34: #{stgcn_forward.12} parent=23 // pred_check_branch
        %202 = sbr.rel (%p200) target = $region36
      $region35: #{stgcn_forward.12} parent=23 // pred_region
        %s203 = smul.u32 2, %s11
        %p204 = scmp.lt.s32.totalorder %s203, 7
        %s205 = scalar_select %p204, %s203, 7
        %s206 = scalar_lea.vmem %s4, %s205
        %s207 = smul.u32 2, %s11
      $region36: #{stgcn_forward.12} parent=23 // pred_fallthru
        _
    $region24: #{stgcn_forward.12} parent=5 // pred_fallthru
      _
    %p208 = scmp.le.s32.totalorder 1, %s11
    %p209 = scmp.lt.s32.totalorder %s11, 5
    %p210 = pnand %p208, %p209
    %p211 = pneg %p210
    // Predicated region
    $region37: #{stgcn_forward.12} parent=5 // pred_check
      _
    $region38: #{stgcn_forward.12} parent=5 // pred_check_branch
      %213 = sbr.rel (%p210) target = $region40
    $region39: #{stgcn_forward.12} parent=5 // pred_region
      %s214 = ssub.s32 %s11, 1
      %s215 = smul.u32 2, %s16
      %p216 = scmp.lt.s32.totalorder %s215, 7
      %s217 = scalar_select %p216, %s215, 7
      %s218 = smul.addr %s217, 6
      %s219 = smul.addr %s218, 8
      %s220 = scalar_lea.vmem %s0, %s219
      %p221 = pneg %p37
      %p222 = pneg %p34
      %p223 = pneg %p58
      %p224 = pneg %p55
      %p225 = pneg %p79
      %p226 = pneg %p76
      %s227 = smul.u32 2, %s16
      %p228 = scmp.lt.s32.totalorder %s227, 7
      %s229 = scalar_select %p228, %s227, 7
      %s230 = scalar_lea.vmem %s3, %s229
      %p231 = pneg %p105
      %p232 = pneg %p102
      %s233 = smul.u32 2, %s16
      %p234 = scmp.lt.s32.totalorder %s233, 7
      %s235 = scalar_select %p234, %s233, 7
      %s236 = scalar_lea.vmem %s4, %s235
      %p237 = pneg %p131
      %p238 = pneg %p128
      %p239 = pneg %p157
      %p240 = pneg %p154
      %s241 = smul.u32 2, %s16
      %p242 = scmp.lt.s32.totalorder %s241, 7
      %s243 = scalar_select %p242, %s241, 7
      %s244 = smul.addr %s243, 6
      %s245 = smul.addr %s244, 8
      %s246 = scalar_lea.vmem %s5, %s245
      %s247 = smul.u32 2, %s16
      %p248 = scmp.lt.s32.totalorder %s247, 7
      %s249 = scalar_select %p248, %s247, 7
      %s250 = smul.addr %s249, 6
      %s251 = smul.addr %s250, 8
      %s252 = scalar_lea.vmem %s0, %s251
      %s253 = smul.u32 2, %s16
      %s254 = smul.u32 2, %s16
      %p255 = scmp.lt.s32.totalorder %s254, 7
      %s256 = scalar_select %p255, %s254, 7
      %s257 = scalar_lea.vmem %s3, %s256
      %s258 = smul.u32 2, %s16
      %s259 = smul.u32 2, %s16
      %p260 = scmp.lt.s32.totalorder %s259, 7
      %s261 = scalar_select %p260, %s259, 7
      %s262 = scalar_lea.vmem %s4, %s261
      %s263 = smul.u32 2, %s16
      %s264 = smul.u32 2, %s16
      %p265 = scmp.lt.s32.totalorder %s264, 7
      %s266 = scalar_select %p265, %s264, 7
      %s267 = smul.addr %s266, 6
      %s268 = smul.addr %s267, 8
      %s269 = scalar_lea.vmem %s5, %s268
      %s270 = smul.u32 2, %s16
      %v272 = vld [vmem:[%s252] sm:$0xff]
      %v273 = vld [vmem:[%s252 + $0x8] sm:$0xff]
      %v274 = vld [vmem:[%s252 + $0x18] sm:$0xff]
      %v275 = vld [vmem:[%s252 + $0x20] sm:$0xff]
      %v276 = vld [vmem:[%s252 + $0x30] sm:$0xff]
      %v277 = vld [vmem:[%s252 + $0x38] sm:$0xff]
      %v278 = vld [vmem:[%s252 + $0x48] sm:$0xff]
      %v279 = vld [vmem:[%s252 + $0x50] sm:$0xff]
      %v280 = vpack.c.bf16 %v273, %v272
      %v281 = vpack.c.bf16 %v275, %v274
      %v282 = vpack.c.bf16 %v277, %v276
      %v283 = vpack.c.bf16 %v279, %v278
      %v284 = vld [vmem:[%s1] sm:$0xff]
      %v285 = vld [vmem:[%s1 + $0x8] sm:$0xff]
      %v286 = vld [vmem:[%s252 + $0x1] sm:$0xff]
      %v287 = vld [vmem:[%s252 + $0x9] sm:$0xff]
      %v288 = vld [vmem:[%s252 + $0x19] sm:$0xff]
      %v289 = vld [vmem:[%s252 + $0x21] sm:$0xff]
      %v290 = vld [vmem:[%s252 + $0x31] sm:$0xff]
      %v291 = vld [vmem:[%s252 + $0x39] sm:$0xff]
      %v292 = vld [vmem:[%s252 + $0x49] sm:$0xff]
      %v293 = vld [vmem:[%s252 + $0x51] sm:$0xff]
      %v294 = vpack.c.bf16 %v287, %v286
      %v295 = vpack.c.bf16 %v289, %v288
      %v296 = vpack.c.bf16 %v291, %v290
      %v297 = vpack.c.bf16 %v293, %v292
      %s298 = scalar_lea.vmem %s1, 16
      %v299 = vld [vmem:[%s298] sm:$0xff]
      %v300 = vld [vmem:[%s298 + $0x8] sm:$0xff]
      %v303 = vunpack.c.l.b16 %v299
      %v304 = vunpack.c.h.b16 %v299
      %v305 = vunpack.c.l.b16 %v300
      %v306 = vunpack.c.h.b16 %v300
      %v307 = vpack.c.b16 %v305, %v303
      %v308 = vpack.c.b16 %v306, %v304
      %vm311 = vcmask 130048
      %v313 = vsel %vm311, %v294, 0
      %v316 = vsel %vm311, %v295, 0
      %v319 = vsel %vm311, %v296, 0
      %v322 = vsel %vm311, %v297, 0
      %324 = vmatprep.subr.bf16.mxu0 %v308
      %325 = vmatpush1.bf16.msra.mxu0 %v307
      %326 = vmatprep.subr.bf16.mxu0 0
      %327 = vmatpush1.bf16.msra.mxu0 0
      %328 = vmatprep.subr.bf16.mxu0 0
      %329 = vmatpush1.bf16.msra.mxu0 0
      %330 = vmatprep.subr.bf16.mxu0 0
      %331 = vmatpush1.bf16.msra.mxu0 0
      %332 = vmatprep.subr.bf16.mxu0 0
      %333 = vmatpush1.bf16.msra.mxu0 0
      %334 = vmatprep.subr.bf16.mxu0 0
      %335 = vmatpush1.bf16.msra.mxu0 0
      %336 = vmatprep.subr.bf16.mxu0 0
      %337 = vmatpush1.bf16.msra.mxu0 0
      %338 = vmatprep.subr.bf16.mxu0 0
      %339 = vmatpush1.bf16.msra.mxu0 0
      %340 = vmatprep.subr.bf16.mxu0 0
      %341 = vmatpush1.bf16.msra.mxu0 0
      %342 = vmatprep.subr.bf16.mxu0 0
      %343 = vmatpush1.bf16.msra.mxu0 0
      %344 = vmatprep.subr.bf16.mxu0 0
      %345 = vmatpush1.bf16.msra.mxu0 0
      %346 = vmatprep.subr.bf16.mxu0 0
      %347 = vmatpush1.bf16.msra.mxu0 0
      %348 = vmatprep.subr.bf16.mxu0 0
      %349 = vmatpush1.bf16.msra.mxu0 0
      %350 = vmatprep.subr.bf16.mxu0 0
      %351 = vmatpush1.bf16.msra.mxu0 0
      %352 = vmatprep.subr.bf16.mxu0 0
      %353 = vmatpush1.bf16.msra.mxu0 0
      %354 = vmatprep.subr.bf16.mxu0 0
      %355 = vmatpush1.bf16.msra.mxu0 0
      %356 = vmatprep.mubr.bf16.mxu0 0
      %357 = vmatmul.mubr.bf16.gmra.mrb[0].mxu0 %v313
      %v358 = vpop.f32.mrb[0].mxu0
      %v359 = vadd.f32 0.0, %v358
      %v360 = vpop.f32.mrb[0].mxu0
      %v361 = vadd.f32 0.0, %v360
      %v362 = vpop.f32.mrb[0].mxu0
      %v363 = vadd.f32 0.0, %v362
      %v364 = vpop.f32.mrb[0].mxu0
      %v365 = vadd.f32 0.0, %v364
      %366 = vmatprep.mubr.bf16.mxu0 0
      %367 = vmatmul.mubr.bf16.gmra.mrb[0].mxu0 %v316
      %v368 = vpop.f32.mrb[0].mxu0
      %v369 = vadd.f32 0.0, %v368
      %v370 = vpop.f32.mrb[0].mxu0
      %v371 = vadd.f32 0.0, %v370
      %v372 = vpop.f32.mrb[0].mxu0
      %v373 = vadd.f32 0.0, %v372
      %v374 = vpop.f32.mrb[0].mxu0
      %v375 = vadd.f32 0.0, %v374
      %376 = vmatprep.mubr.bf16.mxu0 0
      %377 = vmatmul.mubr.bf16.gmra.mrb[0].mxu0 %v319
      %v378 = vpop.f32.mrb[0].mxu0
      %v379 = vadd.f32 0.0, %v378
      %v380 = vpop.f32.mrb[0].mxu0
      %v381 = vadd.f32 0.0, %v380
      %v382 = vpop.f32.mrb[0].mxu0
      %v383 = vadd.f32 0.0, %v382
      %v384 = vpop.f32.mrb[0].mxu0
      %v385 = vadd.f32 0.0, %v384
      %386 = vmatprep.mubr.bf16.mxu0 0
      %387 = vmatmul.mubr.bf16.gmra.mrb[0].mxu0 %v322
      %v388 = vpop.f32.mrb[0].mxu0
      %v389 = vadd.f32 0.0, %v388
      %v390 = vpop.f32.mrb[0].mxu0
      %v391 = vadd.f32 0.0, %v390
      %v392 = vpop.f32.mrb[0].mxu0
      %v393 = vadd.f32 0.0, %v392
      %v394 = vpop.f32.mrb[0].mxu0
      %v395 = vadd.f32 0.0, %v394
      %396 = vdwg.mxu0
      %v399 = vunpack.c.l.b16 %v284
      %v400 = vunpack.c.h.b16 %v284
      %v401 = vunpack.c.l.b16 %v285
      %v402 = vunpack.c.h.b16 %v285
      %v403 = vpack.c.b16 %v401, %v399
      %v404 = vpack.c.b16 %v402, %v400
      %v408 = vsel %vm311, %v280, 0
      %v411 = vsel %vm311, %v281, 0
      %v414 = vsel %vm311, %v282, 0
      %v417 = vsel %vm311, %v283, 0
      %419 = vmatprep.subr.bf16.mxu0 %v404
      %420 = vmatpush1.bf16.msra.mxu0 %v403
      %421 = vmatprep.subr.bf16.mxu0 0
      %422 = vmatpush1.bf16.msra.mxu0 0
      %423 = vmatprep.subr.bf16.mxu0 0
      %424 = vmatpush1.bf16.msra.mxu0 0
      %425 = vmatprep.subr.bf16.mxu0 0
      %426 = vmatpush1.bf16.msra.mxu0 0
      %427 = vmatprep.subr.bf16.mxu0 0
      %428 = vmatpush1.bf16.msra.mxu0 0
      %429 = vmatprep.subr.bf16.mxu0 0
      %430 = vmatpush1.bf16.msra.mxu0 0
      %431 = vmatprep.subr.bf16.mxu0 0
      %432 = vmatpush1.bf16.msra.mxu0 0
      %433 = vmatprep.subr.bf16.mxu0 0
      %434 = vmatpush1.bf16.msra.mxu0 0
      %435 = vmatprep.subr.bf16.mxu0 0
      %436 = vmatpush1.bf16.msra.mxu0 0
      %437 = vmatprep.subr.bf16.mxu0 0
      %438 = vmatpush1.bf16.msra.mxu0 0
      %439 = vmatprep.subr.bf16.mxu0 0
      %440 = vmatpush1.bf16.msra.mxu0 0
      %441 = vmatprep.subr.bf16.mxu0 0
      %442 = vmatpush1.bf16.msra.mxu0 0
      %443 = vmatprep.subr.bf16.mxu0 0
      %444 = vmatpush1.bf16.msra.mxu0 0
      %445 = vmatprep.subr.bf16.mxu0 0
      %446 = vmatpush1.bf16.msra.mxu0 0
      %447 = vmatprep.subr.bf16.mxu0 0
      %448 = vmatpush1.bf16.msra.mxu0 0
      %449 = vmatprep.subr.bf16.mxu0 0
      %450 = vmatpush1.bf16.msra.mxu0 0
      %451 = vmatprep.mubr.bf16.mxu0 0
      %452 = vmatmul.mubr.bf16.gmra.mrb[0].mxu0 %v408
      %v453 = vpop.f32.mrb[0].mxu0
      %v454 = vadd.f32 %v359, %v453
      %v455 = vpop.f32.mrb[0].mxu0
      %v456 = vadd.f32 %v361, %v455
      %v457 = vpop.f32.mrb[0].mxu0
      %v458 = vadd.f32 %v363, %v457
      %v459 = vpop.f32.mrb[0].mxu0
      %v460 = vadd.f32 %v365, %v459
      %461 = vmatprep.mubr.bf16.mxu0 0
      %462 = vmatmul.mubr.bf16.gmra.mrb[0].mxu0 %v411
      %v463 = vpop.f32.mrb[0].mxu0
      %v464 = vadd.f32 %v369, %v463
      %v465 = vpop.f32.mrb[0].mxu0
      %v466 = vadd.f32 %v371, %v465
      %v467 = vpop.f32.mrb[0].mxu0
      %v468 = vadd.f32 %v373, %v467
      %v469 = vpop.f32.mrb[0].mxu0
      %v470 = vadd.f32 %v375, %v469
      %471 = vmatprep.mubr.bf16.mxu0 0
      %472 = vmatmul.mubr.bf16.gmra.mrb[0].mxu0 %v414
      %v473 = vpop.f32.mrb[0].mxu0
      %v474 = vadd.f32 %v379, %v473
      %v475 = vpop.f32.mrb[0].mxu0
      %v476 = vadd.f32 %v381, %v475
      %v477 = vpop.f32.mrb[0].mxu0
      %v478 = vadd.f32 %v383, %v477
      %v479 = vpop.f32.mrb[0].mxu0
      %v480 = vadd.f32 %v385, %v479
      %481 = vmatprep.mubr.bf16.mxu0 0
      %482 = vmatmul.mubr.bf16.gmra.mrb[0].mxu0 %v417
      %v483 = vpop.f32.mrb[0].mxu0
      %v484 = vadd.f32 %v389, %v483
      %v485 = vpop.f32.mrb[0].mxu0
      %v486 = vadd.f32 %v391, %v485
      %v487 = vpop.f32.mrb[0].mxu0
      %v488 = vadd.f32 %v393, %v487
      %v489 = vpop.f32.mrb[0].mxu0
      %v490 = vadd.f32 %v395, %v489
      %491 = vdwg.mxu0
      %v492 = vld [vmem:[%s252 + $0x2] sm:$0xff]
      %v493 = vld [vmem:[%s252 + $0xa] sm:$0xff]
      %v494 = vld [vmem:[%s252 + $0x1a] sm:$0xff]
      %v495 = vld [vmem:[%s252 + $0x22] sm:$0xff]
      %v496 = vld [vmem:[%s252 + $0x32] sm:$0xff]
      %v497 = vld [vmem:[%s252 + $0x3a] sm:$0xff]
      %v498 = vld [vmem:[%s252 + $0x4a] sm:$0xff]
      %v499 = vld [vmem:[%s252 + $0x52] sm:$0xff]
      %v500 = vpack.c.bf16 %v493, %v492
      %v501 = vpack.c.bf16 %v495, %v494
      %v502 = vpack.c.bf16 %v497, %v496
      %v503 = vpack.c.bf16 %v499, %v498
      %s504 = scalar_lea.vmem %s1, 32
      %v505 = vld [vmem:[%s504] sm:$0xff]
      %v506 = vld [vmem:[%s504 + $0x8] sm:$0xff]
      %v509 = vunpack.c.l.b16 %v505
      %v510 = vunpack.c.h.b16 %v505
      %v511 = vunpack.c.l.b16 %v506
      %v512 = vunpack.c.h.b16 %v506
      %v513 = vpack.c.b16 %v511, %v509
      %v514 = vpack.c.b16 %v512, %v510
      %v518 = vsel %vm311, %v500, 0
      %v521 = vsel %vm311, %v501, 0
      %v524 = vsel %vm311, %v502, 0
      %v527 = vsel %vm311, %v503, 0
      %529 = vmatprep.subr.bf16.mxu0 %v514
      %530 = vmatpush1.bf16.msra.mxu0 %v513
      %531 = vmatprep.subr.bf16.mxu0 0
      %532 = vmatpush1.bf16.msra.mxu0 0
      %533 = vmatprep.subr.bf16.mxu0 0
      %534 = vmatpush1.bf16.msra.mxu0 0
      %535 = vmatprep.subr.bf16.mxu0 0
      %536 = vmatpush1.bf16.msra.mxu0 0
      %537 = vmatprep.subr.bf16.mxu0 0
      %538 = vmatpush1.bf16.msra.mxu0 0
      %539 = vmatprep.subr.bf16.mxu0 0
      %540 = vmatpush1.bf16.msra.mxu0 0
      %541 = vmatprep.subr.bf16.mxu0 0
      %542 = vmatpush1.bf16.msra.mxu0 0
      %543 = vmatprep.subr.bf16.mxu0 0
      %544 = vmatpush1.bf16.msra.mxu0 0
      %545 = vmatprep.subr.bf16.mxu0 0
      %546 = vmatpush1.bf16.msra.mxu0 0
      %547 = vmatprep.subr.bf16.mxu0 0
      %548 = vmatpush1.bf16.msra.mxu0 0
      %549 = vmatprep.subr.bf16.mxu0 0
      %550 = vmatpush1.bf16.msra.mxu0 0
      %551 = vmatprep.subr.bf16.mxu0 0
      %552 = vmatpush1.bf16.msra.mxu0 0
      %553 = vmatprep.subr.bf16.mxu0 0
      %554 = vmatpush1.bf16.msra.mxu0 0
      %555 = vmatprep.subr.bf16.mxu0 0
      %556 = vmatpush1.bf16.msra.mxu0 0
      %557 = vmatprep.subr.bf16.mxu0 0
      %558 = vmatpush1.bf16.msra.mxu0 0
      %559 = vmatprep.subr.bf16.mxu0 0
      %560 = vmatpush1.bf16.msra.mxu0 0
      %561 = vmatprep.mubr.bf16.mxu0 0
      %562 = vmatmul.mubr.bf16.gmra.mrb[0].mxu0 %v518
      %v563 = vpop.f32.mrb[0].mxu0
      %v564 = vadd.f32 0.0, %v563
      %v565 = vpop.f32.mrb[0].mxu0
      %v566 = vadd.f32 0.0, %v565
      %v567 = vpop.f32.mrb[0].mxu0
      %v568 = vadd.f32 0.0, %v567
      %v569 = vpop.f32.mrb[0].mxu0
      %v570 = vadd.f32 0.0, %v569
      %571 = vmatprep.mubr.bf16.mxu0 0
      %572 = vmatmul.mubr.bf16.gmra.mrb[0].mxu0 %v521
      %v573 = vpop.f32.mrb[0].mxu0
      %v574 = vadd.f32 0.0, %v573
      %v575 = vpop.f32.mrb[0].mxu0
      %v576 = vadd.f32 0.0, %v575
      %v577 = vpop.f32.mrb[0].mxu0
      %v578 = vadd.f32 0.0, %v577
      %v579 = vpop.f32.mrb[0].mxu0
      %v580 = vadd.f32 0.0, %v579
      %581 = vmatprep.mubr.bf16.mxu0 0
      %582 = vmatmul.mubr.bf16.gmra.mrb[0].mxu0 %v524
      %v583 = vpop.f32.mrb[0].mxu0
      %v584 = vadd.f32 0.0, %v583
      %v585 = vpop.f32.mrb[0].mxu0
      %v586 = vadd.f32 0.0, %v585
      %v587 = vpop.f32.mrb[0].mxu0
      %v588 = vadd.f32 0.0, %v587
      %v589 = vpop.f32.mrb[0].mxu0
      %v590 = vadd.f32 0.0, %v589
      %591 = vmatprep.mubr.bf16.mxu0 0
      %592 = vmatmul.mubr.bf16.gmra.mrb[0].mxu0 %v527
      %v593 = vpop.f32.mrb[0].mxu0
      %v594 = vadd.f32 0.0, %v593
      %v595 = vpop.f32.mrb[0].mxu0
      %v596 = vadd.f32 0.0, %v595
      %v597 = vpop.f32.mrb[0].mxu0
      %v598 = vadd.f32 0.0, %v597
      %v599 = vpop.f32.mrb[0].mxu0
      %v600 = vadd.f32 0.0, %v599
      %601 = vdwg.mxu0
      %v602 = vadd.f32 %v454, %v564
      %v603 = vadd.f32 %v456, %v566
      %v604 = vadd.f32 %v458, %v568
      %v605 = vadd.f32 %v460, %v570
      %v606 = vadd.f32 %v464, %v574
      %v607 = vadd.f32 %v466, %v576
      %v608 = vadd.f32 %v468, %v578
      %v609 = vadd.f32 %v470, %v580
      %v610 = vadd.f32 %v474, %v584
      %v611 = vadd.f32 %v476, %v586
      %v612 = vadd.f32 %v478, %v588
      %v613 = vadd.f32 %v480, %v590
      %v614 = vadd.f32 %v484, %v594
      %v615 = vadd.f32 %v486, %v596
      %v616 = vadd.f32 %v488, %v598
      %v617 = vadd.f32 %v490, %v600
      %v618 = vld [vmem:[%s2] sm:$0x3]
      %v620 = vlaneseq
      %v621 = vshrl.u32 %v620, 7
      %v622 = vsub.s32 0, %v621
      %v623 = vrot.slane %v618, %v622
      %v624 = vlaneseq
      %v625 = vshrl.u32 %v624, 7
      %v626 = vsub.s32 1, %v625
      %v627 = vrot.slane %v618, %v626
      %v630 = vadd.f32 %v602, %v623
      %v631 = vadd.f32 %v603, %v627
      %v632 = vadd.f32 %v604, %v623
      %v633 = vadd.f32 %v605, %v627
      %v634 = vadd.f32 %v606, %v623
      %v635 = vadd.f32 %v607, %v627
      %v636 = vadd.f32 %v608, %v623
      %v637 = vadd.f32 %v609, %v627
      %v638 = vadd.f32 %v610, %v623
      %v639 = vadd.f32 %v611, %v627
      %v640 = vadd.f32 %v612, %v623
      %v641 = vadd.f32 %v613, %v627
      %v642 = vadd.f32 %v614, %v623
      %v643 = vadd.f32 %v615, %v627
      %v644 = vadd.f32 %v616, %v623
      %v645 = vadd.f32 %v617, %v627
      %v646 = vxor.u32 %v630, 2147483648
      %v647 = vxor.u32 %v632, 2147483648
      %v648 = vxor.u32 %v634, 2147483648
      %v649 = vxor.u32 %v636, 2147483648
      %v650 = vxor.u32 %v638, 2147483648
      %v651 = vxor.u32 %v640, 2147483648
      %v652 = vxor.u32 %v642, 2147483648
      %v653 = vxor.u32 %v644, 2147483648
      %v654 = vmul.f32 %v646, 1.442695
      %v655 = vpow.pop %v654
      %v656 = vmul.f32 %v647, 1.442695
      %v657 = vpow.pop %v656
      %v658 = vmul.f32 %v648, 1.442695
      %v659 = vpow.pop %v658
      %v660 = vmul.f32 %v649, 1.442695
      %v661 = vpow.pop %v660
      %v662 = vmul.f32 %v650, 1.442695
      %v663 = vpow.pop %v662
      %v664 = vmul.f32 %v651, 1.442695
      %v665 = vpow.pop %v664
      %v666 = vmul.f32 %v652, 1.442695
      %v667 = vpow.pop %v666
      %v668 = vmul.f32 %v653, 1.442695
      %v669 = vpow.pop %v668
      %v670 = vadd.f32 %v655, 1.0
      %v671 = vadd.f32 %v657, 1.0
      %v672 = vadd.f32 %v659, 1.0
      %v673 = vadd.f32 %v661, 1.0
      %v674 = vadd.f32 %v663, 1.0
      %v675 = vadd.f32 %v665, 1.0
      %v676 = vadd.f32 %v667, 1.0
      %v677 = vadd.f32 %v669, 1.0
      %v678 = vrcp.pop %v670
      %v679 = vmul.f32 1.0, %v678
      %v680 = vrcp.pop %v671
      %v681 = vmul.f32 1.0, %v680
      %v682 = vrcp.pop %v672
      %v683 = vmul.f32 1.0, %v682
      %v684 = vrcp.pop %v673
      %v685 = vmul.f32 1.0, %v684
      %v686 = vrcp.pop %v674
      %v687 = vmul.f32 1.0, %v686
      %v688 = vrcp.pop %v675
      %v689 = vmul.f32 1.0, %v688
      %v690 = vrcp.pop %v676
      %v691 = vmul.f32 1.0, %v690
      %v692 = vrcp.pop %v677
      %v693 = vmul.f32 1.0, %v692
      %702 = vrot.lane.b32.xlu0 %v679, 64
      %v703 = vpop.permute.xlu0 %702
      %704 = vrot.lane.b32.xlu0 %v681, 64
      %v705 = vpop.permute.xlu0 %704
      %706 = vrot.lane.b32.xlu0 %v683, 64
      %v707 = vpop.permute.xlu0 %706
      %708 = vrot.lane.b32.xlu0 %v685, 64
      %v709 = vpop.permute.xlu0 %708
      %710 = vrot.lane.b32.xlu0 %v687, 64
      %v711 = vpop.permute.xlu0 %710
      %712 = vrot.lane.b32.xlu0 %v689, 64
      %v713 = vpop.permute.xlu0 %712
      %714 = vrot.lane.b32.xlu0 %v691, 64
      %v715 = vpop.permute.xlu0 %714
      %716 = vrot.lane.b32.xlu0 %v693, 64
      %v717 = vpop.permute.xlu0 %716
      %v726 = vadd.f32 %v630, %v703
      %v727 = vadd.f32 %v632, %v705
      %v728 = vadd.f32 %v634, %v707
      %v729 = vadd.f32 %v636, %v709
      %v730 = vadd.f32 %v638, %v711
      %v731 = vadd.f32 %v640, %v713
      %v732 = vadd.f32 %v642, %v715
      %v733 = vadd.f32 %v644, %v717
      %v734 = vadd.f32 %v726, %v631
      %v735 = vadd.f32 %v727, %v633
      %v736 = vadd.f32 %v728, %v635
      %v737 = vadd.f32 %v729, %v637
      %v738 = vadd.f32 %v730, %v639
      %v739 = vadd.f32 %v731, %v641
      %v740 = vadd.f32 %v732, %v643
      %v741 = vadd.f32 %v733, %v645
      %v742 = vmax.f32 %v734, 0.0
      %v743 = vmax.f32 %v735, 0.0
      %v744 = vmax.f32 %v736, 0.0
      %v745 = vmax.f32 %v737, 0.0
      %v746 = vmax.f32 %v738, 0.0
      %v747 = vmax.f32 %v739, 0.0
      %v748 = vmax.f32 %v740, 0.0
      %v749 = vmax.f32 %v741, 0.0
      %vm750 = vcmask 523264
      %v751 = vsel %vm750, %v742, 0.0
      %752 = vadd.xlane.f32.xlu0 %v751
      %v753 = vpop.xlane.xlu0 %752
      %v754 = vsel %vm750, %v744, 0.0
      %755 = vadd.xlane.f32.xlu0 %v754
      %v756 = vpop.xlane.xlu0 %755
      %v757 = vsel %vm750, %v746, 0.0
      %758 = vadd.xlane.f32.xlu0 %v757
      %v759 = vpop.xlane.xlu0 %758
      %v760 = vsel %vm750, %v748, 0.0
      %761 = vadd.xlane.f32.xlu0 %v760
      %v762 = vpop.xlane.xlu0 %761
      %v763 = vrot.slane %v753, 4
      %v764 = vadd.f32 %v753, %v763
      %v765 = vrot.slane %v764, 2
      %v766 = vadd.f32 %v764, %v765
      %v767 = vrot.slane %v766, 1
      %v768 = vadd.f32 %v766, %v767
      %v769 = vrot.slane %v756, 4
      %v770 = vadd.f32 %v756, %v769
      %v771 = vrot.slane %v770, 2
      %v772 = vadd.f32 %v770, %v771
      %v773 = vrot.slane %v772, 1
      %v774 = vadd.f32 %v772, %v773
      %v775 = vrot.slane %v759, 4
      %v776 = vadd.f32 %v759, %v775
      %v777 = vrot.slane %v776, 2
      %v778 = vadd.f32 %v776, %v777
      %v779 = vrot.slane %v778, 1
      %v780 = vadd.f32 %v778, %v779
      %v781 = vrot.slane %v762, 4
      %v782 = vadd.f32 %v762, %v781
      %v783 = vrot.slane %v782, 2
      %v784 = vadd.f32 %v782, %v783
      %v785 = vrot.slane %v784, 1
      %v786 = vadd.f32 %v784, %v785
      %v787 = vadd.f32 %v768, %v774
      %v788 = vadd.f32 %v780, %v786
      %v789 = vmul.f32 %v787, 0.0009765625
      %v790 = vmul.f32 %v788, 0.0009765625
      %v791 = vsub.f32 %v742, %v789
      %v792 = vsub.f32 %v744, %v789
      %v793 = vsub.f32 %v746, %v790
      %v794 = vsub.f32 %v748, %v790
      %v795 = vmul.f32 %v791, %v791
      %v796 = vmul.f32 %v792, %v792
      %v797 = vmul.f32 %v793, %v793
      %v798 = vmul.f32 %v794, %v794
      %v799 = vsel %vm750, %v795, 0.0
      %800 = vadd.xlane.f32.xlu0 %v799
      %v801 = vpop.xlane.xlu0 %800
      %v802 = vsel %vm750, %v796, 0.0
      %803 = vadd.xlane.f32.xlu0 %v802
      %v804 = vpop.xlane.xlu0 %803
      %v805 = vsel %vm750, %v797, 0.0
      %806 = vadd.xlane.f32.xlu0 %v805
      %v807 = vpop.xlane.xlu0 %806
      %v808 = vsel %vm750, %v798, 0.0
      %809 = vadd.xlane.f32.xlu0 %v808
      %v810 = vpop.xlane.xlu0 %809
      %v811 = vrot.slane %v801, 4
      %v812 = vadd.f32 %v801, %v811
      %v813 = vrot.slane %v812, 2
      %v814 = vadd.f32 %v812, %v813
      %v815 = vrot.slane %v814, 1
      %v816 = vadd.f32 %v814, %v815
      %v817 = vrot.slane %v804, 4
      %v818 = vadd.f32 %v804, %v817
      %v819 = vrot.slane %v818, 2
      %v820 = vadd.f32 %v818, %v819
      %v821 = vrot.slane %v820, 1
      %v822 = vadd.f32 %v820, %v821
      %v823 = vrot.slane %v807, 4
      %v824 = vadd.f32 %v807, %v823
      %v825 = vrot.slane %v824, 2
      %v826 = vadd.f32 %v824, %v825
      %v827 = vrot.slane %v826, 1
      %v828 = vadd.f32 %v826, %v827
      %v829 = vrot.slane %v810, 4
      %v830 = vadd.f32 %v810, %v829
      %v831 = vrot.slane %v830, 2
      %v832 = vadd.f32 %v830, %v831
      %v833 = vrot.slane %v832, 1
      %v834 = vadd.f32 %v832, %v833
      %v835 = vadd.f32 %v816, %v822
      %v836 = vadd.f32 %v828, %v834
      %v837 = vmul.f32 %v835, 0.0009765625
      %v838 = vmul.f32 %v836, 0.0009765625
      %v839 = vadd.f32 %v837, 1e-05
      %v840 = vadd.f32 %v838, 1e-05
      %v841 = vrsqrt.pop %v839
      %v842 = vrsqrt.pop %v840
      %v843 = vld [vmem:[%s257] sm:$0x1]
      %v844 = vld [vmem:[%s257 + $0x1] sm:$0x1]
      %v845 = vmul.f32 %v841, %v843
      %v846 = vmul.f32 %v842, %v844
      %v847 = vld [vmem:[%s262] sm:$0x1]
      %v848 = vld [vmem:[%s262 + $0x1] sm:$0x1]
      %v849 = vmul.f32 %v789, %v845
      %v850 = vmul.f32 %v790, %v846
      %v851 = vsub.f32 %v847, %v849
      %v852 = vsub.f32 %v848, %v850
      %v855 = vlaneseq
      %v856 = vshrl.u32 %v855, 7
      %v857 = vsub.s32 0, %v856
      %v858 = vrot.slane %v845, %v857
      %v859 = vlaneseq
      %v860 = vshrl.u32 %v859, 7
      %v861 = vsub.s32 0, %v860
      %v862 = vrot.slane %v846, %v861
      %863 = vset.pattern.permute.xlu0 0
      %864 = vperm.xlu0 %863, %v858
      %v865 = vpop.permute.xlu0 %864
      %867 = vset.pattern.permute.xlu0 0
      %868 = vperm.xlu0 %867, %v862
      %v869 = vpop.permute.xlu0 %868
      %v871 = vmul.f32 %v742, %v865
      %v872 = vmul.f32 %v743, %v865
      %v873 = vmul.f32 %v744, %v865
      %v874 = vmul.f32 %v745, %v865
      %v875 = vmul.f32 %v746, %v869
      %v876 = vmul.f32 %v747, %v869
      %v877 = vmul.f32 %v748, %v869
      %v878 = vmul.f32 %v749, %v869
      %v881 = vlaneseq
      %v882 = vshrl.u32 %v881, 7
      %v883 = vsub.s32 0, %v882
      %v884 = vrot.slane %v851, %v883
      %v885 = vlaneseq
      %v886 = vshrl.u32 %v885, 7
      %v887 = vsub.s32 0, %v886
      %v888 = vrot.slane %v852, %v887
      %889 = vset.pattern.permute.xlu0 0
      %890 = vperm.xlu0 %889, %v884
      %v891 = vpop.permute.xlu0 %890
      %893 = vset.pattern.permute.xlu0 0
      %894 = vperm.xlu0 %893, %v888
      %v895 = vpop.permute.xlu0 %894
      %v897 = vadd.f32 %v871, %v891
      %v898 = vadd.f32 %v872, %v891
      %v899 = vadd.f32 %v873, %v891
      %v900 = vadd.f32 %v874, %v891
      %v901 = vadd.f32 %v875, %v895
      %v902 = vadd.f32 %v876, %v895
      %v903 = vadd.f32 %v877, %v895
      %v904 = vadd.f32 %v878, %v895
      %905 = vst.msk [vmem:[%s269] sm:$0xff] %vm750, %v897
      %906 = vst.msk [vmem:[%s269 + $0x8] sm:$0xff] %vm750, %v898
      %907 = vst.msk [vmem:[%s269 + $0x18] sm:$0xff] %vm750, %v899
      %908 = vst.msk [vmem:[%s269 + $0x20] sm:$0xff] %vm750, %v900
      %909 = vst.msk [vmem:[%s269 + $0x30] sm:$0xff] %vm750, %v901
      %910 = vst.msk [vmem:[%s269 + $0x38] sm:$0xff] %vm750, %v902
      %911 = vst.msk [vmem:[%s269 + $0x48] sm:$0xff] %vm750, %v903
      %912 = vst.msk [vmem:[%s269 + $0x50] sm:$0xff] %vm750, %v904
      %913 = vst.msk [vmem:[%s269 + $0x10] sm:$0xff] %vm750, 0.0
      %914 = vst.msk [vmem:[%s269 + $0x28] sm:$0xff] %vm750, 0.0
      %915 = vst.msk [vmem:[%s269 + $0x40] sm:$0xff] %vm750, 0.0
      %916 = vst.msk [vmem:[%s269 + $0x58] sm:$0xff] %vm750, 0.0
      %s917 = smul.u32 2, %s16
      %p918 = scmp.lt.s32.totalorder %s917, 7
      %s919 = scalar_select %p918, %s917, 7
      %s920 = smul.addr %s919, 6
      %s921 = smul.addr %s920, 8
      %s922 = scalar_lea.vmem %s5, %s921
      // Predicated region
      $region41: #{stgcn_forward.12} parent=39 // pred_check
        %p923 = pneg %p154
      $region42: #{stgcn_forward.12} parent=39 // pred_check_branch
        %925 = sbr.rel (%p923) target = $region44
      $region43: #{stgcn_forward.12} parent=39 // pred_region
        %s926 = smul.u32 2, %s16
      $region44: #{stgcn_forward.12} parent=39 // pred_fallthru
        _
    $region40: #{stgcn_forward.12} parent=5 // pred_fallthru
      _
    %p927 = scmp.le.s32.totalorder 2, %s11
    // Predicated region
    $region45: #{stgcn_forward.12} parent=5 // pred_check
      %p928 = pneg %p927
    $region46: #{stgcn_forward.12} parent=5 // pred_check_branch
      %930 = sbr.rel (%p928) target = $region48
    $region47: #{stgcn_forward.12} parent=5 // pred_region
      %s931 = ssub.s32 %s11, 2
      // Predicated region
      $region49: #{stgcn_forward.12} parent=47 // pred_check
        %p932 = pneg %p160
      $region50: #{stgcn_forward.12} parent=47 // pred_check_branch
        %934 = sbr.rel (%p932) target = $region52
      $region51: #{stgcn_forward.12} parent=47 // pred_region
        %s935 = smul.u32 2, %s17
        %p936 = scmp.lt.s32.totalorder %s935, 7
        %s937 = scalar_select %p936, %s935, 7
        %s938 = smul.addr %s937, 6
        %s939 = smul.addr %s938, 8
        %s940 = scalar_lea.vmem %s5, %s939
      $region52: #{stgcn_forward.12} parent=47 // pred_fallthru
        _
    $region48: #{stgcn_forward.12} parent=5 // pred_fallthru
      _
  $region6: #{stgcn_forward.12} parent=0 // loop_footer
    %s15 = sadd.s32 1, %s11
  $region7: #{stgcn_forward.12} parent=0 // loop_footer_branch
    %10 = sbr.rel target = $region3
  $region8: #{stgcn_forward.12} parent=0 // loop_exit
    _

// kernel: stgcn_forward.13
$region0: #{stgcn_forward.13}
  #allocation0 [shape = 'u32[]', space=smem, size = 0x4, offset = 0x4, fixed_abs, tag = 'smem constant byte address 0x4 - core index']
  #allocation1 [shape = 'u32[144,128]{1,0:T(1,128)}', space=vmem, size = 0x12000, scoped, tag = 'internal scratch']
  %s0 = inlined_call_operand.vmem [shape: f32[8,2,24,64], index: 0, kind: input, shape index: {}]
  %s1 = inlined_call_operand.vmem [shape: bf16[3,64,192], index: 1, kind: input, shape index: {}]
  %s2 = inlined_call_operand.vmem [shape: f32[1,192], index: 2, kind: input, shape index: {}]
  %s3 = inlined_call_operand.vmem [shape: f32[8,2,24,64], index: 3, kind: output, shape index: {}]
  %s4 = sld [smem:[#allocation0]]
  $region45: #{stgcn_forward.13} parent=0
    _
  %s6 = ssub.s32 1, %s4
  %s7 = scalar_select 0, %s6, %s4
  loop: start=0, step=1, limit=6
  $region2: #{stgcn_forward.13} parent=0 // loop_pre_header
    _
  $region3: #{stgcn_forward.13} parent=0 // loop_header
    %s9 = sphi 0, %s13
    %p10 = scmp.ge.s32.totalorder %s9, 6
    %s19 = sphi 0, %s21
    %s22 = sphi 0, %s19
    %s23 = sphi 0, %s22
    %s39 = sphi 0, %s23
    %s43 = sphi 0, %s43
    %s45 = sphi 0, %s43
    %s46 = sphi 0, %s45
    %s60 = sphi 0, %s46
    %s64 = sphi 0, %s64
    %s66 = sphi 0, %s64
    %s67 = sphi 0, %s66
    %s81 = sphi 0, %s67
    %s87 = sphi 0, %s89
    %s90 = sphi 0, %s87
    %s91 = sphi 0, %s90
    %s107 = sphi 0, %s91
  $region4: #{stgcn_forward.13} parent=0 // loop_header_branch
    %12 = sbr.rel (%p10) target = $region8
  $region5: #{stgcn_forward.13} parent=0 // loop_body
    %s14 = ssub.s32 %s9, 1
    %s15 = ssub.s32 %s9, 2
    %s16 = sadd.s32 %s9, 1
    %s17 = ssub.s32 %s9, %s16
    %p18 = scmp.eq.s32.totalorder %s17, 0
    %s20 = sadd.s32 %s19, 1
    %s21 = scalar_select %p18, %s19, %s20
    %p24 = pneg %p18
    %p25 = scmp.eq.s32.totalorder %s9, 3
    %p26 = por %p24, %p25
    %p27 = scmp.ne.s32.totalorder %s19, %s22
    %p28 = scmp.eq.s32.totalorder %s9, 0
    %p29 = por %p27, %p28
    %p30 = scmp.ne.s32.totalorder %s19, %s22
    %p31 = scmp.eq.s32.totalorder %s14, 3
    %p32 = por %p30, %p31
    %p33 = scmp.ne.s32.totalorder %s22, %s23
    %p34 = scmp.eq.s32.totalorder %s14, 0
    %p35 = por %p33, %p34
    %p36 = scmp.ne.s32.totalorder %s22, %s23
    %p37 = scmp.eq.s32.totalorder %s15, 3
    %p38 = por %p36, %p37
    %p40 = scmp.ne.s32.totalorder %s23, %s39
    %p41 = scmp.eq.s32.totalorder %s15, 0
    %p42 = por %p40, %p41
    %s44 = sadd.s32 %s43, 1
    %p47 = scmp.eq.s32.totalorder %s9, 3
    %p48 = scmp.ne.s32.totalorder %s43, %s45
    %p49 = scmp.eq.s32.totalorder %s9, 0
    %p50 = por %p48, %p49
    %p51 = scmp.ne.s32.totalorder %s43, %s45
    %p52 = scmp.eq.s32.totalorder %s14, 3
    %p53 = por %p51, %p52
    %p54 = scmp.ne.s32.totalorder %s45, %s46
    %p55 = scmp.eq.s32.totalorder %s14, 0
    %p56 = por %p54, %p55
    %p57 = scmp.ne.s32.totalorder %s45, %s46
    %p58 = scmp.eq.s32.totalorder %s15, 3
    %p59 = por %p57, %p58
    %p61 = scmp.ne.s32.totalorder %s46, %s60
    %p62 = scmp.eq.s32.totalorder %s15, 0
    %p63 = por %p61, %p62
    %s65 = sadd.s32 %s64, 1
    %p68 = scmp.eq.s32.totalorder %s9, 3
    %p69 = scmp.ne.s32.totalorder %s64, %s66
    %p70 = scmp.eq.s32.totalorder %s9, 0
    %p71 = por %p69, %p70
    %p72 = scmp.ne.s32.totalorder %s64, %s66
    %p73 = scmp.eq.s32.totalorder %s14, 3
    %p74 = por %p72, %p73
    %p75 = scmp.ne.s32.totalorder %s66, %s67
    %p76 = scmp.eq.s32.totalorder %s14, 0
    %p77 = por %p75, %p76
    %p78 = scmp.ne.s32.totalorder %s66, %s67
    %p79 = scmp.eq.s32.totalorder %s15, 3
    %p80 = por %p78, %p79
    %p82 = scmp.ne.s32.totalorder %s67, %s81
    %p83 = scmp.eq.s32.totalorder %s15, 0
    %p84 = por %p82, %p83
    %s85 = ssub.s32 %s9, %s16
    %p86 = scmp.eq.s32.totalorder %s85, 0
    %s88 = sadd.s32 %s87, 1
    %s89 = scalar_select %p86, %s87, %s88
    %p92 = pneg %p86
    %p93 = scmp.eq.s32.totalorder %s9, 3
    %p94 = por %p92, %p93
    %p95 = scmp.ne.s32.totalorder %s87, %s90
    %p96 = scmp.eq.s32.totalorder %s9, 0
    %p97 = por %p95, %p96
    %p98 = scmp.ne.s32.totalorder %s87, %s90
    %p99 = scmp.eq.s32.totalorder %s14, 3
    %p100 = por %p98, %p99
    %p101 = scmp.ne.s32.totalorder %s90, %s91
    %p102 = scmp.eq.s32.totalorder %s14, 0
    %p103 = por %p101, %p102
    %p104 = scmp.ne.s32.totalorder %s90, %s91
    %p105 = scmp.eq.s32.totalorder %s15, 3
    %p106 = por %p104, %p105
    %p108 = scmp.ne.s32.totalorder %s91, %s107
    %p109 = scmp.eq.s32.totalorder %s15, 0
    %p110 = por %p108, %p109
    %p111 = scmp.le.s32.totalorder 1, %s9
    %p112 = scmp.lt.s32.totalorder %s9, 5
    %p113 = pnand %p111, %p112
    %p114 = pneg %p113
    // Predicated region
    $region9: #{stgcn_forward.13} parent=5 // pred_check
      _
    $region10: #{stgcn_forward.13} parent=5 // pred_check_branch
      %116 = sbr.rel (%p113) target = $region12
    $region11: #{stgcn_forward.13} parent=5 // pred_region
      %s117 = ssub.s32 %s9, 1
      // Predicated region
      $region13: #{stgcn_forward.13} parent=11 // pred_check
        %p118 = pneg %p56
      $region14: #{stgcn_forward.13} parent=11 // pred_check_branch
        %120 = sbr.rel (%p118) target = $region16
      $region15: #{stgcn_forward.13} parent=11 // pred_region
        _
      $region16: #{stgcn_forward.13} parent=11 // pred_fallthru
        _
      // Predicated region
      $region17: #{stgcn_forward.13} parent=11 // pred_check
        %p121 = pneg %p77
      $region18: #{stgcn_forward.13} parent=11 // pred_check_branch
        %123 = sbr.rel (%p121) target = $region20
      $region19: #{stgcn_forward.13} parent=11 // pred_region
        _
      $region20: #{stgcn_forward.13} parent=11 // pred_fallthru
        _
    $region12: #{stgcn_forward.13} parent=5 // pred_fallthru
      _
    %p124 = scmp.lt.s32.totalorder %s9, 4
    // Predicated region
    $region21: #{stgcn_forward.13} parent=5 // pred_check
      %p125 = pneg %p124
    $region22: #{stgcn_forward.13} parent=5 // pred_check_branch
      %127 = sbr.rel (%p125) target = $region24
    $region23: #{stgcn_forward.13} parent=5 // pred_region
      // Predicated region
      $region25: #{stgcn_forward.13} parent=23 // pred_check
        %p128 = pneg %p29
      $region26: #{stgcn_forward.13} parent=23 // pred_check_branch
        %130 = sbr.rel (%p128) target = $region28
      $region27: #{stgcn_forward.13} parent=23 // pred_region
        %s131 = smul.u32 2, %s9
        %p132 = scmp.lt.s32.totalorder %s131, 7
        %s133 = scalar_select %p132, %s131, 7
        %s134 = smul.addr %s133, 6
        %s135 = smul.addr %s134, 8
        %s136 = scalar_lea.vmem %s0, %s135
        %s137 = smul.u32 2, %s9
      $region28: #{stgcn_forward.13} parent=23 // pred_fallthru
        _
    $region24: #{stgcn_forward.13} parent=5 // pred_fallthru
      _
    %p138 = scmp.le.s32.totalorder 1, %s9
    %p139 = scmp.lt.s32.totalorder %s9, 5
    %p140 = pnand %p138, %p139
    %p141 = pneg %p140
    // Predicated region
    $region29: #{stgcn_forward.13} parent=5 // pred_check
      _
    $region30: #{stgcn_forward.13} parent=5 // pred_check_branch
      %143 = sbr.rel (%p140) target = $region32
    $region31: #{stgcn_forward.13} parent=5 // pred_region
      %s144 = ssub.s32 %s9, 1
      %s145 = smul.u32 2, %s14
      %p146 = scmp.lt.s32.totalorder %s145, 7
      %s147 = scalar_select %p146, %s145, 7
      %s148 = smul.addr %s147, 6
      %s149 = smul.addr %s148, 8
      %s150 = scalar_lea.vmem %s0, %s149
      %p151 = pneg %p35
      %p152 = pneg %p32
      %p153 = pneg %p56
      %p154 = pneg %p53
      %p155 = pneg %p77
      %p156 = pneg %p74
      %p157 = pneg %p103
      %p158 = pneg %p100
      %s159 = smul.u32 2, %s14
      %p160 = scmp.lt.s32.totalorder %s159, 7
      %s161 = scalar_select %p160, %s159, 7
      %s162 = smul.addr %s161, 6
      %s163 = smul.addr %s162, 8
      %s164 = scalar_lea.vmem %s3, %s163
      %s165 = smul.u32 2, %s14
      %p166 = scmp.lt.s32.totalorder %s165, 7
      %s167 = scalar_select %p166, %s165, 7
      %s168 = smul.addr %s167, 6
      %s169 = smul.addr %s168, 8
      %s170 = scalar_lea.vmem %s0, %s169
      %s171 = smul.u32 2, %s14
      %s172 = smul.u32 2, %s14
      %p173 = scmp.lt.s32.totalorder %s172, 7
      %s174 = scalar_select %p173, %s172, 7
      %s175 = smul.addr %s174, 6
      %s176 = smul.addr %s175, 8
      %s177 = scalar_lea.vmem %s3, %s176
      %s178 = smul.u32 2, %s14
      %v180 = vld [vmem:[%s170] sm:$0xff]
      %v181 = vld [vmem:[%s170 + $0x8] sm:$0xff]
      %v182 = vld [vmem:[%s170 + $0x18] sm:$0xff]
      %v183 = vld [vmem:[%s170 + $0x20] sm:$0xff]
      %v184 = vld [vmem:[%s170 + $0x30] sm:$0xff]
      %v185 = vld [vmem:[%s170 + $0x38] sm:$0xff]
      %v186 = vld [vmem:[%s170 + $0x48] sm:$0xff]
      %v187 = vld [vmem:[%s170 + $0x50] sm:$0xff]
      %v188 = vpack.c.bf16 %v181, %v180
      %v189 = vpack.c.bf16 %v183, %v182
      %v190 = vpack.c.bf16 %v185, %v184
      %v191 = vpack.c.bf16 %v187, %v186
      %v192 = vld [vmem:[%s1] sm:$0xff]
      %v193 = vld [vmem:[%s1 + $0x8] sm:$0xff]
      %v194 = vld [vmem:[%s1 + $0x10] sm:$0xff]
      %v195 = vld [vmem:[%s1 + $0x18] sm:$0xff]
      %v196 = vld [vmem:[%s1 + $0x20] sm:$0xff]
      %v197 = vld [vmem:[%s1 + $0x28] sm:$0xff]
      %v198 = vld [vmem:[%s1 + $0x30] sm:$0xff]
      %v199 = vld [vmem:[%s1 + $0x38] sm:$0xff]
      %v200 = vld [vmem:[%s170 + $0x1] sm:$0xff]
      %v201 = vld [vmem:[%s170 + $0x9] sm:$0xff]
      %v202 = vld [vmem:[%s170 + $0x19] sm:$0xff]
      %v203 = vld [vmem:[%s170 + $0x21] sm:$0xff]
      %v204 = vld [vmem:[%s170 + $0x31] sm:$0xff]
      %v205 = vld [vmem:[%s170 + $0x39] sm:$0xff]
      %v206 = vld [vmem:[%s170 + $0x49] sm:$0xff]
      %v207 = vld [vmem:[%s170 + $0x51] sm:$0xff]
      %v208 = vpack.c.bf16 %v201, %v200
      %v209 = vpack.c.bf16 %v203, %v202
      %v210 = vpack.c.bf16 %v205, %v204
      %v211 = vpack.c.bf16 %v207, %v206
      %s212 = scalar_lea.vmem %s1, 64
      %v213 = vld [vmem:[%s212] sm:$0xff]
      %v214 = vld [vmem:[%s212 + $0x8] sm:$0xff]
      %v215 = vld [vmem:[%s212 + $0x10] sm:$0xff]
      %v216 = vld [vmem:[%s212 + $0x18] sm:$0xff]
      %v217 = vld [vmem:[%s212 + $0x20] sm:$0xff]
      %v218 = vld [vmem:[%s212 + $0x28] sm:$0xff]
      %v219 = vld [vmem:[%s212 + $0x30] sm:$0xff]
      %v220 = vld [vmem:[%s212 + $0x38] sm:$0xff]
      %v229 = vunpack.c.l.b16 %v213
      %v230 = vunpack.c.h.b16 %v213
      %v231 = vunpack.c.l.b16 %v214
      %v232 = vunpack.c.h.b16 %v214
      %v233 = vunpack.c.l.b16 %v215
      %v234 = vunpack.c.h.b16 %v215
      %v235 = vunpack.c.l.b16 %v216
      %v236 = vunpack.c.h.b16 %v216
      %v237 = vunpack.c.l.b16 %v217
      %v238 = vunpack.c.h.b16 %v217
      %v239 = vunpack.c.l.b16 %v218
      %v240 = vunpack.c.h.b16 %v218
      %v241 = vunpack.c.l.b16 %v219
      %v242 = vunpack.c.h.b16 %v219
      %v243 = vunpack.c.l.b16 %v220
      %v244 = vunpack.c.h.b16 %v220
      %v245 = vpack.c.b16 %v231, %v229
      %v246 = vpack.c.b16 %v232, %v230
      %v247 = vpack.c.b16 %v235, %v233
      %v248 = vpack.c.b16 %v236, %v234
      %v249 = vpack.c.b16 %v239, %v237
      %v250 = vpack.c.b16 %v240, %v238
      %v251 = vpack.c.b16 %v243, %v241
      %v252 = vpack.c.b16 %v244, %v242
      %vm261 = vcmask 523264
      %v263 = vsel %vm261, %v208, 0
      %v266 = vsel %vm261, %v209, 0
      %v269 = vsel %vm261, %v210, 0
      %v272 = vsel %vm261, %v211, 0
      %274 = vmatprep.subr.bf16.mxu0 %v246
      %275 = vmatpush1.bf16.msra.mxu0 %v245
      %276 = vmatprep.subr.bf16.mxu0 %v248
      %277 = vmatpush1.bf16.msra.mxu0 %v247
      %278 = vmatprep.subr.bf16.mxu0 %v250
      %279 = vmatpush1.bf16.msra.mxu0 %v249
      %280 = vmatprep.subr.bf16.mxu0 %v252
      %281 = vmatpush1.bf16.msra.mxu0 %v251
      %282 = vmatprep.subr.bf16.mxu0 0
      %283 = vmatpush1.bf16.msra.mxu0 0
      %284 = vmatprep.subr.bf16.mxu0 0
      %285 = vmatpush1.bf16.msra.mxu0 0
      %286 = vmatprep.subr.bf16.mxu0 0
      %287 = vmatpush1.bf16.msra.mxu0 0
      %288 = vmatprep.subr.bf16.mxu0 0
      %289 = vmatpush1.bf16.msra.mxu0 0
      %290 = vmatprep.subr.bf16.mxu0 0
      %291 = vmatpush1.bf16.msra.mxu0 0
      %292 = vmatprep.subr.bf16.mxu0 0
      %293 = vmatpush1.bf16.msra.mxu0 0
      %294 = vmatprep.subr.bf16.mxu0 0
      %295 = vmatpush1.bf16.msra.mxu0 0
      %296 = vmatprep.subr.bf16.mxu0 0
      %297 = vmatpush1.bf16.msra.mxu0 0
      %298 = vmatprep.subr.bf16.mxu0 0
      %299 = vmatpush1.bf16.msra.mxu0 0
      %300 = vmatprep.subr.bf16.mxu0 0
      %301 = vmatpush1.bf16.msra.mxu0 0
      %302 = vmatprep.subr.bf16.mxu0 0
      %303 = vmatpush1.bf16.msra.mxu0 0
      %304 = vmatprep.subr.bf16.mxu0 0
      %305 = vmatpush1.bf16.msra.mxu0 0
      %306 = vmatprep.mubr.bf16.mxu0 0
      %307 = vmatmul.mubr.bf16.gmra.mrb[0].mxu0 %v263
      %v308 = vpop.f32.mrb[0].mxu0
      %v309 = vadd.f32 0.0, %v308
      %v310 = vpop.f32.mrb[0].mxu0
      %v311 = vadd.f32 0.0, %v310
      %v312 = vpop.f32.mrb[0].mxu0
      %v313 = vadd.f32 0.0, %v312
      %v314 = vpop.f32.mrb[0].mxu0
      %v315 = vadd.f32 0.0, %v314
      %316 = vmatprep.mubr.bf16.mxu0 0
      %317 = vmatmul.mubr.bf16.gmra.mrb[0].mxu0 %v266
      %v318 = vpop.f32.mrb[0].mxu0
      %v319 = vadd.f32 0.0, %v318
      %v320 = vpop.f32.mrb[0].mxu0
      %v321 = vadd.f32 0.0, %v320
      %v322 = vpop.f32.mrb[0].mxu0
      %v323 = vadd.f32 0.0, %v322
      %v324 = vpop.f32.mrb[0].mxu0
      %v325 = vadd.f32 0.0, %v324
      %326 = vmatprep.mubr.bf16.mxu0 0
      %327 = vmatmul.mubr.bf16.gmra.mrb[0].mxu0 %v269
      %v328 = vpop.f32.mrb[0].mxu0
      %v329 = vadd.f32 0.0, %v328
      %v330 = vpop.f32.mrb[0].mxu0
      %v331 = vadd.f32 0.0, %v330
      %v332 = vpop.f32.mrb[0].mxu0
      %v333 = vadd.f32 0.0, %v332
      %v334 = vpop.f32.mrb[0].mxu0
      %v335 = vadd.f32 0.0, %v334
      %336 = vmatprep.mubr.bf16.mxu0 0
      %337 = vmatmul.mubr.bf16.gmra.mrb[0].mxu0 %v272
      %v338 = vpop.f32.mrb[0].mxu0
      %v339 = vadd.f32 0.0, %v338
      %v340 = vpop.f32.mrb[0].mxu0
      %v341 = vadd.f32 0.0, %v340
      %v342 = vpop.f32.mrb[0].mxu0
      %v343 = vadd.f32 0.0, %v342
      %v344 = vpop.f32.mrb[0].mxu0
      %v345 = vadd.f32 0.0, %v344
      %346 = vdwg.mxu0
      %v355 = vunpack.c.l.b16 %v192
      %v356 = vunpack.c.h.b16 %v192
      %v357 = vunpack.c.l.b16 %v193
      %v358 = vunpack.c.h.b16 %v193
      %v359 = vunpack.c.l.b16 %v194
      %v360 = vunpack.c.h.b16 %v194
      %v361 = vunpack.c.l.b16 %v195
      %v362 = vunpack.c.h.b16 %v195
      %v363 = vunpack.c.l.b16 %v196
      %v364 = vunpack.c.h.b16 %v196
      %v365 = vunpack.c.l.b16 %v197
      %v366 = vunpack.c.h.b16 %v197
      %v367 = vunpack.c.l.b16 %v198
      %v368 = vunpack.c.h.b16 %v198
      %v369 = vunpack.c.l.b16 %v199
      %v370 = vunpack.c.h.b16 %v199
      %v371 = vpack.c.b16 %v357, %v355
      %v372 = vpack.c.b16 %v358, %v356
      %v373 = vpack.c.b16 %v361, %v359
      %v374 = vpack.c.b16 %v362, %v360
      %v375 = vpack.c.b16 %v365, %v363
      %v376 = vpack.c.b16 %v366, %v364
      %v377 = vpack.c.b16 %v369, %v367
      %v378 = vpack.c.b16 %v370, %v368
      %v388 = vsel %vm261, %v188, 0
      %v391 = vsel %vm261, %v189, 0
      %v394 = vsel %vm261, %v190, 0
      %v397 = vsel %vm261, %v191, 0
      %399 = vmatprep.subr.bf16.mxu0 %v372
      %400 = vmatpush1.bf16.msra.mxu0 %v371
      %401 = vmatprep.subr.bf16.mxu0 %v374
      %402 = vmatpush1.bf16.msra.mxu0 %v373
      %403 = vmatprep.subr.bf16.mxu0 %v376
      %404 = vmatpush1.bf16.msra.mxu0 %v375
      %405 = vmatprep.subr.bf16.mxu0 %v378
      %406 = vmatpush1.bf16.msra.mxu0 %v377
      %407 = vmatprep.subr.bf16.mxu0 0
      %408 = vmatpush1.bf16.msra.mxu0 0
      %409 = vmatprep.subr.bf16.mxu0 0
      %410 = vmatpush1.bf16.msra.mxu0 0
      %411 = vmatprep.subr.bf16.mxu0 0
      %412 = vmatpush1.bf16.msra.mxu0 0
      %413 = vmatprep.subr.bf16.mxu0 0
      %414 = vmatpush1.bf16.msra.mxu0 0
      %415 = vmatprep.subr.bf16.mxu0 0
      %416 = vmatpush1.bf16.msra.mxu0 0
      %417 = vmatprep.subr.bf16.mxu0 0
      %418 = vmatpush1.bf16.msra.mxu0 0
      %419 = vmatprep.subr.bf16.mxu0 0
      %420 = vmatpush1.bf16.msra.mxu0 0
      %421 = vmatprep.subr.bf16.mxu0 0
      %422 = vmatpush1.bf16.msra.mxu0 0
      %423 = vmatprep.subr.bf16.mxu0 0
      %424 = vmatpush1.bf16.msra.mxu0 0
      %425 = vmatprep.subr.bf16.mxu0 0
      %426 = vmatpush1.bf16.msra.mxu0 0
      %427 = vmatprep.subr.bf16.mxu0 0
      %428 = vmatpush1.bf16.msra.mxu0 0
      %429 = vmatprep.subr.bf16.mxu0 0
      %430 = vmatpush1.bf16.msra.mxu0 0
      %431 = vmatprep.mubr.bf16.mxu0 0
      %432 = vmatmul.mubr.bf16.gmra.mrb[0].mxu0 %v388
      %v433 = vpop.f32.mrb[0].mxu0
      %v434 = vadd.f32 %v309, %v433
      %v435 = vpop.f32.mrb[0].mxu0
      %v436 = vadd.f32 %v311, %v435
      %v437 = vpop.f32.mrb[0].mxu0
      %v438 = vadd.f32 %v313, %v437
      %v439 = vpop.f32.mrb[0].mxu0
      %v440 = vadd.f32 %v315, %v439
      %441 = vmatprep.mubr.bf16.mxu0 0
      %442 = vmatmul.mubr.bf16.gmra.mrb[0].mxu0 %v391
      %v443 = vpop.f32.mrb[0].mxu0
      %v444 = vadd.f32 %v319, %v443
      %v445 = vpop.f32.mrb[0].mxu0
      %v446 = vadd.f32 %v321, %v445
      %v447 = vpop.f32.mrb[0].mxu0
      %v448 = vadd.f32 %v323, %v447
      %v449 = vpop.f32.mrb[0].mxu0
      %v450 = vadd.f32 %v325, %v449
      %451 = vmatprep.mubr.bf16.mxu0 0
      %452 = vmatmul.mubr.bf16.gmra.mrb[0].mxu0 %v394
      %v453 = vpop.f32.mrb[0].mxu0
      %v454 = vadd.f32 %v329, %v453
      %v455 = vpop.f32.mrb[0].mxu0
      %v456 = vadd.f32 %v331, %v455
      %v457 = vpop.f32.mrb[0].mxu0
      %v458 = vadd.f32 %v333, %v457
      %v459 = vpop.f32.mrb[0].mxu0
      %v460 = vadd.f32 %v335, %v459
      %461 = vmatprep.mubr.bf16.mxu0 0
      %462 = vmatmul.mubr.bf16.gmra.mrb[0].mxu0 %v397
      %v463 = vpop.f32.mrb[0].mxu0
      %v464 = vadd.f32 %v339, %v463
      %v465 = vpop.f32.mrb[0].mxu0
      %v466 = vadd.f32 %v341, %v465
      %v467 = vpop.f32.mrb[0].mxu0
      %v468 = vadd.f32 %v343, %v467
      %v469 = vpop.f32.mrb[0].mxu0
      %v470 = vadd.f32 %v345, %v469
      %471 = vdwg.mxu0
      %v472 = vld [vmem:[%s170 + $0x2] sm:$0xff]
      %v473 = vld [vmem:[%s170 + $0xa] sm:$0xff]
      %v474 = vld [vmem:[%s170 + $0x1a] sm:$0xff]
      %v475 = vld [vmem:[%s170 + $0x22] sm:$0xff]
      %v476 = vld [vmem:[%s170 + $0x32] sm:$0xff]
      %v477 = vld [vmem:[%s170 + $0x3a] sm:$0xff]
      %v478 = vld [vmem:[%s170 + $0x4a] sm:$0xff]
      %v479 = vld [vmem:[%s170 + $0x52] sm:$0xff]
      %v480 = vpack.c.bf16 %v473, %v472
      %v481 = vpack.c.bf16 %v475, %v474
      %v482 = vpack.c.bf16 %v477, %v476
      %v483 = vpack.c.bf16 %v479, %v478
      %s484 = scalar_lea.vmem %s1, 128
      %v485 = vld [vmem:[%s484] sm:$0xff]
      %v486 = vld [vmem:[%s484 + $0x8] sm:$0xff]
      %v487 = vld [vmem:[%s484 + $0x10] sm:$0xff]
      %v488 = vld [vmem:[%s484 + $0x18] sm:$0xff]
      %v489 = vld [vmem:[%s484 + $0x20] sm:$0xff]
      %v490 = vld [vmem:[%s484 + $0x28] sm:$0xff]
      %v491 = vld [vmem:[%s484 + $0x30] sm:$0xff]
      %v492 = vld [vmem:[%s484 + $0x38] sm:$0xff]
      %v501 = vunpack.c.l.b16 %v485
      %v502 = vunpack.c.h.b16 %v485
      %v503 = vunpack.c.l.b16 %v486
      %v504 = vunpack.c.h.b16 %v486
      %v505 = vunpack.c.l.b16 %v487
      %v506 = vunpack.c.h.b16 %v487
      %v507 = vunpack.c.l.b16 %v488
      %v508 = vunpack.c.h.b16 %v488
      %v509 = vunpack.c.l.b16 %v489
      %v510 = vunpack.c.h.b16 %v489
      %v511 = vunpack.c.l.b16 %v490
      %v512 = vunpack.c.h.b16 %v490
      %v513 = vunpack.c.l.b16 %v491
      %v514 = vunpack.c.h.b16 %v491
      %v515 = vunpack.c.l.b16 %v492
      %v516 = vunpack.c.h.b16 %v492
      %v517 = vpack.c.b16 %v503, %v501
      %v518 = vpack.c.b16 %v504, %v502
      %v519 = vpack.c.b16 %v507, %v505
      %v520 = vpack.c.b16 %v508, %v506
      %v521 = vpack.c.b16 %v511, %v509
      %v522 = vpack.c.b16 %v512, %v510
      %v523 = vpack.c.b16 %v515, %v513
      %v524 = vpack.c.b16 %v516, %v514
      %v534 = vsel %vm261, %v480, 0
      %v537 = vsel %vm261, %v481, 0
      %v540 = vsel %vm261, %v482, 0
      %v543 = vsel %vm261, %v483, 0
      %545 = vmatprep.subr.bf16.mxu0 %v518
      %546 = vmatpush1.bf16.msra.mxu0 %v517
      %547 = vmatprep.subr.bf16.mxu0 %v520
      %548 = vmatpush1.bf16.msra.mxu0 %v519
      %549 = vmatprep.subr.bf16.mxu0 %v522
      %550 = vmatpush1.bf16.msra.mxu0 %v521
      %551 = vmatprep.subr.bf16.mxu0 %v524
      %552 = vmatpush1.bf16.msra.mxu0 %v523
      %553 = vmatprep.subr.bf16.mxu0 0
      %554 = vmatpush1.bf16.msra.mxu0 0
      %555 = vmatprep.subr.bf16.mxu0 0
      %556 = vmatpush1.bf16.msra.mxu0 0
      %557 = vmatprep.subr.bf16.mxu0 0
      %558 = vmatpush1.bf16.msra.mxu0 0
      %559 = vmatprep.subr.bf16.mxu0 0
      %560 = vmatpush1.bf16.msra.mxu0 0
      %561 = vmatprep.subr.bf16.mxu0 0
      %562 = vmatpush1.bf16.msra.mxu0 0
      %563 = vmatprep.subr.bf16.mxu0 0
      %564 = vmatpush1.bf16.msra.mxu0 0
      %565 = vmatprep.subr.bf16.mxu0 0
      %566 = vmatpush1.bf16.msra.mxu0 0
      %567 = vmatprep.subr.bf16.mxu0 0
      %568 = vmatpush1.bf16.msra.mxu0 0
      %569 = vmatprep.subr.bf16.mxu0 0
      %570 = vmatpush1.bf16.msra.mxu0 0
      %571 = vmatprep.subr.bf16.mxu0 0
      %572 = vmatpush1.bf16.msra.mxu0 0
      %573 = vmatprep.subr.bf16.mxu0 0
      %574 = vmatpush1.bf16.msra.mxu0 0
      %575 = vmatprep.subr.bf16.mxu0 0
      %576 = vmatpush1.bf16.msra.mxu0 0
      %577 = vmatprep.mubr.bf16.mxu0 0
      %578 = vmatmul.mubr.bf16.gmra.mrb[0].mxu0 %v534
      %v579 = vpop.f32.mrb[0].mxu0
      %v580 = vadd.f32 0.0, %v579
      %v581 = vpop.f32.mrb[0].mxu0
      %v582 = vadd.f32 0.0, %v581
      %v583 = vpop.f32.mrb[0].mxu0
      %v584 = vadd.f32 0.0, %v583
      %v585 = vpop.f32.mrb[0].mxu0
      %v586 = vadd.f32 0.0, %v585
      %587 = vmatprep.mubr.bf16.mxu0 0
      %588 = vmatmul.mubr.bf16.gmra.mrb[0].mxu0 %v537
      %v589 = vpop.f32.mrb[0].mxu0
      %v590 = vadd.f32 0.0, %v589
      %v591 = vpop.f32.mrb[0].mxu0
      %v592 = vadd.f32 0.0, %v591
      %v593 = vpop.f32.mrb[0].mxu0
      %v594 = vadd.f32 0.0, %v593
      %v595 = vpop.f32.mrb[0].mxu0
      %v596 = vadd.f32 0.0, %v595
      %597 = vmatprep.mubr.bf16.mxu0 0
      %598 = vmatmul.mubr.bf16.gmra.mrb[0].mxu0 %v540
      %v599 = vpop.f32.mrb[0].mxu0
      %v600 = vadd.f32 0.0, %v599
      %v601 = vpop.f32.mrb[0].mxu0
      %v602 = vadd.f32 0.0, %v601
      %v603 = vpop.f32.mrb[0].mxu0
      %v604 = vadd.f32 0.0, %v603
      %v605 = vpop.f32.mrb[0].mxu0
      %v606 = vadd.f32 0.0, %v605
      %607 = vmatprep.mubr.bf16.mxu0 0
      %608 = vmatmul.mubr.bf16.gmra.mrb[0].mxu0 %v543
      %v609 = vpop.f32.mrb[0].mxu0
      %v610 = vadd.f32 0.0, %v609
      %v611 = vpop.f32.mrb[0].mxu0
      %v612 = vadd.f32 0.0, %v611
      %v613 = vpop.f32.mrb[0].mxu0
      %v614 = vadd.f32 0.0, %v613
      %v615 = vpop.f32.mrb[0].mxu0
      %v616 = vadd.f32 0.0, %v615
      %617 = vdwg.mxu0
      %v618 = vadd.f32 %v434, %v580
      %v619 = vadd.f32 %v436, %v582
      %v620 = vadd.f32 %v438, %v584
      %v621 = vadd.f32 %v440, %v586
      %v622 = vadd.f32 %v444, %v590
      %v623 = vadd.f32 %v446, %v592
      %v624 = vadd.f32 %v448, %v594
      %v625 = vadd.f32 %v450, %v596
      %v626 = vadd.f32 %v454, %v600
      %v627 = vadd.f32 %v456, %v602
      %v628 = vadd.f32 %v458, %v604
      %v629 = vadd.f32 %v460, %v606
      %v630 = vadd.f32 %v464, %v610
      %v631 = vadd.f32 %v466, %v612
      %v632 = vadd.f32 %v468, %v614
      %v633 = vadd.f32 %v470, %v616
      %v634 = vld [vmem:[%s2] sm:$0x3]
      %v636 = vlaneseq
      %v637 = vshrl.u32 %v636, 7
      %v638 = vsub.s32 0, %v637
      %v639 = vrot.slane %v634, %v638
      %v640 = vlaneseq
      %v641 = vshrl.u32 %v640, 7
      %v642 = vsub.s32 1, %v641
      %v643 = vrot.slane %v634, %v642
      %v646 = vadd.f32 %v618, %v639
      %v647 = vadd.f32 %v619, %v643
      %v648 = vadd.f32 %v620, %v639
      %v649 = vadd.f32 %v621, %v643
      %v650 = vadd.f32 %v622, %v639
      %v651 = vadd.f32 %v623, %v643
      %v652 = vadd.f32 %v624, %v639
      %v653 = vadd.f32 %v625, %v643
      %v654 = vadd.f32 %v626, %v639
      %v655 = vadd.f32 %v627, %v643
      %v656 = vadd.f32 %v628, %v639
      %v657 = vadd.f32 %v629, %v643
      %v658 = vadd.f32 %v630, %v639
      %v659 = vadd.f32 %v631, %v643
      %v660 = vadd.f32 %v632, %v639
      %v661 = vadd.f32 %v633, %v643
      %v662 = vxor.u32 %v646, 2147483648
      %v663 = vxor.u32 %v648, 2147483648
      %v664 = vxor.u32 %v650, 2147483648
      %v665 = vxor.u32 %v652, 2147483648
      %v666 = vxor.u32 %v654, 2147483648
      %v667 = vxor.u32 %v656, 2147483648
      %v668 = vxor.u32 %v658, 2147483648
      %v669 = vxor.u32 %v660, 2147483648
      %v670 = vmul.f32 %v662, 1.442695
      %v671 = vpow.pop %v670
      %v672 = vmul.f32 %v663, 1.442695
      %v673 = vpow.pop %v672
      %v674 = vmul.f32 %v664, 1.442695
      %v675 = vpow.pop %v674
      %v676 = vmul.f32 %v665, 1.442695
      %v677 = vpow.pop %v676
      %v678 = vmul.f32 %v666, 1.442695
      %v679 = vpow.pop %v678
      %v680 = vmul.f32 %v667, 1.442695
      %v681 = vpow.pop %v680
      %v682 = vmul.f32 %v668, 1.442695
      %v683 = vpow.pop %v682
      %v684 = vmul.f32 %v669, 1.442695
      %v685 = vpow.pop %v684
      %v686 = vadd.f32 %v671, 1.0
      %v687 = vadd.f32 %v673, 1.0
      %v688 = vadd.f32 %v675, 1.0
      %v689 = vadd.f32 %v677, 1.0
      %v690 = vadd.f32 %v679, 1.0
      %v691 = vadd.f32 %v681, 1.0
      %v692 = vadd.f32 %v683, 1.0
      %v693 = vadd.f32 %v685, 1.0
      %v694 = vrcp.pop %v686
      %v695 = vmul.f32 1.0, %v694
      %v696 = vrcp.pop %v687
      %v697 = vmul.f32 1.0, %v696
      %v698 = vrcp.pop %v688
      %v699 = vmul.f32 1.0, %v698
      %v700 = vrcp.pop %v689
      %v701 = vmul.f32 1.0, %v700
      %v702 = vrcp.pop %v690
      %v703 = vmul.f32 1.0, %v702
      %v704 = vrcp.pop %v691
      %v705 = vmul.f32 1.0, %v704
      %v706 = vrcp.pop %v692
      %v707 = vmul.f32 1.0, %v706
      %v708 = vrcp.pop %v693
      %v709 = vmul.f32 1.0, %v708
      %718 = vrot.lane.b32.xlu0 %v695, 64
      %v719 = vpop.permute.xlu0 %718
      %720 = vrot.lane.b32.xlu0 %v697, 64
      %v721 = vpop.permute.xlu0 %720
      %722 = vrot.lane.b32.xlu0 %v699, 64
      %v723 = vpop.permute.xlu0 %722
      %724 = vrot.lane.b32.xlu0 %v701, 64
      %v725 = vpop.permute.xlu0 %724
      %726 = vrot.lane.b32.xlu0 %v703, 64
      %v727 = vpop.permute.xlu0 %726
      %728 = vrot.lane.b32.xlu0 %v705, 64
      %v729 = vpop.permute.xlu0 %728
      %730 = vrot.lane.b32.xlu0 %v707, 64
      %v731 = vpop.permute.xlu0 %730
      %732 = vrot.lane.b32.xlu0 %v709, 64
      %v733 = vpop.permute.xlu0 %732
      %v742 = vadd.f32 %v646, %v719
      %v743 = vadd.f32 %v648, %v721
      %v744 = vadd.f32 %v650, %v723
      %v745 = vadd.f32 %v652, %v725
      %v746 = vadd.f32 %v654, %v727
      %v747 = vadd.f32 %v656, %v729
      %v748 = vadd.f32 %v658, %v731
      %v749 = vadd.f32 %v660, %v733
      %v750 = vadd.f32 %v742, %v647
      %v751 = vadd.f32 %v743, %v649
      %v752 = vadd.f32 %v744, %v651
      %v753 = vadd.f32 %v745, %v653
      %v754 = vadd.f32 %v746, %v655
      %v755 = vadd.f32 %v747, %v657
      %v756 = vadd.f32 %v748, %v659
      %v757 = vadd.f32 %v749, %v661
      %v758 = vmax.f32 %v750, 0.0
      %v759 = vmax.f32 %v751, 0.0
      %v760 = vmax.f32 %v752, 0.0
      %v761 = vmax.f32 %v753, 0.0
      %v762 = vmax.f32 %v754, 0.0
      %v763 = vmax.f32 %v755, 0.0
      %v764 = vmax.f32 %v756, 0.0
      %v765 = vmax.f32 %v757, 0.0
      %766 = vst.msk [vmem:[%s177] sm:$0xff] %vm261, %v758
      %767 = vst.msk [vmem:[%s177 + $0x8] sm:$0xff] %vm261, %v759
      %768 = vst.msk [vmem:[%s177 + $0x18] sm:$0xff] %vm261, %v760
      %769 = vst.msk [vmem:[%s177 + $0x20] sm:$0xff] %vm261, %v761
      %770 = vst.msk [vmem:[%s177 + $0x30] sm:$0xff] %vm261, %v762
      %771 = vst.msk [vmem:[%s177 + $0x38] sm:$0xff] %vm261, %v763
      %772 = vst.msk [vmem:[%s177 + $0x48] sm:$0xff] %vm261, %v764
      %773 = vst.msk [vmem:[%s177 + $0x50] sm:$0xff] %vm261, %v765
      %774 = vst.msk [vmem:[%s177 + $0x10] sm:$0xff] %vm261, 0.0
      %775 = vst.msk [vmem:[%s177 + $0x28] sm:$0xff] %vm261, 0.0
      %776 = vst.msk [vmem:[%s177 + $0x40] sm:$0xff] %vm261, 0.0
      %777 = vst.msk [vmem:[%s177 + $0x58] sm:$0xff] %vm261, 0.0
      %s778 = smul.u32 2, %s14
      %p779 = scmp.lt.s32.totalorder %s778, 7
      %s780 = scalar_select %p779, %s778, 7
      %s781 = smul.addr %s780, 6
      %s782 = smul.addr %s781, 8
      %s783 = scalar_lea.vmem %s3, %s782
      // Predicated region
      $region33: #{stgcn_forward.13} parent=31 // pred_check
        %p784 = pneg %p100
      $region34: #{stgcn_forward.13} parent=31 // pred_check_branch
        %786 = sbr.rel (%p784) target = $region36
      $region35: #{stgcn_forward.13} parent=31 // pred_region
        %s787 = smul.u32 2, %s14
      $region36: #{stgcn_forward.13} parent=31 // pred_fallthru
        _
    $region32: #{stgcn_forward.13} parent=5 // pred_fallthru
      _
    %p788 = scmp.le.s32.totalorder 2, %s9
    // Predicated region
    $region37: #{stgcn_forward.13} parent=5 // pred_check
      %p789 = pneg %p788
    $region38: #{stgcn_forward.13} parent=5 // pred_check_branch
      %791 = sbr.rel (%p789) target = $region40
    $region39: #{stgcn_forward.13} parent=5 // pred_region
      %s792 = ssub.s32 %s9, 2
      // Predicated region
      $region41: #{stgcn_forward.13} parent=39 // pred_check
        %p793 = pneg %p106
      $region42: #{stgcn_forward.13} parent=39 // pred_check_branch
        %795 = sbr.rel (%p793) target = $region44
      $region43: #{stgcn_forward.13} parent=39 // pred_region
        %s796 = smul.u32 2, %s15
        %p797 = scmp.lt.s32.totalorder %s796, 7
        %s798 = scalar_select %p797, %s796, 7
        %s799 = smul.addr %s798, 6
        %s800 = smul.addr %s799, 8
        %s801 = scalar_lea.vmem %s3, %s800
      $region44: #{stgcn_forward.13} parent=39 // pred_fallthru
        _
    $region40: #{stgcn_forward.13} parent=5 // pred_fallthru
      _
  $region6: #{stgcn_forward.13} parent=0 // loop_footer
    %s13 = sadd.s32 1, %s9
  $region7: #{stgcn_forward.13} parent=0 // loop_footer_branch
    %8 = sbr.rel target = $region3
  $region8: #{stgcn_forward.13} parent=0 // loop_exit
    _

</llo_original>
